<compile_context>
chip_gen: v6e
topology: v6e:2x2x1
jax: 0.10.0
libtpu: 0.0.40
codegen_flags: <defaults>
</compile_context>

<pallas_src>
import math

import jax
import jax.numpy as jnp
from jax.experimental import pallas as pl
from jax.experimental.pallas import tpu as pltpu


_INV_SQRT2 = 0.7071067811865476
# ~4 MB of VMEM-padded HBM traffic per grid step (in + out): large enough for
# good HBM roofline utilization, small enough that x2 double buffering plus
# weights stays well below the default scoped-VMEM limit on all chips.
_TARGET_BLOCK_BYTES = 4 * 1024 * 1024


def _erf_poly(x):
    # Abramowitz & Stegun 7.1.26, max abs error ~1.5e-7.  Uses only mul/add/
    # div/exp/select, all of which lower cleanly in Mosaic (exp -> EUP).
    p = 0.3275911
    a1, a2, a3, a4, a5 = (0.254829592, -0.284496736, 1.421413741,
                          -1.453152027, 1.061405429)
    sgn = jnp.where(x >= 0.0, 1.0, -1.0)
    ax = jnp.abs(x)
    t = 1.0 / (1.0 + p * ax)
    poly = ((((a5 * t + a4) * t + a3) * t + a2) * t + a1) * t
    return sgn * (1.0 - poly * jnp.exp(-ax * ax))


def _gelu_exact(y):
    # matches torch.nn.GELU(approximate='none') to ~1e-7
    return 0.5 * y * (1.0 + _erf_poly(y * _INV_SQRT2))


# ---------------------------------------------------------------------------
# Pallas kernels
# ---------------------------------------------------------------------------
def _stage_kernel(x_ref, w_ref, b_ref, o_ref):
    """ConvTranspose2d(k=2,s=2) + folded BatchNorm(eval) + exact GELU.

    x_ref: [gb, Cin, P]      bf16  (P = original H*W pixels on the lane dim)
    w_ref: [4*Cout, Cin]     bf16  (all four 2x2 taps stacked; BN scale folded)
    b_ref: [4*Cout, 1]       f32   (conv bias + BN shift, folded, tiled x4)
    o_ref: [gb, 4*Cout, P]   bf16  (tap digit deferred to the group dim)
    """
    gb = x_ref.shape[0]

    def body(g, carry):
        y = jnp.dot(w_ref[...], x_ref[g], preferred_element_type=jnp.float32)
        y = _gelu_exact(y + b_ref[...])
        o_ref[g] = y.astype(o_ref.dtype)
        return carry

    jax.lax.fori_loop(0, gb, body, 0)


def _stage5_final_kernel(x_ref, w_ref, b_ref, wf_ref, bf_ref, o_ref):
    """Last upsampling stage fused with the final 1x1 Conv2d (logits).

    x_ref : [gb, C4, P]        bf16
    w_ref : [4*C5, C4]         bf16  (stacked taps, BN scale folded)
    b_ref : [4*C5, 1]          f32
    wf_ref: [4*nc, 4*C5]       bf16  (block-diagonal final 1x1 conv)
    bf_ref: [4*nc, 1]          f32
    o_ref : [gb, 4*nc, P]      f32   (lane-dense logits; interleave deferred)
    """
    gb = x_ref.shape[0]

    def body(g, carry):
        h = jnp.dot(w_ref[...], x_ref[g], preferred_element_type=jnp.float32)
        h = _gelu_exact(h + b_ref[...])                    # [4*C5, P] f32
        logits = jnp.dot(wf_ref[...], h.astype(jnp.bfloat16),
                         preferred_element_type=jnp.float32)
        o_ref[g] = logits + bf_ref[...]                    # [4*nc, P] f32
        return carry

    jax.lax.fori_loop(0, gb, body, 0)


# ---------------------------------------------------------------------------
# pallas_call wrappers (byte-targeted group blocking over the grid)
# ---------------------------------------------------------------------------
def _pad_to(v, m):
    return ((v + m - 1) // m) * m


def _largest_group_block(G, cap):
    """Largest divisor of G that is <= cap (at least 1)."""
    cap = max(1, min(G, cap))
    best = 1
    for d in range(1, G + 1):
        if G % d == 0 and d <= cap:
            best = d
    return best


def _upsample_stage(a, p):
    """[G, Cin, P] bf16 -> [4*G, Cout, P] bf16 (tap digit appended to groups)."""
    G, Cin, P = a.shape
    Cout4 = p["w"].shape[0]                       # 4 * Cout
    plane = _pad_to(P, 128)
    per_group = 2 * _pad_to(Cin, 8) * plane + 2 * _pad_to(Cout4, 8) * plane
    gb = _largest_group_block(G, _TARGET_BLOCK_BYTES // max(per_group, 1))
    out = pl.pallas_call(
        _stage_kernel,
        out_shape=jax.ShapeDtypeStruct((G, Cout4, P), jnp.bfloat16),
        grid_spec=pltpu.PrefetchScalarGridSpec(
            num_scalar_prefetch=0,
            grid=(G // gb,),
            in_specs=[
                pl.BlockSpec((gb, Cin, P), lambda i: (i, 0, 0)),
                pl.BlockSpec((Cout4, Cin), lambda i: (0, 0)),
                pl.BlockSpec((Cout4, 1), lambda i: (0, 0)),
            ],
            out_specs=pl.BlockSpec((gb, Cout4, P), lambda i: (i, 0, 0)),
        ),
        compiler_params=pltpu.CompilerParams(
            dimension_semantics=("parallel",)),
    )(a, p["w"], p["shift"])
    # folding the new tap digit into the group dim is a free leading-dim reshape
    return out.reshape(G * 4, Cout4 // 4, P)


def _upsample_stage_with_final(a, p, fp):
    """Last stage + final 1x1 conv fused. Returns [G, 4*nc, P] f32 logits."""
    G, Cin, P = a.shape
    C5x4 = p["w"].shape[0]                        # 4 * C5
    nc = fp["w"].shape[0]
    # block-diagonal final 1x1 conv so all four taps share one matmul
    wf_blk = jnp.kron(jnp.eye(4, dtype=fp["w"].dtype), fp["w"])   # [4nc, 4C5]
    bf = jnp.tile(fp["bias"], (4, 1))                             # [4nc, 1]
    plane = _pad_to(P, 128)
    per_group = 2 * _pad_to(Cin, 8) * plane + 4 * _pad_to(4 * nc, 8) * plane
    gb = _largest_group_block(G, _TARGET_BLOCK_BYTES // max(per_group, 1))
    return pl.pallas_call(
        _stage5_final_kernel,
        out_shape=jax.ShapeDtypeStruct((G, 4 * nc, P), jnp.float32),
        grid_spec=pltpu.PrefetchScalarGridSpec(
            num_scalar_prefetch=0,
            grid=(G // gb,),
            in_specs=[
                pl.BlockSpec((gb, Cin, P), lambda i: (i, 0, 0)),
                pl.BlockSpec((C5x4, Cin), lambda i: (0, 0)),
                pl.BlockSpec((C5x4, 1), lambda i: (0, 0)),
                pl.BlockSpec((4 * nc, C5x4), lambda i: (0, 0)),
                pl.BlockSpec((4 * nc, 1), lambda i: (0, 0)),
            ],
            out_specs=pl.BlockSpec((gb, 4 * nc, P), lambda i: (i, 0, 0)),
        ),
        compiler_params=pltpu.CompilerParams(
            dimension_semantics=("parallel",)),
    )(a, p["w"], p["shift"], wf_blk, bf)


def _undo_deferred_interleaves(logits, n, nc, h, w):
    """logits [n*256, 4*nc, h*w]; group digits (n,a1,b1,a2,b2,a3,b3,a4,b4),
    channel digits (a5,b5,c), pixel digits (h,w) -> [n, nc, 32h, 32w]."""
    g = logits.shape[0]
    t = logits.reshape(g, 2, 2, nc, h, w)            # (grp, a5, b5, c, h, w)
    t = jnp.transpose(t, (0, 3, 4, 1, 5, 2))         # (grp, c, h, a5, w, b5)
    rh = rw = 2
    t = t.reshape(g, nc, h * rh, w * rw)
    for _ in range(4):                                # peel taps 4, 3, 2, 1
        g //= 4
        t = t.reshape(g, 2, 2, nc, h, rh, w, rw)      # (g', a, b, c, h, sh, w, sw)
        t = jnp.transpose(t, (0, 3, 4, 1, 5, 6, 2, 7))  # (g', c, h, a, sh, w, b, sw)
        rh, rw = 2 * rh, 2 * rw
        t = t.reshape(g, nc, h * rh, w * rw)
    assert g == n
    return t                                          # (n, nc, 32h, 32w)


# ---------------------------------------------------------------------------
# Head forward (NCHW in, NCHW logits out)
# ---------------------------------------------------------------------------
def conv_head_forward(x_nchw, params):
    N, C0, H, W = x_nchw.shape
    nc = params["final"]["w"].shape[0]
    # channels -> sublanes, pixels -> lanes; bf16 activations, f32 accumulation
    a = x_nchw.reshape(N, C0, H * W).astype(jnp.bfloat16)
    for p in params["stages"][:-1]:
        a = _upsample_stage(a, p)
    logits = _upsample_stage_with_final(a, params["stages"][-1], params["final"])
    return _undo_deferred_interleaves(logits, N, nc, H, W)


# ---------------------------------------------------------------------------
# Pure-JAX reference (same folded params, straightforward per-stage interleave)
# ---------------------------------------------------------------------------
def conv_head_forward_reference(x_nchw, params):
    x = jnp.transpose(x_nchw, (0, 2, 3, 1)).astype(jnp.bfloat16)   # NHWC bf16
    for p in params["stages"]:
        N, Hc, Wc, Cin = x.shape
        w = p["w"].astype(jnp.float32)            # [4*Cout, Cin], scale folded
        shift = p["shift"][:, 0]                  # [4*Cout]
        Cout = w.shape[0] // 4
        y = _gelu_exact(x.reshape(-1, Cin).astype(jnp.float32) @ w.T + shift)
        y = y.reshape(N, Hc, Wc, 2, 2, Cout)
        y = y.transpose(0, 1, 3, 2, 4, 5).reshape(N, 2 * Hc, 2 * Wc, Cout)
        x = y.astype(jnp.bfloat16)
    fp = params["final"]
    N, Hf, Wf, C5 = x.shape
    wf = fp["w"].astype(jnp.float32)
    logits = x.reshape(-1, C5).astype(jnp.float32) @ wf.T + fp["bias"][:, 0]
    nc = wf.shape[0]
    return jnp.transpose(logits.reshape(N, Hf, Wf, nc), (0, 3, 1, 2))


# ---------------------------------------------------------------------------
# Deterministic parameter construction (synthetic, no checkpoint)
# ---------------------------------------------------------------------------
def _convt_bn_params(key, cin, cout, eps=1e-5):
    kw, kb, kg, kbe, km, kv = jax.random.split(key, 6)
    fan_in = cin * 2 * 2
    bound = 1.0 / math.sqrt(fan_in)
    # torch ConvTranspose2d weight layout: [Cin, Cout, kH, kW]
    weight = jax.random.uniform(kw, (cin, cout, 2, 2), jnp.float32, -bound, bound)
    bias = jax.random.uniform(kb, (cout,), jnp.float32, -bound, bound)
    gamma = 1.0 + 0.1 * jax.random.normal(kg, (cout,), jnp.float32)
    beta = 0.1 * jax.random.normal(kbe, (cout,), jnp.float32)
    running_mean = 0.1 * jax.random.normal(km, (cout,), jnp.float32)
    running_var = jax.random.uniform(kv, (cout,), jnp.float32, 0.5, 1.5)
    # fold eval-mode BN into a per-channel affine; fold its scale into W.
    s = gamma / jnp.sqrt(running_var + eps)
    shift = bias * s + (beta - running_mean * s)                 # [cout]
    # stacked per-tap weights for [4*Cout, Cin] @ [Cin, P]: row = (kh*2+kw)*Cout+co
    wt = jnp.transpose(weight, (2, 3, 1, 0)) * s[None, None, :, None]
    w_stack = wt.reshape(4 * cout, cin)
    shift_stack = jnp.tile(shift, 4).reshape(4 * cout, 1)
    return {"w": w_stack.astype(jnp.bfloat16),
            "shift": shift_stack.astype(jnp.float32)}


def _final_conv1x1_params(key, cin, num_classes):
    kw, kb = jax.random.split(key, 2)
    bound = 1.0 / math.sqrt(cin)
    # torch Conv2d weight layout: [num_classes, Cin, 1, 1]
    weight = jax.random.uniform(kw, (num_classes, cin, 1, 1), jnp.float32,
                                -bound, bound)
    bias = jax.random.uniform(kb, (num_classes,), jnp.float32, -bound, bound)
    return {"w": weight[:, :, 0, 0].astype(jnp.bfloat16),        # [nc, Cin]
            "bias": bias.reshape(num_classes, 1).astype(jnp.float32)}


def make_conv_head_params(key, num_inputs, dim_reduced, num_classes):
    chans = [num_inputs, dim_reduced, dim_reduced,
             dim_reduced // 2, dim_reduced // 4, dim_reduced // 8]
    keys = jax.random.split(key, 6)
    stages = [_convt_bn_params(keys[i], chans[i], chans[i + 1]) for i in range(5)]
    final = _final_conv1x1_params(keys[5], chans[5], num_classes)
    return {"stages": stages, "final": final}


# ---------------------------------------------------------------------------
if __name__ == "__main__":
    # Small shapes consistent with the module (defaults 256/128 scaled down).
    NUM_INPUTS, DIM_REDUCED, NUM_CLASSES = 64, 32, 1
    N, H, W = 2, 8, 8

    root = jax.random.PRNGKey(0)
    kx, kp = jax.random.split(root)
    x = jax.random.normal(kx, (N, NUM_INPUTS, H, W), jnp.float32)  # NCHW input
    params = make_conv_head_params(kp, NUM_INPUTS, DIM_REDUCED, NUM_CLASSES)

    fwd = jax.jit(conv_head_forward)
    out = jax.block_until_ready(fwd(x, params))

    # shape check: 5 upsampling stages => spatial x32, channels = num_classes
    assert out.shape == (N, NUM_CLASSES, H * 32, W * 32), out.shape
    assert bool(jnp.all(jnp.isfinite(out)))

    # cross-check against a pure-JAX reference of the same math (including the
    # straightforward per-stage interleave, validating the deferred permutation)
    ref = jax.block_until_ready(jax.jit(conv_head_forward_reference)(x, params))
    max_err = float(jnp.max(jnp.abs(out - ref)))
    assert bool(jnp.allclose(out, ref, rtol=1e-2, atol=1e-2)), max_err

    print("KERNEL_OK")
</pallas_src>

<mosaic_0001>
module attributes {stable_mosaic.version = 11 : i64} {
  func.func @_stage_kernel(%arg0: i32, %arg1: memref<8x32x64xbf16, #tpu.memory_space<vmem>>, %arg2: memref<128x32xbf16, #tpu.memory_space<vmem>>, %arg3: memref<128x1xf32, #tpu.memory_space<vmem>>, %arg4: memref<8x128x64xbf16, #tpu.memory_space<vmem>>) attributes {dimension_semantics = [#tpu.dimension_semantics<parallel>], iteration_bounds = array<i64: 1>, scalar_prefetch = 0 : i64, scratch_operands = 0 : i64, tpu.core_type = #tpu.core_type<tc>, window_params = [{transform_indices = @transform_0, window_bounds = array<i64: 8, 32, 64>}, {pipeline_mode = #tpu.pipeline_mode<synchronous>, transform_indices = @transform_1, window_bounds = array<i64: 128, 32>}, {pipeline_mode = #tpu.pipeline_mode<synchronous>, transform_indices = @transform_2, window_bounds = array<i64: 128, 1>}, {transform_indices = @transform_3, window_bounds = array<i64: 8, 128, 64>}]} {
    %c0_i32 = arith.constant 0 : i32
    %c8_i32 = arith.constant 8 : i32
    %0 = arith.addi %c0_i32, %c8_i32 : i32
    %c1_i32 = arith.constant 1 : i32
    scf.for %arg5 = %c0_i32 to %0 step %c1_i32  : i32 {
      %c0 = arith.constant 0 : index
      %c0_1 = arith.constant 0 : index
      %1 = vector.load %arg2[%c0, %c0_1] : memref<128x32xbf16, #tpu.memory_space<vmem>>, vector<128x32xbf16>
      %2 = arith.index_cast %arg5 : i32 to index
      %c0_2 = arith.constant 0 : index
      %c0_3 = arith.constant 0 : index
      %3 = vector.load %arg1[%2, %c0_2, %c0_3] : memref<8x32x64xbf16, #tpu.memory_space<vmem>>, vector<1x32x64xbf16>
      %4 = vector.shape_cast %3 : vector<1x32x64xbf16> to vector<32x64xbf16>
      %cst = arith.constant dense<0.000000e+00> : vector<128x64xf32>
      %5 = tpu.matmul %1, %4, %cst {dimension_numbers = #tpu.dot_dimension_numbers<[1], [0], [0], [1], [0, 0, 1, 1], [], []>} : vector<128x32xbf16>, vector<32x64xbf16>, vector<128x64xf32> -> vector<128x64xf32>
      %c0_4 = arith.constant 0 : index
      %c0_5 = arith.constant 0 : index
      %6 = vector.load %arg3[%c0_4, %c0_5] : memref<128x1xf32, #tpu.memory_space<vmem>>, vector<128x1xf32>
      %7 = vector.broadcast %6 : vector<128x1xf32> to vector<128x64xf32>
      %8 = arith.addf %5, %7 : vector<128x64xf32>
      %cst_6 = arith.constant 5.000000e-01 : f32
      %9 = vector.broadcast %cst_6 : f32 to vector<128x64xf32>
      %10 = arith.mulf %9, %8 : vector<128x64xf32>
      %cst_7 = arith.constant 0.707106769 : f32
      %11 = vector.broadcast %cst_7 : f32 to vector<128x64xf32>
      %12 = arith.mulf %8, %11 : vector<128x64xf32>
      %cst_8 = arith.constant 0.000000e+00 : f32
      %13 = vector.broadcast %cst_8 : f32 to vector<128x64xf32>
      %14 = arith.cmpf oge, %12, %13 : vector<128x64xf32>
      %cst_9 = arith.constant 1.000000e+00 : f32
      %cst_10 = arith.constant -1.000000e+00 : f32
      %15 = vector.broadcast %cst_9 : f32 to vector<128x64xf32>
      %16 = vector.broadcast %cst_10 : f32 to vector<128x64xf32>
      %17 = arith.select %14, %15, %16 : vector<128x64xi1>, vector<128x64xf32>
      %18 = math.absf %12 : vector<128x64xf32>
      %cst_11 = arith.constant 0.327591091 : f32
      %19 = vector.broadcast %cst_11 : f32 to vector<128x64xf32>
      %20 = arith.mulf %19, %18 : vector<128x64xf32>
      %cst_12 = arith.constant 1.000000e+00 : f32
      %21 = vector.broadcast %cst_12 : f32 to vector<128x64xf32>
      %22 = arith.addf %21, %20 : vector<128x64xf32>
      %cst_13 = arith.constant 1.000000e+00 : f32
      %23 = vector.broadcast %cst_13 : f32 to vector<128x64xf32>
      %24 = arith.divf %23, %22 : vector<128x64xf32>
      %cst_14 = arith.constant 1.06140542 : f32
      %25 = vector.broadcast %cst_14 : f32 to vector<128x64xf32>
      %26 = arith.mulf %25, %24 : vector<128x64xf32>
      %cst_15 = arith.constant -1.45315206 : f32
      %27 = vector.broadcast %cst_15 : f32 to vector<128x64xf32>
      %28 = arith.addf %26, %27 : vector<128x64xf32>
      %29 = arith.mulf %28, %24 : vector<128x64xf32>
      %cst_16 = arith.constant 1.42141378 : f32
      %30 = vector.broadcast %cst_16 : f32 to vector<128x64xf32>
      %31 = arith.addf %29, %30 : vector<128x64xf32>
      %32 = arith.mulf %31, %24 : vector<128x64xf32>
      %cst_17 = arith.constant -0.284496725 : f32
      %33 = vector.broadcast %cst_17 : f32 to vector<128x64xf32>
      %34 = arith.addf %32, %33 : vector<128x64xf32>
      %35 = arith.mulf %34, %24 : vector<128x64xf32>
      %cst_18 = arith.constant 0.254829586 : f32
      %36 = vector.broadcast %cst_18 : f32 to vector<128x64xf32>
      %37 = arith.addf %35, %36 : vector<128x64xf32>
      %38 = arith.mulf %37, %24 : vector<128x64xf32>
      %cst_19 = arith.constant 0.000000e+00 : f32
      %39 = vector.broadcast %cst_19 : f32 to vector<128x64xf32>
      %40 = arith.subf %39, %18 : vector<128x64xf32>
      %41 = arith.mulf %40, %18 : vector<128x64xf32>
      %42 = math.exp %41 : vector<128x64xf32>
      %43 = arith.mulf %38, %42 : vector<128x64xf32>
      %cst_20 = arith.constant 1.000000e+00 : f32
      %44 = vector.broadcast %cst_20 : f32 to vector<128x64xf32>
      %45 = arith.subf %44, %43 : vector<128x64xf32>
      %46 = arith.mulf %17, %45 : vector<128x64xf32>
      %cst_21 = arith.constant 1.000000e+00 : f32
      %47 = vector.broadcast %cst_21 : f32 to vector<128x64xf32>
      %48 = arith.addf %47, %46 : vector<128x64xf32>
      %49 = arith.mulf %10, %48 : vector<128x64xf32>
      %50 = arith.truncf %49 : vector<128x64xf32> to vector<128x64xbf16>
      %51 = arith.index_cast %arg5 : i32 to index
      %c0_22 = arith.constant 0 : index
      %c0_23 = arith.constant 0 : index
      %52 = vector.load %arg4[%51, %c0_22, %c0_23] : memref<8x128x64xbf16, #tpu.memory_space<vmem>>, vector<1x128x64xbf16>
      %53 = vector.shape_cast %52 : vector<1x128x64xbf16> to vector<128x64xbf16>
      %54 = vector.shape_cast %50 : vector<128x64xbf16> to vector<1x128x64xbf16>
      tpu.vector_store %arg4[%51, %c0_22, %c0_23], %54 {strides = array<i32>} : memref<8x128x64xbf16, #tpu.memory_space<vmem>>, vector<1x128x64xbf16>,
    }
    %c8_i32_0 = arith.constant 8 : i32
    return
  }
  func.func @transform_0(%arg0: i32) -> (i32, i32, i32) {
    %c0_i32 = arith.constant 0 : i32
    %c0_i32_0 = arith.constant 0 : i32
    %c0_i32_1 = arith.constant 0 : i32
    return %arg0, %c0_i32, %c0_i32_0 : i32, i32, i32
  }
  func.func @transform_1(%arg0: i32) -> (i32, i32) {
    %c0_i32 = arith.constant 0 : i32
    %c0_i32_0 = arith.constant 0 : i32
    %c0_i32_1 = arith.constant 0 : i32
    return %c0_i32, %c0_i32_0 : i32, i32
  }
  func.func @transform_2(%arg0: i32) -> (i32, i32) {
    %c0_i32 = arith.constant 0 : i32
    %c0_i32_0 = arith.constant 0 : i32
    %c0_i32_1 = arith.constant 0 : i32
    return %c0_i32, %c0_i32_0 : i32, i32
  }
  func.func @transform_3(%arg0: i32) -> (i32, i32, i32) {
    %c0_i32 = arith.constant 0 : i32
    %c0_i32_0 = arith.constant 0 : i32
    %c0_i32_1 = arith.constant 0 : i32
    return %arg0, %c0_i32, %c0_i32_0 : i32, i32, i32
  }
}

module attributes {stable_mosaic.version = 11 : i64} {
  func.func @_stage_kernel(%arg0: i32, %arg1: memref<2x64x64xbf16, #tpu.memory_space<vmem>>, %arg2: memref<128x64xbf16, #tpu.memory_space<vmem>>, %arg3: memref<128x1xf32, #tpu.memory_space<vmem>>, %arg4: memref<2x128x64xbf16, #tpu.memory_space<vmem>>) attributes {dimension_semantics = [#tpu.dimension_semantics<parallel>], iteration_bounds = array<i64: 1>, scalar_prefetch = 0 : i64, scratch_operands = 0 : i64, tpu.core_type = #tpu.core_type<tc>, window_params = [{transform_indices = @transform_0, window_bounds = array<i64: 2, 64, 64>}, {pipeline_mode = #tpu.pipeline_mode<synchronous>, transform_indices = @transform_1, window_bounds = array<i64: 128, 64>}, {pipeline_mode = #tpu.pipeline_mode<synchronous>, transform_indices = @transform_2, window_bounds = array<i64: 128, 1>}, {transform_indices = @transform_3, window_bounds = array<i64: 2, 128, 64>}]} {
    %c0_i32 = arith.constant 0 : i32
    %c2_i32 = arith.constant 2 : i32
    %0 = arith.addi %c0_i32, %c2_i32 : i32
    %c1_i32 = arith.constant 1 : i32
    scf.for %arg5 = %c0_i32 to %0 step %c1_i32  : i32 {
      %c0 = arith.constant 0 : index
      %c0_1 = arith.constant 0 : index
      %1 = vector.load %arg2[%c0, %c0_1] : memref<128x64xbf16, #tpu.memory_space<vmem>>, vector<128x64xbf16>
      %2 = arith.index_cast %arg5 : i32 to index
      %c0_2 = arith.constant 0 : index
      %c0_3 = arith.constant 0 : index
      %3 = vector.load %arg1[%2, %c0_2, %c0_3] : memref<2x64x64xbf16, #tpu.memory_space<vmem>>, vector<1x64x64xbf16>
      %4 = vector.shape_cast %3 : vector<1x64x64xbf16> to vector<64x64xbf16>
      %cst = arith.constant dense<0.000000e+00> : vector<128x64xf32>
      %5 = tpu.matmul %1, %4, %cst {dimension_numbers = #tpu.dot_dimension_numbers<[1], [0], [0], [1], [0, 0, 1, 1], [], []>} : vector<128x64xbf16>, vector<64x64xbf16>, vector<128x64xf32> -> vector<128x64xf32>
      %c0_4 = arith.constant 0 : index
      %c0_5 = arith.constant 0 : index
      %6 = vector.load %arg3[%c0_4, %c0_5] : memref<128x1xf32, #tpu.memory_space<vmem>>, vector<128x1xf32>
      %7 = vector.broadcast %6 : vector<128x1xf32> to vector<128x64xf32>
      %8 = arith.addf %5, %7 : vector<128x64xf32>
      %cst_6 = arith.constant 5.000000e-01 : f32
      %9 = vector.broadcast %cst_6 : f32 to vector<128x64xf32>
      %10 = arith.mulf %9, %8 : vector<128x64xf32>
      %cst_7 = arith.constant 0.707106769 : f32
      %11 = vector.broadcast %cst_7 : f32 to vector<128x64xf32>
      %12 = arith.mulf %8, %11 : vector<128x64xf32>
      %cst_8 = arith.constant 0.000000e+00 : f32
      %13 = vector.broadcast %cst_8 : f32 to vector<128x64xf32>
      %14 = arith.cmpf oge, %12, %13 : vector<128x64xf32>
      %cst_9 = arith.constant 1.000000e+00 : f32
      %cst_10 = arith.constant -1.000000e+00 : f32
      %15 = vector.broadcast %cst_9 : f32 to vector<128x64xf32>
      %16 = vector.broadcast %cst_10 : f32 to vector<128x64xf32>
      %17 = arith.select %14, %15, %16 : vector<128x64xi1>, vector<128x64xf32>
      %18 = math.absf %12 : vector<128x64xf32>
      %cst_11 = arith.constant 0.327591091 : f32
      %19 = vector.broadcast %cst_11 : f32 to vector<128x64xf32>
      %20 = arith.mulf %19, %18 : vector<128x64xf32>
      %cst_12 = arith.constant 1.000000e+00 : f32
      %21 = vector.broadcast %cst_12 : f32 to vector<128x64xf32>
      %22 = arith.addf %21, %20 : vector<128x64xf32>
      %cst_13 = arith.constant 1.000000e+00 : f32
      %23 = vector.broadcast %cst_13 : f32 to vector<128x64xf32>
      %24 = arith.divf %23, %22 : vector<128x64xf32>
      %cst_14 = arith.constant 1.06140542 : f32
      %25 = vector.broadcast %cst_14 : f32 to vector<128x64xf32>
      %26 = arith.mulf %25, %24 : vector<128x64xf32>
      %cst_15 = arith.constant -1.45315206 : f32
      %27 = vector.broadcast %cst_15 : f32 to vector<128x64xf32>
      %28 = arith.addf %26, %27 : vector<128x64xf32>
      %29 = arith.mulf %28, %24 : vector<128x64xf32>
      %cst_16 = arith.constant 1.42141378 : f32
      %30 = vector.broadcast %cst_16 : f32 to vector<128x64xf32>
      %31 = arith.addf %29, %30 : vector<128x64xf32>
      %32 = arith.mulf %31, %24 : vector<128x64xf32>
      %cst_17 = arith.constant -0.284496725 : f32
      %33 = vector.broadcast %cst_17 : f32 to vector<128x64xf32>
      %34 = arith.addf %32, %33 : vector<128x64xf32>
      %35 = arith.mulf %34, %24 : vector<128x64xf32>
      %cst_18 = arith.constant 0.254829586 : f32
      %36 = vector.broadcast %cst_18 : f32 to vector<128x64xf32>
      %37 = arith.addf %35, %36 : vector<128x64xf32>
      %38 = arith.mulf %37, %24 : vector<128x64xf32>
      %cst_19 = arith.constant 0.000000e+00 : f32
      %39 = vector.broadcast %cst_19 : f32 to vector<128x64xf32>
      %40 = arith.subf %39, %18 : vector<128x64xf32>
      %41 = arith.mulf %40, %18 : vector<128x64xf32>
      %42 = math.exp %41 : vector<128x64xf32>
      %43 = arith.mulf %38, %42 : vector<128x64xf32>
      %cst_20 = arith.constant 1.000000e+00 : f32
      %44 = vector.broadcast %cst_20 : f32 to vector<128x64xf32>
      %45 = arith.subf %44, %43 : vector<128x64xf32>
      %46 = arith.mulf %17, %45 : vector<128x64xf32>
      %cst_21 = arith.constant 1.000000e+00 : f32
      %47 = vector.broadcast %cst_21 : f32 to vector<128x64xf32>
      %48 = arith.addf %47, %46 : vector<128x64xf32>
      %49 = arith.mulf %10, %48 : vector<128x64xf32>
      %50 = arith.truncf %49 : vector<128x64xf32> to vector<128x64xbf16>
      %51 = arith.index_cast %arg5 : i32 to index
      %c0_22 = arith.constant 0 : index
      %c0_23 = arith.constant 0 : index
      %52 = vector.load %arg4[%51, %c0_22, %c0_23] : memref<2x128x64xbf16, #tpu.memory_space<vmem>>, vector<1x128x64xbf16>
      %53 = vector.shape_cast %52 : vector<1x128x64xbf16> to vector<128x64xbf16>
      %54 = vector.shape_cast %50 : vector<128x64xbf16> to vector<1x128x64xbf16>
      tpu.vector_store %arg4[%51, %c0_22, %c0_23], %54 {strides = array<i32>} : memref<2x128x64xbf16, #tpu.memory_space<vmem>>, vector<1x128x64xbf16>,
    }
    %c2_i32_0 = arith.constant 2 : i32
    return
  }
  func.func @transform_0(%arg0: i32) -> (i32, i32, i32) {
    %c0_i32 = arith.constant 0 : i32
    %c0_i32_0 = arith.constant 0 : i32
    %c0_i32_1 = arith.constant 0 : i32
    return %arg0, %c0_i32, %c0_i32_0 : i32, i32, i32
  }
  func.func @transform_1(%arg0: i32) -> (i32, i32) {
    %c0_i32 = arith.constant 0 : i32
    %c0_i32_0 = arith.constant 0 : i32
    %c0_i32_1 = arith.constant 0 : i32
    return %c0_i32, %c0_i32_0 : i32, i32
  }
  func.func @transform_2(%arg0: i32) -> (i32, i32) {
    %c0_i32 = arith.constant 0 : i32
    %c0_i32_0 = arith.constant 0 : i32
    %c0_i32_1 = arith.constant 0 : i32
    return %c0_i32, %c0_i32_0 : i32, i32
  }
  func.func @transform_3(%arg0: i32) -> (i32, i32, i32) {
    %c0_i32 = arith.constant 0 : i32
    %c0_i32_0 = arith.constant 0 : i32
    %c0_i32_1 = arith.constant 0 : i32
    return %arg0, %c0_i32, %c0_i32_0 : i32, i32, i32
  }
}

module attributes {stable_mosaic.version = 11 : i64} {
  func.func @_stage_kernel(%arg0: i32, %arg1: memref<32x32x64xbf16, #tpu.memory_space<vmem>>, %arg2: memref<64x32xbf16, #tpu.memory_space<vmem>>, %arg3: memref<64x1xf32, #tpu.memory_space<vmem>>, %arg4: memref<32x64x64xbf16, #tpu.memory_space<vmem>>) attributes {dimension_semantics = [#tpu.dimension_semantics<parallel>], iteration_bounds = array<i64: 1>, scalar_prefetch = 0 : i64, scratch_operands = 0 : i64, tpu.core_type = #tpu.core_type<tc>, window_params = [{transform_indices = @transform_0, window_bounds = array<i64: 32, 32, 64>}, {pipeline_mode = #tpu.pipeline_mode<synchronous>, transform_indices = @transform_1, window_bounds = array<i64: 64, 32>}, {pipeline_mode = #tpu.pipeline_mode<synchronous>, transform_indices = @transform_2, window_bounds = array<i64: 64, 1>}, {transform_indices = @transform_3, window_bounds = array<i64: 32, 64, 64>}]} {
    %c0_i32 = arith.constant 0 : i32
    %c32_i32 = arith.constant 32 : i32
    %0 = arith.addi %c0_i32, %c32_i32 : i32
    %c1_i32 = arith.constant 1 : i32
    scf.for %arg5 = %c0_i32 to %0 step %c1_i32  : i32 {
      %c0 = arith.constant 0 : index
      %c0_1 = arith.constant 0 : index
      %1 = vector.load %arg2[%c0, %c0_1] : memref<64x32xbf16, #tpu.memory_space<vmem>>, vector<64x32xbf16>
      %2 = arith.index_cast %arg5 : i32 to index
      %c0_2 = arith.constant 0 : index
      %c0_3 = arith.constant 0 : index
      %3 = vector.load %arg1[%2, %c0_2, %c0_3] : memref<32x32x64xbf16, #tpu.memory_space<vmem>>, vector<1x32x64xbf16>
      %4 = vector.shape_cast %3 : vector<1x32x64xbf16> to vector<32x64xbf16>
      %cst = arith.constant dense<0.000000e+00> : vector<64x64xf32>
      %5 = tpu.matmul %1, %4, %cst {dimension_numbers = #tpu.dot_dimension_numbers<[1], [0], [0], [1], [0, 0, 1, 1], [], []>} : vector<64x32xbf16>, vector<32x64xbf16>, vector<64x64xf32> -> vector<64x64xf32>
      %c0_4 = arith.constant 0 : index
      %c0_5 = arith.constant 0 : index
      %6 = vector.load %arg3[%c0_4, %c0_5] : memref<64x1xf32, #tpu.memory_space<vmem>>, vector<64x1xf32>
      %7 = vector.broadcast %6 : vector<64x1xf32> to vector<64x64xf32>
      %8 = arith.addf %5, %7 : vector<64x64xf32>
      %cst_6 = arith.constant 5.000000e-01 : f32
      %9 = vector.broadcast %cst_6 : f32 to vector<64x64xf32>
      %10 = arith.mulf %9, %8 : vector<64x64xf32>
      %cst_7 = arith.constant 0.707106769 : f32
      %11 = vector.broadcast %cst_7 : f32 to vector<64x64xf32>
      %12 = arith.mulf %8, %11 : vector<64x64xf32>
      %cst_8 = arith.constant 0.000000e+00 : f32
      %13 = vector.broadcast %cst_8 : f32 to vector<64x64xf32>
      %14 = arith.cmpf oge, %12, %13 : vector<64x64xf32>
      %cst_9 = arith.constant 1.000000e+00 : f32
      %cst_10 = arith.constant -1.000000e+00 : f32
      %15 = vector.broadcast %cst_9 : f32 to vector<64x64xf32>
      %16 = vector.broadcast %cst_10 : f32 to vector<64x64xf32>
      %17 = arith.select %14, %15, %16 : vector<64x64xi1>, vector<64x64xf32>
      %18 = math.absf %12 : vector<64x64xf32>
      %cst_11 = arith.constant 0.327591091 : f32
      %19 = vector.broadcast %cst_11 : f32 to vector<64x64xf32>
      %20 = arith.mulf %19, %18 : vector<64x64xf32>
      %cst_12 = arith.constant 1.000000e+00 : f32
      %21 = vector.broadcast %cst_12 : f32 to vector<64x64xf32>
      %22 = arith.addf %21, %20 : vector<64x64xf32>
      %cst_13 = arith.constant 1.000000e+00 : f32
      %23 = vector.broadcast %cst_13 : f32 to vector<64x64xf32>
      %24 = arith.divf %23, %22 : vector<64x64xf32>
      %cst_14 = arith.constant 1.06140542 : f32
      %25 = vector.broadcast %cst_14 : f32 to vector<64x64xf32>
      %26 = arith.mulf %25, %24 : vector<64x64xf32>
      %cst_15 = arith.constant -1.45315206 : f32
      %27 = vector.broadcast %cst_15 : f32 to vector<64x64xf32>
      %28 = arith.addf %26, %27 : vector<64x64xf32>
      %29 = arith.mulf %28, %24 : vector<64x64xf32>
      %cst_16 = arith.constant 1.42141378 : f32
      %30 = vector.broadcast %cst_16 : f32 to vector<64x64xf32>
      %31 = arith.addf %29, %30 : vector<64x64xf32>
      %32 = arith.mulf %31, %24 : vector<64x64xf32>
      %cst_17 = arith.constant -0.284496725 : f32
      %33 = vector.broadcast %cst_17 : f32 to vector<64x64xf32>
      %34 = arith.addf %32, %33 : vector<64x64xf32>
      %35 = arith.mulf %34, %24 : vector<64x64xf32>
      %cst_18 = arith.constant 0.254829586 : f32
      %36 = vector.broadcast %cst_18 : f32 to vector<64x64xf32>
      %37 = arith.addf %35, %36 : vector<64x64xf32>
      %38 = arith.mulf %37, %24 : vector<64x64xf32>
      %cst_19 = arith.constant 0.000000e+00 : f32
      %39 = vector.broadcast %cst_19 : f32 to vector<64x64xf32>
      %40 = arith.subf %39, %18 : vector<64x64xf32>
      %41 = arith.mulf %40, %18 : vector<64x64xf32>
      %42 = math.exp %41 : vector<64x64xf32>
      %43 = arith.mulf %38, %42 : vector<64x64xf32>
      %cst_20 = arith.constant 1.000000e+00 : f32
      %44 = vector.broadcast %cst_20 : f32 to vector<64x64xf32>
      %45 = arith.subf %44, %43 : vector<64x64xf32>
      %46 = arith.mulf %17, %45 : vector<64x64xf32>
      %cst_21 = arith.constant 1.000000e+00 : f32
      %47 = vector.broadcast %cst_21 : f32 to vector<64x64xf32>
      %48 = arith.addf %47, %46 : vector<64x64xf32>
      %49 = arith.mulf %10, %48 : vector<64x64xf32>
      %50 = arith.truncf %49 : vector<64x64xf32> to vector<64x64xbf16>
      %51 = arith.index_cast %arg5 : i32 to index
      %c0_22 = arith.constant 0 : index
      %c0_23 = arith.constant 0 : index
      %52 = vector.load %arg4[%51, %c0_22, %c0_23] : memref<32x64x64xbf16, #tpu.memory_space<vmem>>, vector<1x64x64xbf16>
      %53 = vector.shape_cast %52 : vector<1x64x64xbf16> to vector<64x64xbf16>
      %54 = vector.shape_cast %50 : vector<64x64xbf16> to vector<1x64x64xbf16>
      tpu.vector_store %arg4[%51, %c0_22, %c0_23], %54 {strides = array<i32>} : memref<32x64x64xbf16, #tpu.memory_space<vmem>>, vector<1x64x64xbf16>,
    }
    %c32_i32_0 = arith.constant 32 : i32
    return
  }
  func.func @transform_0(%arg0: i32) -> (i32, i32, i32) {
    %c0_i32 = arith.constant 0 : i32
    %c0_i32_0 = arith.constant 0 : i32
    %c0_i32_1 = arith.constant 0 : i32
    return %arg0, %c0_i32, %c0_i32_0 : i32, i32, i32
  }
  func.func @transform_1(%arg0: i32) -> (i32, i32) {
    %c0_i32 = arith.constant 0 : i32
    %c0_i32_0 = arith.constant 0 : i32
    %c0_i32_1 = arith.constant 0 : i32
    return %c0_i32, %c0_i32_0 : i32, i32
  }
  func.func @transform_2(%arg0: i32) -> (i32, i32) {
    %c0_i32 = arith.constant 0 : i32
    %c0_i32_0 = arith.constant 0 : i32
    %c0_i32_1 = arith.constant 0 : i32
    return %c0_i32, %c0_i32_0 : i32, i32
  }
  func.func @transform_3(%arg0: i32) -> (i32, i32, i32) {
    %c0_i32 = arith.constant 0 : i32
    %c0_i32_0 = arith.constant 0 : i32
    %c0_i32_1 = arith.constant 0 : i32
    return %arg0, %c0_i32, %c0_i32_0 : i32, i32, i32
  }
}

module attributes {stable_mosaic.version = 11 : i64} {
  func.func @_stage_kernel(%arg0: i32, %arg1: memref<128x16x64xbf16, #tpu.memory_space<vmem>>, %arg2: memref<32x16xbf16, #tpu.memory_space<vmem>>, %arg3: memref<32x1xf32, #tpu.memory_space<vmem>>, %arg4: memref<128x32x64xbf16, #tpu.memory_space<vmem>>) attributes {dimension_semantics = [#tpu.dimension_semantics<parallel>], iteration_bounds = array<i64: 1>, scalar_prefetch = 0 : i64, scratch_operands = 0 : i64, tpu.core_type = #tpu.core_type<tc>, window_params = [{transform_indices = @transform_0, window_bounds = array<i64: 128, 16, 64>}, {pipeline_mode = #tpu.pipeline_mode<synchronous>, transform_indices = @transform_1, window_bounds = array<i64: 32, 16>}, {pipeline_mode = #tpu.pipeline_mode<synchronous>, transform_indices = @transform_2, window_bounds = array<i64: 32, 1>}, {transform_indices = @transform_3, window_bounds = array<i64: 128, 32, 64>}]} {
    %c0_i32 = arith.constant 0 : i32
    %c128_i32 = arith.constant 128 : i32
    %0 = arith.addi %c0_i32, %c128_i32 : i32
    %c1_i32 = arith.constant 1 : i32
    scf.for %arg5 = %c0_i32 to %0 step %c1_i32  : i32 {
      %c0 = arith.constant 0 : index
      %c0_1 = arith.constant 0 : index
      %1 = vector.load %arg2[%c0, %c0_1] : memref<32x16xbf16, #tpu.memory_space<vmem>>, vector<32x16xbf16>
      %2 = arith.index_cast %arg5 : i32 to index
      %c0_2 = arith.constant 0 : index
      %c0_3 = arith.constant 0 : index
      %3 = vector.load %arg1[%2, %c0_2, %c0_3] : memref<128x16x64xbf16, #tpu.memory_space<vmem>>, vector<1x16x64xbf16>
      %4 = vector.shape_cast %3 : vector<1x16x64xbf16> to vector<16x64xbf16>
      %cst = arith.constant dense<0.000000e+00> : vector<32x64xf32>
      %5 = tpu.matmul %1, %4, %cst {dimension_numbers = #tpu.dot_dimension_numbers<[1], [0], [0], [1], [0, 0, 1, 1], [], []>} : vector<32x16xbf16>, vector<16x64xbf16>, vector<32x64xf32> -> vector<32x64xf32>
      %c0_4 = arith.constant 0 : index
      %c0_5 = arith.constant 0 : index
      %6 = vector.load %arg3[%c0_4, %c0_5] : memref<32x1xf32, #tpu.memory_space<vmem>>, vector<32x1xf32>
      %7 = vector.broadcast %6 : vector<32x1xf32> to vector<32x64xf32>
      %8 = arith.addf %5, %7 : vector<32x64xf32>
      %cst_6 = arith.constant 5.000000e-01 : f32
      %9 = vector.broadcast %cst_6 : f32 to vector<32x64xf32>
      %10 = arith.mulf %9, %8 : vector<32x64xf32>
      %cst_7 = arith.constant 0.707106769 : f32
      %11 = vector.broadcast %cst_7 : f32 to vector<32x64xf32>
      %12 = arith.mulf %8, %11 : vector<32x64xf32>
      %cst_8 = arith.constant 0.000000e+00 : f32
      %13 = vector.broadcast %cst_8 : f32 to vector<32x64xf32>
      %14 = arith.cmpf oge, %12, %13 : vector<32x64xf32>
      %cst_9 = arith.constant 1.000000e+00 : f32
      %cst_10 = arith.constant -1.000000e+00 : f32
      %15 = vector.broadcast %cst_9 : f32 to vector<32x64xf32>
      %16 = vector.broadcast %cst_10 : f32 to vector<32x64xf32>
      %17 = arith.select %14, %15, %16 : vector<32x64xi1>, vector<32x64xf32>
      %18 = math.absf %12 : vector<32x64xf32>
      %cst_11 = arith.constant 0.327591091 : f32
      %19 = vector.broadcast %cst_11 : f32 to vector<32x64xf32>
      %20 = arith.mulf %19, %18 : vector<32x64xf32>
      %cst_12 = arith.constant 1.000000e+00 : f32
      %21 = vector.broadcast %cst_12 : f32 to vector<32x64xf32>
      %22 = arith.addf %21, %20 : vector<32x64xf32>
      %cst_13 = arith.constant 1.000000e+00 : f32
      %23 = vector.broadcast %cst_13 : f32 to vector<32x64xf32>
      %24 = arith.divf %23, %22 : vector<32x64xf32>
      %cst_14 = arith.constant 1.06140542 : f32
      %25 = vector.broadcast %cst_14 : f32 to vector<32x64xf32>
      %26 = arith.mulf %25, %24 : vector<32x64xf32>
      %cst_15 = arith.constant -1.45315206 : f32
      %27 = vector.broadcast %cst_15 : f32 to vector<32x64xf32>
      %28 = arith.addf %26, %27 : vector<32x64xf32>
      %29 = arith.mulf %28, %24 : vector<32x64xf32>
      %cst_16 = arith.constant 1.42141378 : f32
      %30 = vector.broadcast %cst_16 : f32 to vector<32x64xf32>
      %31 = arith.addf %29, %30 : vector<32x64xf32>
      %32 = arith.mulf %31, %24 : vector<32x64xf32>
      %cst_17 = arith.constant -0.284496725 : f32
      %33 = vector.broadcast %cst_17 : f32 to vector<32x64xf32>
      %34 = arith.addf %32, %33 : vector<32x64xf32>
      %35 = arith.mulf %34, %24 : vector<32x64xf32>
      %cst_18 = arith.constant 0.254829586 : f32
      %36 = vector.broadcast %cst_18 : f32 to vector<32x64xf32>
      %37 = arith.addf %35, %36 : vector<32x64xf32>
      %38 = arith.mulf %37, %24 : vector<32x64xf32>
      %cst_19 = arith.constant 0.000000e+00 : f32
      %39 = vector.broadcast %cst_19 : f32 to vector<32x64xf32>
      %40 = arith.subf %39, %18 : vector<32x64xf32>
      %41 = arith.mulf %40, %18 : vector<32x64xf32>
      %42 = math.exp %41 : vector<32x64xf32>
      %43 = arith.mulf %38, %42 : vector<32x64xf32>
      %cst_20 = arith.constant 1.000000e+00 : f32
      %44 = vector.broadcast %cst_20 : f32 to vector<32x64xf32>
      %45 = arith.subf %44, %43 : vector<32x64xf32>
      %46 = arith.mulf %17, %45 : vector<32x64xf32>
      %cst_21 = arith.constant 1.000000e+00 : f32
      %47 = vector.broadcast %cst_21 : f32 to vector<32x64xf32>
      %48 = arith.addf %47, %46 : vector<32x64xf32>
      %49 = arith.mulf %10, %48 : vector<32x64xf32>
      %50 = arith.truncf %49 : vector<32x64xf32> to vector<32x64xbf16>
      %51 = arith.index_cast %arg5 : i32 to index
      %c0_22 = arith.constant 0 : index
      %c0_23 = arith.constant 0 : index
      %52 = vector.load %arg4[%51, %c0_22, %c0_23] : memref<128x32x64xbf16, #tpu.memory_space<vmem>>, vector<1x32x64xbf16>
      %53 = vector.shape_cast %52 : vector<1x32x64xbf16> to vector<32x64xbf16>
      %54 = vector.shape_cast %50 : vector<32x64xbf16> to vector<1x32x64xbf16>
      tpu.vector_store %arg4[%51, %c0_22, %c0_23], %54 {strides = array<i32>} : memref<128x32x64xbf16, #tpu.memory_space<vmem>>, vector<1x32x64xbf16>,
    }
    %c128_i32_0 = arith.constant 128 : i32
    return
  }
  func.func @transform_0(%arg0: i32) -> (i32, i32, i32) {
    %c0_i32 = arith.constant 0 : i32
    %c0_i32_0 = arith.constant 0 : i32
    %c0_i32_1 = arith.constant 0 : i32
    return %arg0, %c0_i32, %c0_i32_0 : i32, i32, i32
  }
  func.func @transform_1(%arg0: i32) -> (i32, i32) {
    %c0_i32 = arith.constant 0 : i32
    %c0_i32_0 = arith.constant 0 : i32
    %c0_i32_1 = arith.constant 0 : i32
    return %c0_i32, %c0_i32_0 : i32, i32
  }
  func.func @transform_2(%arg0: i32) -> (i32, i32) {
    %c0_i32 = arith.constant 0 : i32
    %c0_i32_0 = arith.constant 0 : i32
    %c0_i32_1 = arith.constant 0 : i32
    return %c0_i32, %c0_i32_0 : i32, i32
  }
  func.func @transform_3(%arg0: i32) -> (i32, i32, i32) {
    %c0_i32 = arith.constant 0 : i32
    %c0_i32_0 = arith.constant 0 : i32
    %c0_i32_1 = arith.constant 0 : i32
    return %arg0, %c0_i32, %c0_i32_0 : i32, i32, i32
  }
}

module attributes {stable_mosaic.version = 11 : i64} {
  func.func @_stage5_final_kernel(%arg0: i32, %arg1: memref<512x8x64xbf16, #tpu.memory_space<vmem>>, %arg2: memref<16x8xbf16, #tpu.memory_space<vmem>>, %arg3: memref<16x1xf32, #tpu.memory_space<vmem>>, %arg4: memref<4x16xbf16, #tpu.memory_space<vmem>>, %arg5: memref<4x1xf32, #tpu.memory_space<vmem>>, %arg6: memref<512x4x64xf32, #tpu.memory_space<vmem>>) attributes {dimension_semantics = [#tpu.dimension_semantics<parallel>], iteration_bounds = array<i64: 1>, scalar_prefetch = 0 : i64, scratch_operands = 0 : i64, tpu.core_type = #tpu.core_type<tc>, window_params = [{transform_indices = @transform_0, window_bounds = array<i64: 512, 8, 64>}, {pipeline_mode = #tpu.pipeline_mode<synchronous>, transform_indices = @transform_1, window_bounds = array<i64: 16, 8>}, {pipeline_mode = #tpu.pipeline_mode<synchronous>, transform_indices = @transform_2, window_bounds = array<i64: 16, 1>}, {pipeline_mode = #tpu.pipeline_mode<synchronous>, transform_indices = @transform_3, window_bounds = array<i64: 4, 16>}, {pipeline_mode = #tpu.pipeline_mode<synchronous>, transform_indices = @transform_4, window_bounds = array<i64: 4, 1>}, {transform_indices = @transform_5, window_bounds = array<i64: 512, 4, 64>}]} {
    %c0_i32 = arith.constant 0 : i32
    %c512_i32 = arith.constant 512 : i32
    %0 = arith.addi %c0_i32, %c512_i32 : i32
    %c1_i32 = arith.constant 1 : i32
    scf.for %arg7 = %c0_i32 to %0 step %c1_i32  : i32 {
      %c0 = arith.constant 0 : index
      %c0_1 = arith.constant 0 : index
      %1 = vector.load %arg2[%c0, %c0_1] : memref<16x8xbf16, #tpu.memory_space<vmem>>, vector<16x8xbf16>
      %2 = arith.index_cast %arg7 : i32 to index
      %c0_2 = arith.constant 0 : index
      %c0_3 = arith.constant 0 : index
      %3 = vector.load %arg1[%2, %c0_2, %c0_3] : memref<512x8x64xbf16, #tpu.memory_space<vmem>>, vector<1x8x64xbf16>
      %4 = vector.shape_cast %3 : vector<1x8x64xbf16> to vector<8x64xbf16>
      %cst = arith.constant dense<0.000000e+00> : vector<16x64xf32>
      %5 = tpu.matmul %1, %4, %cst {dimension_numbers = #tpu.dot_dimension_numbers<[1], [0], [0], [1], [0, 0, 1, 1], [], []>} : vector<16x8xbf16>, vector<8x64xbf16>, vector<16x64xf32> -> vector<16x64xf32>
      %c0_4 = arith.constant 0 : index
      %c0_5 = arith.constant 0 : index
      %6 = vector.load %arg3[%c0_4, %c0_5] : memref<16x1xf32, #tpu.memory_space<vmem>>, vector<16x1xf32>
      %7 = vector.broadcast %6 : vector<16x1xf32> to vector<16x64xf32>
      %8 = arith.addf %5, %7 : vector<16x64xf32>
      %cst_6 = arith.constant 5.000000e-01 : f32
      %9 = vector.broadcast %cst_6 : f32 to vector<16x64xf32>
      %10 = arith.mulf %9, %8 : vector<16x64xf32>
      %cst_7 = arith.constant 0.707106769 : f32
      %11 = vector.broadcast %cst_7 : f32 to vector<16x64xf32>
      %12 = arith.mulf %8, %11 : vector<16x64xf32>
      %cst_8 = arith.constant 0.000000e+00 : f32
      %13 = vector.broadcast %cst_8 : f32 to vector<16x64xf32>
      %14 = arith.cmpf oge, %12, %13 : vector<16x64xf32>
      %cst_9 = arith.constant 1.000000e+00 : f32
      %cst_10 = arith.constant -1.000000e+00 : f32
      %15 = vector.broadcast %cst_9 : f32 to vector<16x64xf32>
      %16 = vector.broadcast %cst_10 : f32 to vector<16x64xf32>
      %17 = arith.select %14, %15, %16 : vector<16x64xi1>, vector<16x64xf32>
      %18 = math.absf %12 : vector<16x64xf32>
      %cst_11 = arith.constant 0.327591091 : f32
      %19 = vector.broadcast %cst_11 : f32 to vector<16x64xf32>
      %20 = arith.mulf %19, %18 : vector<16x64xf32>
      %cst_12 = arith.constant 1.000000e+00 : f32
      %21 = vector.broadcast %cst_12 : f32 to vector<16x64xf32>
      %22 = arith.addf %21, %20 : vector<16x64xf32>
      %cst_13 = arith.constant 1.000000e+00 : f32
      %23 = vector.broadcast %cst_13 : f32 to vector<16x64xf32>
      %24 = arith.divf %23, %22 : vector<16x64xf32>
      %cst_14 = arith.constant 1.06140542 : f32
      %25 = vector.broadcast %cst_14 : f32 to vector<16x64xf32>
      %26 = arith.mulf %25, %24 : vector<16x64xf32>
      %cst_15 = arith.constant -1.45315206 : f32
      %27 = vector.broadcast %cst_15 : f32 to vector<16x64xf32>
      %28 = arith.addf %26, %27 : vector<16x64xf32>
      %29 = arith.mulf %28, %24 : vector<16x64xf32>
      %cst_16 = arith.constant 1.42141378 : f32
      %30 = vector.broadcast %cst_16 : f32 to vector<16x64xf32>
      %31 = arith.addf %29, %30 : vector<16x64xf32>
      %32 = arith.mulf %31, %24 : vector<16x64xf32>
      %cst_17 = arith.constant -0.284496725 : f32
      %33 = vector.broadcast %cst_17 : f32 to vector<16x64xf32>
      %34 = arith.addf %32, %33 : vector<16x64xf32>
      %35 = arith.mulf %34, %24 : vector<16x64xf32>
      %cst_18 = arith.constant 0.254829586 : f32
      %36 = vector.broadcast %cst_18 : f32 to vector<16x64xf32>
      %37 = arith.addf %35, %36 : vector<16x64xf32>
      %38 = arith.mulf %37, %24 : vector<16x64xf32>
      %cst_19 = arith.constant 0.000000e+00 : f32
      %39 = vector.broadcast %cst_19 : f32 to vector<16x64xf32>
      %40 = arith.subf %39, %18 : vector<16x64xf32>
      %41 = arith.mulf %40, %18 : vector<16x64xf32>
      %42 = math.exp %41 : vector<16x64xf32>
      %43 = arith.mulf %38, %42 : vector<16x64xf32>
      %cst_20 = arith.constant 1.000000e+00 : f32
      %44 = vector.broadcast %cst_20 : f32 to vector<16x64xf32>
      %45 = arith.subf %44, %43 : vector<16x64xf32>
      %46 = arith.mulf %17, %45 : vector<16x64xf32>
      %cst_21 = arith.constant 1.000000e+00 : f32
      %47 = vector.broadcast %cst_21 : f32 to vector<16x64xf32>
      %48 = arith.addf %47, %46 : vector<16x64xf32>
      %49 = arith.mulf %10, %48 : vector<16x64xf32>
      %c0_22 = arith.constant 0 : index
      %c0_23 = arith.constant 0 : index
      %50 = vector.load %arg4[%c0_22, %c0_23] : memref<4x16xbf16, #tpu.memory_space<vmem>>, vector<4x16xbf16>
      %51 = arith.truncf %49 : vector<16x64xf32> to vector<16x64xbf16>
      %cst_24 = arith.constant dense<0.000000e+00> : vector<4x64xf32>
      %52 = tpu.matmul %50, %51, %cst_24 {dimension_numbers = #tpu.dot_dimension_numbers<[1], [0], [0], [1], [0, 0, 1, 1], [], []>} : vector<4x16xbf16>, vector<16x64xbf16>, vector<4x64xf32> -> vector<4x64xf32>
      %c0_25 = arith.constant 0 : index
      %c0_26 = arith.constant 0 : index
      %53 = vector.load %arg5[%c0_25, %c0_26] : memref<4x1xf32, #tpu.memory_space<vmem>>, vector<4x1xf32>
      %54 = vector.broadcast %53 : vector<4x1xf32> to vector<4x64xf32>
      %55 = arith.addf %52, %54 : vector<4x64xf32>
      %56 = arith.index_cast %arg7 : i32 to index
      %c0_27 = arith.constant 0 : index
      %c0_28 = arith.constant 0 : index
      %57 = vector.load %arg6[%56, %c0_27, %c0_28] : memref<512x4x64xf32, #tpu.memory_space<vmem>>, vector<1x4x64xf32>
      %58 = vector.shape_cast %57 : vector<1x4x64xf32> to vector<4x64xf32>
      %59 = vector.shape_cast %55 : vector<4x64xf32> to vector<1x4x64xf32>
      tpu.vector_store %arg6[%56, %c0_27, %c0_28], %59 {strides = array<i32>} : memref<512x4x64xf32, #tpu.memory_space<vmem>>, vector<1x4x64xf32>,
    }
    %c512_i32_0 = arith.constant 512 : i32
    return
  }
  func.func @transform_0(%arg0: i32) -> (i32, i32, i32) {
    %c0_i32 = arith.constant 0 : i32
    %c0_i32_0 = arith.constant 0 : i32
    %c0_i32_1 = arith.constant 0 : i32
    return %arg0, %c0_i32, %c0_i32_0 : i32, i32, i32
  }
  func.func @transform_1(%arg0: i32) -> (i32, i32) {
    %c0_i32 = arith.constant 0 : i32
    %c0_i32_0 = arith.constant 0 : i32
    %c0_i32_1 = arith.constant 0 : i32
    return %c0_i32, %c0_i32_0 : i32, i32
  }
  func.func @transform_2(%arg0: i32) -> (i32, i32) {
    %c0_i32 = arith.constant 0 : i32
    %c0_i32_0 = arith.constant 0 : i32
    %c0_i32_1 = arith.constant 0 : i32
    return %c0_i32, %c0_i32_0 : i32, i32
  }
  func.func @transform_3(%arg0: i32) -> (i32, i32) {
    %c0_i32 = arith.constant 0 : i32
    %c0_i32_0 = arith.constant 0 : i32
    %c0_i32_1 = arith.constant 0 : i32
    return %c0_i32, %c0_i32_0 : i32, i32
  }
  func.func @transform_4(%arg0: i32) -> (i32, i32) {
    %c0_i32 = arith.constant 0 : i32
    %c0_i32_0 = arith.constant 0 : i32
    %c0_i32_1 = arith.constant 0 : i32
    return %c0_i32, %c0_i32_0 : i32, i32
  }
  func.func @transform_5(%arg0: i32) -> (i32, i32, i32) {
    %c0_i32 = arith.constant 0 : i32
    %c0_i32_0 = arith.constant 0 : i32
    %c0_i32_1 = arith.constant 0 : i32
    return %arg0, %c0_i32, %c0_i32_0 : i32, i32, i32
  }
}

</mosaic_0001>

<llo_original>
// kernel: conv_head_forward.8
$region0: #{conv_head_forward.8}
  #allocation0 [shape = 'u32[]', space=smem, size = 0x4, offset = 0x4, fixed_abs, tag = 'smem constant byte address 0x4 - core index']
  #allocation1 [shape = 'u32[144,128]{1,0:T(1,128)}', space=vmem, size = 0x12000, scoped, tag = 'internal scratch']
  %s0 = inlined_call_operand.vmem [shape: bf16[128,16,64], index: 0, kind: input, shape index: {}]
  %s1 = inlined_call_operand.vmem [shape: bf16[32,16], index: 1, kind: input, shape index: {}]
  %s2 = inlined_call_operand.vmem [shape: f32[32,1], index: 2, kind: input, shape index: {}]
  %s3 = inlined_call_operand.vmem [shape: bf16[128,32,64], index: 3, kind: output, shape index: {}]
  %s4 = sld [smem:[#allocation0]]
  $region29: #{conv_head_forward.8} parent=0
    _
  %s6 = ssub.s32 1, %s4
  %s7 = scalar_select 0, %s6, %s4
  // Predicated region
  $region2: #{conv_head_forward.8} parent=0 // pred_check
    _
  $region3: #{conv_head_forward.8} parent=0 // pred_check_branch
    %9 = sbr.rel (0) target = $region5
  $region4: #{conv_head_forward.8} parent=0 // pred_region
    _
  $region5: #{conv_head_forward.8} parent=0 // pred_fallthru
    _
  // Predicated region
  $region6: #{conv_head_forward.8} parent=0 // pred_check
    _
  $region7: #{conv_head_forward.8} parent=0 // pred_check_branch
    %11 = sbr.rel (0) target = $region9
  $region8: #{conv_head_forward.8} parent=0 // pred_region
    _
  $region9: #{conv_head_forward.8} parent=0 // pred_fallthru
    _
  // Predicated region
  $region10: #{conv_head_forward.8} parent=0 // pred_check
    _
  $region11: #{conv_head_forward.8} parent=0 // pred_check_branch
    %13 = sbr.rel (0) target = $region13
  $region12: #{conv_head_forward.8} parent=0 // pred_region
    _
  $region13: #{conv_head_forward.8} parent=0 // pred_fallthru
    _
  loop: start=0, step=1, limit=128
  $region14: #{conv_head_forward.8} parent=0 // loop_pre_header
    _
  $region15: #{conv_head_forward.8} parent=0 // loop_header
    %s16 = sphi 0, %s20
    %p17 = scmp.ge.s32.totalorder %s16, 128
  $region16: #{conv_head_forward.8} parent=0 // loop_header_branch
    %19 = sbr.rel (%p17) target = $region20
  $region17: #{conv_head_forward.8} parent=0 // loop_body
    %v21 = vld [vmem:[%s1] sm:$0xf]
    %v22 = vld [vmem:[%s1 + $0x4] sm:$0xf]
    %v23 = vld [vmem:[%s1 + $0x8] sm:$0xf]
    %v24 = vld [vmem:[%s1 + $0xc] sm:$0xf]
    %s25 = smul.u32 %s16, 2
    %s26 = smul.addr %s25, 4
    %s27 = scalar_lea.vmem %s0, %s26
    %v28 = vld [vmem:[%s27] sm:$0xf]
    %v29 = vld [vmem:[%s27 + $0x4] sm:$0xf]
    %v30 = vld [vmem:[%s2] sm:$0xff]
    %v31 = vld [vmem:[%s2 + $0x8] sm:$0xff]
    %v32 = vld [vmem:[%s2 + $0x10] sm:$0xff]
    %v33 = vld [vmem:[%s2 + $0x18] sm:$0xff]
    %35 = vset.pattern.permute.xlu0 0
    %36 = vperm.xlu0 %35, %v30
    %v37 = vpop.permute.xlu0 %36
    %40 = vset.pattern.permute.xlu0 0
    %41 = vperm.xlu0 %40, %v31
    %v42 = vpop.permute.xlu0 %41
    %45 = vset.pattern.permute.xlu0 0
    %46 = vperm.xlu0 %45, %v32
    %v47 = vpop.permute.xlu0 %46
    %50 = vset.pattern.permute.xlu0 0
    %51 = vperm.xlu0 %50, %v33
    %v52 = vpop.permute.xlu0 %51
    %v58 = vunpack.c.l.b16 %v21
    %v59 = vunpack.c.l.b16 %v22
    %v60 = vunpack.c.l.b16 %v23
    %v61 = vunpack.c.l.b16 %v24
    %v62 = vpack.c.b16 %v59, %v58
    %v63 = vpack.c.b16 %v61, %v60
    %v66 = vunpack.c.l.b16 %v28
    %v67 = vunpack.c.l.b16 %v29
    %v68 = vpack.c.b16 %v67, %v66
    %vm70 = vcmask 130048
    %v72 = vsel %vm70, %v62, 0
    %v75 = vsel %vm70, %v63, 0
    %77 = vmatprep.subr.bf16.mxu0 0
    %78 = vmatpush1.bf16.msra.mxu0 0
    %79 = vmatprep.subr.bf16.mxu0 0
    %80 = vmatpush1.bf16.msra.mxu0 0
    %81 = vmatprep.subr.bf16.mxu0 0
    %82 = vmatpush1.bf16.msra.mxu0 0
    %83 = vmatprep.subr.bf16.mxu0 0
    %84 = vmatpush1.bf16.msra.mxu0 0
    %85 = vmatprep.subr.bf16.mxu0 0
    %86 = vmatpush1.bf16.msra.mxu0 0
    %87 = vmatprep.subr.bf16.mxu0 0
    %88 = vmatpush1.bf16.msra.mxu0 0
    %89 = vmatprep.subr.bf16.mxu0 0
    %90 = vmatpush1.bf16.msra.mxu0 0
    %91 = vmatprep.subr.bf16.mxu0 0
    %92 = vmatpush1.bf16.msra.mxu0 %v68
    %93 = vmatprep.subr.bf16.mxu0 0
    %94 = vmatpush2.bf16.msra.mxu0 0
    %95 = vmatprep.subr.bf16.mxu0 0
    %96 = vmatpush2.bf16.msra.mxu0 0
    %97 = vmatprep.subr.bf16.mxu0 0
    %98 = vmatpush2.bf16.msra.mxu0 0
    %99 = vmatprep.subr.bf16.mxu0 0
    %100 = vmatpush2.bf16.msra.mxu0 0
    %101 = vmatprep.subr.bf16.mxu0 0
    %102 = vmatpush2.bf16.msra.mxu0 0
    %103 = vmatprep.subr.bf16.mxu0 0
    %104 = vmatpush2.bf16.msra.mxu0 0
    %105 = vmatprep.subr.bf16.mxu0 0
    %106 = vmatpush2.bf16.msra.mxu0 0
    %107 = vmatprep.subr.bf16.mxu0 0
    %108 = vmatpush2.bf16.msra.mxu0 0
    %109 = vmatprep.mubr.bf16.mxu0 0
    %110 = vmatmul.mubr.bf16.gmra.mxu0 %v72
    %v111 = vpop.f32.mrf.mxu0
    %v112 = vadd.f32 %v37, %v111
    %v113 = vpop.f32.mrf.mxu0
    %v114 = vpop.f32.mrf.mxu0
    %v115 = vadd.f32 %v42, %v114
    %v116 = vpop.f32.mrf.mxu0
    %117 = vmatprep.mubr.bf16.mxu0 0
    %118 = vmatmul.mubr.bf16.gmra.mxu0 %v75
    %v119 = vpop.f32.mrf.mxu0
    %v120 = vadd.f32 %v47, %v119
    %v121 = vpop.f32.mrf.mxu0
    %v122 = vpop.f32.mrf.mxu0
    %v123 = vadd.f32 %v52, %v122
    %v124 = vpop.f32.mrf.mxu0
    %125 = vdwg.mxu0
    %v126 = vmul.f32 %v112, 0.5
    %v127 = vmul.f32 %v115, 0.5
    %v128 = vmul.f32 %v120, 0.5
    %v129 = vmul.f32 %v123, 0.5
    %v130 = vmul.f32 %v112, 0.70710677
    %v131 = vmul.f32 %v115, 0.70710677
    %v132 = vmul.f32 %v120, 0.70710677
    %v133 = vmul.f32 %v123, 0.70710677
    %vm134 = vcmp.ge.f32.partialorder %v130, 0.0
    %vm135 = vcmp.ge.f32.partialorder %v131, 0.0
    %vm136 = vcmp.ge.f32.partialorder %v132, 0.0
    %vm137 = vcmp.ge.f32.partialorder %v133, 0.0
    %v138 = vsel %vm134, 1.0, -1.0
    %v139 = vsel %vm135, 1.0, -1.0
    %v140 = vsel %vm136, 1.0, -1.0
    %v141 = vsel %vm137, 1.0, -1.0
    %v142 = vand.u32 2147483647, %v130
    %v143 = vand.u32 2147483647, %v131
    %v144 = vand.u32 2147483647, %v132
    %v145 = vand.u32 2147483647, %v133
    %v146 = vmul.f32 %v142, 0.3275911
    %v147 = vmul.f32 %v143, 0.3275911
    %v148 = vmul.f32 %v144, 0.3275911
    %v149 = vmul.f32 %v145, 0.3275911
    %v150 = vadd.f32 %v146, 1.0
    %v151 = vadd.f32 %v147, 1.0
    %v152 = vadd.f32 %v148, 1.0
    %v153 = vadd.f32 %v149, 1.0
    %v154 = vrcp.pop %v150
    %v155 = vmul.f32 1.0, %v154
    %v156 = vrcp.pop %v151
    %v157 = vmul.f32 1.0, %v156
    %v158 = vrcp.pop %v152
    %v159 = vmul.f32 1.0, %v158
    %v160 = vrcp.pop %v153
    %v161 = vmul.f32 1.0, %v160
    %v162 = vmul.f32 %v155, 1.0614054
    %v163 = vmul.f32 %v157, 1.0614054
    %v164 = vmul.f32 %v159, 1.0614054
    %v165 = vmul.f32 %v161, 1.0614054
    %v166 = vadd.f32 %v162, -1.4531521
    %v167 = vadd.f32 %v163, -1.4531521
    %v168 = vadd.f32 %v164, -1.4531521
    %v169 = vadd.f32 %v165, -1.4531521
    %v170 = vmul.f32 %v166, %v155
    %v171 = vmul.f32 %v167, %v157
    %v172 = vmul.f32 %v168, %v159
    %v173 = vmul.f32 %v169, %v161
    %v174 = vadd.f32 %v170, 1.4214138
    %v175 = vadd.f32 %v171, 1.4214138
    %v176 = vadd.f32 %v172, 1.4214138
    %v177 = vadd.f32 %v173, 1.4214138
    %v178 = vmul.f32 %v174, %v155
    %v179 = vmul.f32 %v175, %v157
    %v180 = vmul.f32 %v176, %v159
    %v181 = vmul.f32 %v177, %v161
    %v182 = vadd.f32 %v178, -0.28449672
    %v183 = vadd.f32 %v179, -0.28449672
    %v184 = vadd.f32 %v180, -0.28449672
    %v185 = vadd.f32 %v181, -0.28449672
    %v186 = vmul.f32 %v182, %v155
    %v187 = vmul.f32 %v183, %v157
    %v188 = vmul.f32 %v184, %v159
    %v189 = vmul.f32 %v185, %v161
    %v190 = vadd.f32 %v186, 0.2548296
    %v191 = vadd.f32 %v187, 0.2548296
    %v192 = vadd.f32 %v188, 0.2548296
    %v193 = vadd.f32 %v189, 0.2548296
    %v194 = vmul.f32 %v190, %v155
    %v195 = vmul.f32 %v191, %v157
    %v196 = vmul.f32 %v192, %v159
    %v197 = vmul.f32 %v193, %v161
    %v198 = vsub.f32 0.0, %v142
    %v199 = vsub.f32 0.0, %v143
    %v200 = vsub.f32 0.0, %v144
    %v201 = vsub.f32 0.0, %v145
    %v202 = vmul.f32 %v198, %v142
    %v203 = vmul.f32 %v199, %v143
    %v204 = vmul.f32 %v200, %v144
    %v205 = vmul.f32 %v201, %v145
    %v206 = vmul.f32 %v202, 1.442695
    %v207 = vpow.pop %v206
    %v208 = vmul.f32 %v203, 1.442695
    %v209 = vpow.pop %v208
    %v210 = vmul.f32 %v204, 1.442695
    %v211 = vpow.pop %v210
    %v212 = vmul.f32 %v205, 1.442695
    %v213 = vpow.pop %v212
    %v214 = vmul.f32 %v194, %v207
    %v215 = vmul.f32 %v195, %v209
    %v216 = vmul.f32 %v196, %v211
    %v217 = vmul.f32 %v197, %v213
    %v218 = vsub.f32 1.0, %v214
    %v219 = vsub.f32 1.0, %v215
    %v220 = vsub.f32 1.0, %v216
    %v221 = vsub.f32 1.0, %v217
    %v222 = vmul.f32 %v138, %v218
    %v223 = vmul.f32 %v139, %v219
    %v224 = vmul.f32 %v140, %v220
    %v225 = vmul.f32 %v141, %v221
    %v226 = vadd.f32 %v222, 1.0
    %v227 = vadd.f32 %v223, 1.0
    %v228 = vadd.f32 %v224, 1.0
    %v229 = vadd.f32 %v225, 1.0
    %v230 = vmul.f32 %v126, %v226
    %v231 = vmul.f32 %v127, %v227
    %v232 = vmul.f32 %v128, %v228
    %v233 = vmul.f32 %v129, %v229
    %v234 = vpack.c.bf16 %v231, %v230
    %v235 = vpack.c.bf16 %v233, %v232
    %v238 = vunpack.c.l.b16 %v234
    %v239 = vunpack.c.h.b16 %v234
    %v240 = vunpack.c.l.b16 %v235
    %v241 = vunpack.c.h.b16 %v235
    %v242 = vpack.c.b16 %v238, %v238
    %v243 = vpack.c.b16 %v239, %v239
    %v244 = vpack.c.b16 %v240, %v240
    %v245 = vpack.c.b16 %v241, %v241
    %s250 = smul.u32 %s16, 4
    %s251 = smul.addr %s250, 4
    %s252 = scalar_lea.vmem %s3, %s251
    %vm253 = vcmask 519168
    %254 = vst.msk [vmem:[%s252] sm:$0xf] %vm253, %v242
    %255 = vst.msk [vmem:[%s252 + $0x4] sm:$0xf] %vm253, %v243
    %256 = vst.msk [vmem:[%s252 + $0x8] sm:$0xf] %vm253, %v244
    %257 = vst.msk [vmem:[%s252 + $0xc] sm:$0xf] %vm253, %v245
  $region18: #{conv_head_forward.8} parent=0 // loop_footer
    %s20 = sadd.s32 1, %s16
  $region19: #{conv_head_forward.8} parent=0 // loop_footer_branch
    %15 = sbr.rel target = $region15
  $region20: #{conv_head_forward.8} parent=0 // loop_exit
    _
  // Predicated region
  $region21: #{conv_head_forward.8} parent=0 // pred_check
    _
  $region22: #{conv_head_forward.8} parent=0 // pred_check_branch
    %259 = sbr.rel (0) target = $region24
  $region23: #{conv_head_forward.8} parent=0 // pred_region
    _
  $region24: #{conv_head_forward.8} parent=0 // pred_fallthru
    _
  // Predicated region
  $region25: #{conv_head_forward.8} parent=0 // pred_check
    _
  $region26: #{conv_head_forward.8} parent=0 // pred_check_branch
    %261 = sbr.rel (0) target = $region28
  $region27: #{conv_head_forward.8} parent=0 // pred_region
    _
  $region28: #{conv_head_forward.8} parent=0 // pred_fallthru
    _

// kernel: conv_head_forward.7
$region0: #{conv_head_forward.7}
  #allocation0 [shape = 'u32[]', space=smem, size = 0x4, offset = 0x4, fixed_abs, tag = 'smem constant byte address 0x4 - core index']
  #allocation1 [shape = 'u32[144,128]{1,0:T(1,128)}', space=vmem, size = 0x12000, scoped, tag = 'internal scratch']
  %s0 = inlined_call_operand.vmem [shape: bf16[32,32,64], index: 0, kind: input, shape index: {}]
  %s1 = inlined_call_operand.vmem [shape: bf16[64,32], index: 1, kind: input, shape index: {}]
  %s2 = inlined_call_operand.vmem [shape: f32[64,1], index: 2, kind: input, shape index: {}]
  %s3 = inlined_call_operand.vmem [shape: bf16[32,64,64], index: 3, kind: output, shape index: {}]
  %s4 = sld [smem:[#allocation0]]
  $region29: #{conv_head_forward.7} parent=0
    _
  %s6 = ssub.s32 1, %s4
  %s7 = scalar_select 0, %s6, %s4
  // Predicated region
  $region2: #{conv_head_forward.7} parent=0 // pred_check
    _
  $region3: #{conv_head_forward.7} parent=0 // pred_check_branch
    %9 = sbr.rel (0) target = $region5
  $region4: #{conv_head_forward.7} parent=0 // pred_region
    _
  $region5: #{conv_head_forward.7} parent=0 // pred_fallthru
    _
  // Predicated region
  $region6: #{conv_head_forward.7} parent=0 // pred_check
    _
  $region7: #{conv_head_forward.7} parent=0 // pred_check_branch
    %11 = sbr.rel (0) target = $region9
  $region8: #{conv_head_forward.7} parent=0 // pred_region
    _
  $region9: #{conv_head_forward.7} parent=0 // pred_fallthru
    _
  // Predicated region
  $region10: #{conv_head_forward.7} parent=0 // pred_check
    _
  $region11: #{conv_head_forward.7} parent=0 // pred_check_branch
    %13 = sbr.rel (0) target = $region13
  $region12: #{conv_head_forward.7} parent=0 // pred_region
    _
  $region13: #{conv_head_forward.7} parent=0 // pred_fallthru
    _
  loop: start=0, step=1, limit=32
  $region14: #{conv_head_forward.7} parent=0 // loop_pre_header
    _
  $region15: #{conv_head_forward.7} parent=0 // loop_header
    %s16 = sphi 0, %s20
    %p17 = scmp.ge.s32.totalorder %s16, 32
  $region16: #{conv_head_forward.7} parent=0 // loop_header_branch
    %19 = sbr.rel (%p17) target = $region20
  $region17: #{conv_head_forward.7} parent=0 // loop_body
    %v21 = vld [vmem:[%s1] sm:$0xf]
    %v22 = vld [vmem:[%s1 + $0x4] sm:$0xf]
    %v23 = vld [vmem:[%s1 + $0x8] sm:$0xf]
    %v24 = vld [vmem:[%s1 + $0xc] sm:$0xf]
    %v25 = vld [vmem:[%s1 + $0x10] sm:$0xf]
    %v26 = vld [vmem:[%s1 + $0x14] sm:$0xf]
    %v27 = vld [vmem:[%s1 + $0x18] sm:$0xf]
    %v28 = vld [vmem:[%s1 + $0x1c] sm:$0xf]
    %s29 = smul.u32 %s16, 4
    %s30 = smul.addr %s29, 4
    %s31 = scalar_lea.vmem %s0, %s30
    %v32 = vld [vmem:[%s31] sm:$0xf]
    %v33 = vld [vmem:[%s31 + $0x4] sm:$0xf]
    %v34 = vld [vmem:[%s31 + $0x8] sm:$0xf]
    %v35 = vld [vmem:[%s31 + $0xc] sm:$0xf]
    %v36 = vld [vmem:[%s2] sm:$0xff]
    %v37 = vld [vmem:[%s2 + $0x8] sm:$0xff]
    %v38 = vld [vmem:[%s2 + $0x10] sm:$0xff]
    %v39 = vld [vmem:[%s2 + $0x18] sm:$0xff]
    %v40 = vld [vmem:[%s2 + $0x20] sm:$0xff]
    %v41 = vld [vmem:[%s2 + $0x28] sm:$0xff]
    %v42 = vld [vmem:[%s2 + $0x30] sm:$0xff]
    %v43 = vld [vmem:[%s2 + $0x38] sm:$0xff]
    %45 = vset.pattern.permute.xlu0 0
    %46 = vperm.xlu0 %45, %v36
    %v47 = vpop.permute.xlu0 %46
    %50 = vset.pattern.permute.xlu0 0
    %51 = vperm.xlu0 %50, %v37
    %v52 = vpop.permute.xlu0 %51
    %55 = vset.pattern.permute.xlu0 0
    %56 = vperm.xlu0 %55, %v38
    %v57 = vpop.permute.xlu0 %56
    %60 = vset.pattern.permute.xlu0 0
    %61 = vperm.xlu0 %60, %v39
    %v62 = vpop.permute.xlu0 %61
    %65 = vset.pattern.permute.xlu0 0
    %66 = vperm.xlu0 %65, %v40
    %v67 = vpop.permute.xlu0 %66
    %70 = vset.pattern.permute.xlu0 0
    %71 = vperm.xlu0 %70, %v41
    %v72 = vpop.permute.xlu0 %71
    %75 = vset.pattern.permute.xlu0 0
    %76 = vperm.xlu0 %75, %v42
    %v77 = vpop.permute.xlu0 %76
    %80 = vset.pattern.permute.xlu0 0
    %81 = vperm.xlu0 %80, %v43
    %v82 = vpop.permute.xlu0 %81
    %v92 = vunpack.c.l.b16 %v21
    %v93 = vunpack.c.l.b16 %v22
    %v94 = vunpack.c.l.b16 %v23
    %v95 = vunpack.c.l.b16 %v24
    %v96 = vunpack.c.l.b16 %v25
    %v97 = vunpack.c.l.b16 %v26
    %v98 = vunpack.c.l.b16 %v27
    %v99 = vunpack.c.l.b16 %v28
    %v100 = vpack.c.b16 %v93, %v92
    %v101 = vpack.c.b16 %v95, %v94
    %v102 = vpack.c.b16 %v97, %v96
    %v103 = vpack.c.b16 %v99, %v98
    %v108 = vunpack.c.l.b16 %v32
    %v109 = vunpack.c.l.b16 %v33
    %v110 = vunpack.c.l.b16 %v34
    %v111 = vunpack.c.l.b16 %v35
    %v112 = vpack.c.b16 %v109, %v108
    %v113 = vpack.c.b16 %v111, %v110
    %vm116 = vcmask 261120
    %v118 = vsel %vm116, %v100, 0
    %v121 = vsel %vm116, %v101, 0
    %v124 = vsel %vm116, %v102, 0
    %v127 = vsel %vm116, %v103, 0
    %129 = vmatprep.subr.bf16.mxu0 0
    %130 = vmatpush1.bf16.msra.mxu0 0
    %131 = vmatprep.subr.bf16.mxu0 0
    %132 = vmatpush1.bf16.msra.mxu0 0
    %133 = vmatprep.subr.bf16.mxu0 0
    %134 = vmatpush1.bf16.msra.mxu0 0
    %135 = vmatprep.subr.bf16.mxu0 0
    %136 = vmatpush1.bf16.msra.mxu0 0
    %137 = vmatprep.subr.bf16.mxu0 0
    %138 = vmatpush1.bf16.msra.mxu0 0
    %139 = vmatprep.subr.bf16.mxu0 0
    %140 = vmatpush1.bf16.msra.mxu0 0
    %141 = vmatprep.subr.bf16.mxu0 0
    %142 = vmatpush1.bf16.msra.mxu0 %v113
    %143 = vmatprep.subr.bf16.mxu0 0
    %144 = vmatpush1.bf16.msra.mxu0 %v112
    %145 = vmatprep.subr.bf16.mxu0 0
    %146 = vmatpush2.bf16.msra.mxu0 0
    %147 = vmatprep.subr.bf16.mxu0 0
    %148 = vmatpush2.bf16.msra.mxu0 0
    %149 = vmatprep.subr.bf16.mxu0 0
    %150 = vmatpush2.bf16.msra.mxu0 0
    %151 = vmatprep.subr.bf16.mxu0 0
    %152 = vmatpush2.bf16.msra.mxu0 0
    %153 = vmatprep.subr.bf16.mxu0 0
    %154 = vmatpush2.bf16.msra.mxu0 0
    %155 = vmatprep.subr.bf16.mxu0 0
    %156 = vmatpush2.bf16.msra.mxu0 0
    %157 = vmatprep.subr.bf16.mxu0 0
    %158 = vmatpush2.bf16.msra.mxu0 0
    %159 = vmatprep.subr.bf16.mxu0 0
    %160 = vmatpush2.bf16.msra.mxu0 0
    %161 = vmatprep.mubr.bf16.mxu0 0
    %162 = vmatmul.mubr.bf16.gmra.mxu0 %v118
    %v163 = vpop.f32.mrf.mxu0
    %v164 = vadd.f32 %v47, %v163
    %v165 = vpop.f32.mrf.mxu0
    %v166 = vpop.f32.mrf.mxu0
    %v167 = vadd.f32 %v52, %v166
    %v168 = vpop.f32.mrf.mxu0
    %169 = vmatprep.mubr.bf16.mxu0 0
    %170 = vmatmul.mubr.bf16.gmra.mxu0 %v121
    %v171 = vpop.f32.mrf.mxu0
    %v172 = vadd.f32 %v57, %v171
    %v173 = vpop.f32.mrf.mxu0
    %v174 = vpop.f32.mrf.mxu0
    %v175 = vadd.f32 %v62, %v174
    %v176 = vpop.f32.mrf.mxu0
    %177 = vmatprep.mubr.bf16.mxu0 0
    %178 = vmatmul.mubr.bf16.gmra.mxu0 %v124
    %v179 = vpop.f32.mrf.mxu0
    %v180 = vadd.f32 %v67, %v179
    %v181 = vpop.f32.mrf.mxu0
    %v182 = vpop.f32.mrf.mxu0
    %v183 = vadd.f32 %v72, %v182
    %v184 = vpop.f32.mrf.mxu0
    %185 = vmatprep.mubr.bf16.mxu0 0
    %186 = vmatmul.mubr.bf16.gmra.mxu0 %v127
    %v187 = vpop.f32.mrf.mxu0
    %v188 = vadd.f32 %v77, %v187
    %v189 = vpop.f32.mrf.mxu0
    %v190 = vpop.f32.mrf.mxu0
    %v191 = vadd.f32 %v82, %v190
    %v192 = vpop.f32.mrf.mxu0
    %193 = vdwg.mxu0
    %v194 = vmul.f32 %v164, 0.5
    %v195 = vmul.f32 %v167, 0.5
    %v196 = vmul.f32 %v172, 0.5
    %v197 = vmul.f32 %v175, 0.5
    %v198 = vmul.f32 %v180, 0.5
    %v199 = vmul.f32 %v183, 0.5
    %v200 = vmul.f32 %v188, 0.5
    %v201 = vmul.f32 %v191, 0.5
    %v202 = vmul.f32 %v164, 0.70710677
    %v203 = vmul.f32 %v167, 0.70710677
    %v204 = vmul.f32 %v172, 0.70710677
    %v205 = vmul.f32 %v175, 0.70710677
    %v206 = vmul.f32 %v180, 0.70710677
    %v207 = vmul.f32 %v183, 0.70710677
    %v208 = vmul.f32 %v188, 0.70710677
    %v209 = vmul.f32 %v191, 0.70710677
    %vm210 = vcmp.ge.f32.partialorder %v202, 0.0
    %vm211 = vcmp.ge.f32.partialorder %v203, 0.0
    %vm212 = vcmp.ge.f32.partialorder %v204, 0.0
    %vm213 = vcmp.ge.f32.partialorder %v205, 0.0
    %vm214 = vcmp.ge.f32.partialorder %v206, 0.0
    %vm215 = vcmp.ge.f32.partialorder %v207, 0.0
    %vm216 = vcmp.ge.f32.partialorder %v208, 0.0
    %vm217 = vcmp.ge.f32.partialorder %v209, 0.0
    %v218 = vsel %vm210, 1.0, -1.0
    %v219 = vsel %vm211, 1.0, -1.0
    %v220 = vsel %vm212, 1.0, -1.0
    %v221 = vsel %vm213, 1.0, -1.0
    %v222 = vsel %vm214, 1.0, -1.0
    %v223 = vsel %vm215, 1.0, -1.0
    %v224 = vsel %vm216, 1.0, -1.0
    %v225 = vsel %vm217, 1.0, -1.0
    %v226 = vand.u32 2147483647, %v202
    %v227 = vand.u32 2147483647, %v203
    %v228 = vand.u32 2147483647, %v204
    %v229 = vand.u32 2147483647, %v205
    %v230 = vand.u32 2147483647, %v206
    %v231 = vand.u32 2147483647, %v207
    %v232 = vand.u32 2147483647, %v208
    %v233 = vand.u32 2147483647, %v209
    %v234 = vmul.f32 %v226, 0.3275911
    %v235 = vmul.f32 %v227, 0.3275911
    %v236 = vmul.f32 %v228, 0.3275911
    %v237 = vmul.f32 %v229, 0.3275911
    %v238 = vmul.f32 %v230, 0.3275911
    %v239 = vmul.f32 %v231, 0.3275911
    %v240 = vmul.f32 %v232, 0.3275911
    %v241 = vmul.f32 %v233, 0.3275911
    %v242 = vadd.f32 %v234, 1.0
    %v243 = vadd.f32 %v235, 1.0
    %v244 = vadd.f32 %v236, 1.0
    %v245 = vadd.f32 %v237, 1.0
    %v246 = vadd.f32 %v238, 1.0
    %v247 = vadd.f32 %v239, 1.0
    %v248 = vadd.f32 %v240, 1.0
    %v249 = vadd.f32 %v241, 1.0
    %v250 = vrcp.pop %v242
    %v251 = vmul.f32 1.0, %v250
    %v252 = vrcp.pop %v243
    %v253 = vmul.f32 1.0, %v252
    %v254 = vrcp.pop %v244
    %v255 = vmul.f32 1.0, %v254
    %v256 = vrcp.pop %v245
    %v257 = vmul.f32 1.0, %v256
    %v258 = vrcp.pop %v246
    %v259 = vmul.f32 1.0, %v258
    %v260 = vrcp.pop %v247
    %v261 = vmul.f32 1.0, %v260
    %v262 = vrcp.pop %v248
    %v263 = vmul.f32 1.0, %v262
    %v264 = vrcp.pop %v249
    %v265 = vmul.f32 1.0, %v264
    %v266 = vmul.f32 %v251, 1.0614054
    %v267 = vmul.f32 %v253, 1.0614054
    %v268 = vmul.f32 %v255, 1.0614054
    %v269 = vmul.f32 %v257, 1.0614054
    %v270 = vmul.f32 %v259, 1.0614054
    %v271 = vmul.f32 %v261, 1.0614054
    %v272 = vmul.f32 %v263, 1.0614054
    %v273 = vmul.f32 %v265, 1.0614054
    %v274 = vadd.f32 %v266, -1.4531521
    %v275 = vadd.f32 %v267, -1.4531521
    %v276 = vadd.f32 %v268, -1.4531521
    %v277 = vadd.f32 %v269, -1.4531521
    %v278 = vadd.f32 %v270, -1.4531521
    %v279 = vadd.f32 %v271, -1.4531521
    %v280 = vadd.f32 %v272, -1.4531521
    %v281 = vadd.f32 %v273, -1.4531521
    %v282 = vmul.f32 %v274, %v251
    %v283 = vmul.f32 %v275, %v253
    %v284 = vmul.f32 %v276, %v255
    %v285 = vmul.f32 %v277, %v257
    %v286 = vmul.f32 %v278, %v259
    %v287 = vmul.f32 %v279, %v261
    %v288 = vmul.f32 %v280, %v263
    %v289 = vmul.f32 %v281, %v265
    %v290 = vadd.f32 %v282, 1.4214138
    %v291 = vadd.f32 %v283, 1.4214138
    %v292 = vadd.f32 %v284, 1.4214138
    %v293 = vadd.f32 %v285, 1.4214138
    %v294 = vadd.f32 %v286, 1.4214138
    %v295 = vadd.f32 %v287, 1.4214138
    %v296 = vadd.f32 %v288, 1.4214138
    %v297 = vadd.f32 %v289, 1.4214138
    %v298 = vmul.f32 %v290, %v251
    %v299 = vmul.f32 %v291, %v253
    %v300 = vmul.f32 %v292, %v255
    %v301 = vmul.f32 %v293, %v257
    %v302 = vmul.f32 %v294, %v259
    %v303 = vmul.f32 %v295, %v261
    %v304 = vmul.f32 %v296, %v263
    %v305 = vmul.f32 %v297, %v265
    %v306 = vadd.f32 %v298, -0.28449672
    %v307 = vadd.f32 %v299, -0.28449672
    %v308 = vadd.f32 %v300, -0.28449672
    %v309 = vadd.f32 %v301, -0.28449672
    %v310 = vadd.f32 %v302, -0.28449672
    %v311 = vadd.f32 %v303, -0.28449672
    %v312 = vadd.f32 %v304, -0.28449672
    %v313 = vadd.f32 %v305, -0.28449672
    %v314 = vmul.f32 %v306, %v251
    %v315 = vmul.f32 %v307, %v253
    %v316 = vmul.f32 %v308, %v255
    %v317 = vmul.f32 %v309, %v257
    %v318 = vmul.f32 %v310, %v259
    %v319 = vmul.f32 %v311, %v261
    %v320 = vmul.f32 %v312, %v263
    %v321 = vmul.f32 %v313, %v265
    %v322 = vadd.f32 %v314, 0.2548296
    %v323 = vadd.f32 %v315, 0.2548296
    %v324 = vadd.f32 %v316, 0.2548296
    %v325 = vadd.f32 %v317, 0.2548296
    %v326 = vadd.f32 %v318, 0.2548296
    %v327 = vadd.f32 %v319, 0.2548296
    %v328 = vadd.f32 %v320, 0.2548296
    %v329 = vadd.f32 %v321, 0.2548296
    %v330 = vmul.f32 %v322, %v251
    %v331 = vmul.f32 %v323, %v253
    %v332 = vmul.f32 %v324, %v255
    %v333 = vmul.f32 %v325, %v257
    %v334 = vmul.f32 %v326, %v259
    %v335 = vmul.f32 %v327, %v261
    %v336 = vmul.f32 %v328, %v263
    %v337 = vmul.f32 %v329, %v265
    %v338 = vsub.f32 0.0, %v226
    %v339 = vsub.f32 0.0, %v227
    %v340 = vsub.f32 0.0, %v228
    %v341 = vsub.f32 0.0, %v229
    %v342 = vsub.f32 0.0, %v230
    %v343 = vsub.f32 0.0, %v231
    %v344 = vsub.f32 0.0, %v232
    %v345 = vsub.f32 0.0, %v233
    %v346 = vmul.f32 %v338, %v226
    %v347 = vmul.f32 %v339, %v227
    %v348 = vmul.f32 %v340, %v228
    %v349 = vmul.f32 %v341, %v229
    %v350 = vmul.f32 %v342, %v230
    %v351 = vmul.f32 %v343, %v231
    %v352 = vmul.f32 %v344, %v232
    %v353 = vmul.f32 %v345, %v233
    %v354 = vmul.f32 %v346, 1.442695
    %v355 = vpow.pop %v354
    %v356 = vmul.f32 %v347, 1.442695
    %v357 = vpow.pop %v356
    %v358 = vmul.f32 %v348, 1.442695
    %v359 = vpow.pop %v358
    %v360 = vmul.f32 %v349, 1.442695
    %v361 = vpow.pop %v360
    %v362 = vmul.f32 %v350, 1.442695
    %v363 = vpow.pop %v362
    %v364 = vmul.f32 %v351, 1.442695
    %v365 = vpow.pop %v364
    %v366 = vmul.f32 %v352, 1.442695
    %v367 = vpow.pop %v366
    %v368 = vmul.f32 %v353, 1.442695
    %v369 = vpow.pop %v368
    %v370 = vmul.f32 %v330, %v355
    %v371 = vmul.f32 %v331, %v357
    %v372 = vmul.f32 %v332, %v359
    %v373 = vmul.f32 %v333, %v361
    %v374 = vmul.f32 %v334, %v363
    %v375 = vmul.f32 %v335, %v365
    %v376 = vmul.f32 %v336, %v367
    %v377 = vmul.f32 %v337, %v369
    %v378 = vsub.f32 1.0, %v370
    %v379 = vsub.f32 1.0, %v371
    %v380 = vsub.f32 1.0, %v372
    %v381 = vsub.f32 1.0, %v373
    %v382 = vsub.f32 1.0, %v374
    %v383 = vsub.f32 1.0, %v375
    %v384 = vsub.f32 1.0, %v376
    %v385 = vsub.f32 1.0, %v377
    %v386 = vmul.f32 %v218, %v378
    %v387 = vmul.f32 %v219, %v379
    %v388 = vmul.f32 %v220, %v380
    %v389 = vmul.f32 %v221, %v381
    %v390 = vmul.f32 %v222, %v382
    %v391 = vmul.f32 %v223, %v383
    %v392 = vmul.f32 %v224, %v384
    %v393 = vmul.f32 %v225, %v385
    %v394 = vadd.f32 %v386, 1.0
    %v395 = vadd.f32 %v387, 1.0
    %v396 = vadd.f32 %v388, 1.0
    %v397 = vadd.f32 %v389, 1.0
    %v398 = vadd.f32 %v390, 1.0
    %v399 = vadd.f32 %v391, 1.0
    %v400 = vadd.f32 %v392, 1.0
    %v401 = vadd.f32 %v393, 1.0
    %v402 = vmul.f32 %v194, %v394
    %v403 = vmul.f32 %v195, %v395
    %v404 = vmul.f32 %v196, %v396
    %v405 = vmul.f32 %v197, %v397
    %v406 = vmul.f32 %v198, %v398
    %v407 = vmul.f32 %v199, %v399
    %v408 = vmul.f32 %v200, %v400
    %v409 = vmul.f32 %v201, %v401
    %v410 = vpack.c.bf16 %v403, %v402
    %v411 = vpack.c.bf16 %v405, %v404
    %v412 = vpack.c.bf16 %v407, %v406
    %v413 = vpack.c.bf16 %v409, %v408
    %v418 = vunpack.c.l.b16 %v410
    %v419 = vunpack.c.h.b16 %v410
    %v420 = vunpack.c.l.b16 %v411
    %v421 = vunpack.c.h.b16 %v411
    %v422 = vunpack.c.l.b16 %v412
    %v423 = vunpack.c.h.b16 %v412
    %v424 = vunpack.c.l.b16 %v413
    %v425 = vunpack.c.h.b16 %v413
    %v426 = vpack.c.b16 %v418, %v418
    %v427 = vpack.c.b16 %v419, %v419
    %v428 = vpack.c.b16 %v420, %v420
    %v429 = vpack.c.b16 %v421, %v421
    %v430 = vpack.c.b16 %v422, %v422
    %v431 = vpack.c.b16 %v423, %v423
    %v432 = vpack.c.b16 %v424, %v424
    %v433 = vpack.c.b16 %v425, %v425
    %s442 = smul.u32 %s16, 8
    %s443 = smul.addr %s442, 4
    %s444 = scalar_lea.vmem %s3, %s443
    %vm445 = vcmask 519168
    %446 = vst.msk [vmem:[%s444] sm:$0xf] %vm445, %v426
    %447 = vst.msk [vmem:[%s444 + $0x4] sm:$0xf] %vm445, %v427
    %448 = vst.msk [vmem:[%s444 + $0x8] sm:$0xf] %vm445, %v428
    %449 = vst.msk [vmem:[%s444 + $0xc] sm:$0xf] %vm445, %v429
    %450 = vst.msk [vmem:[%s444 + $0x10] sm:$0xf] %vm445, %v430
    %451 = vst.msk [vmem:[%s444 + $0x14] sm:$0xf] %vm445, %v431
    %452 = vst.msk [vmem:[%s444 + $0x18] sm:$0xf] %vm445, %v432
    %453 = vst.msk [vmem:[%s444 + $0x1c] sm:$0xf] %vm445, %v433
  $region18: #{conv_head_forward.7} parent=0 // loop_footer
    %s20 = sadd.s32 1, %s16
  $region19: #{conv_head_forward.7} parent=0 // loop_footer_branch
    %15 = sbr.rel target = $region15
  $region20: #{conv_head_forward.7} parent=0 // loop_exit
    _
  // Predicated region
  $region21: #{conv_head_forward.7} parent=0 // pred_check
    _
  $region22: #{conv_head_forward.7} parent=0 // pred_check_branch
    %455 = sbr.rel (0) target = $region24
  $region23: #{conv_head_forward.7} parent=0 // pred_region
    _
  $region24: #{conv_head_forward.7} parent=0 // pred_fallthru
    _
  // Predicated region
  $region25: #{conv_head_forward.7} parent=0 // pred_check
    _
  $region26: #{conv_head_forward.7} parent=0 // pred_check_branch
    %457 = sbr.rel (0) target = $region28
  $region27: #{conv_head_forward.7} parent=0 // pred_region
    _
  $region28: #{conv_head_forward.7} parent=0 // pred_fallthru
    _

// kernel: conv_head_forward.5
$region0: #{conv_head_forward.5}
  #allocation0 [shape = 'u32[]', space=smem, size = 0x4, offset = 0x4, fixed_abs, tag = 'smem constant byte address 0x4 - core index']
  #allocation1 [shape = 'u32[144,128]{1,0:T(1,128)}', space=vmem, size = 0x12000, scoped, tag = 'internal scratch']
  %s0 = inlined_call_operand.vmem [shape: bf16[2,64,64], index: 0, kind: input, shape index: {}]
  %s1 = inlined_call_operand.vmem [shape: bf16[128,64], index: 1, kind: input, shape index: {}]
  %s2 = inlined_call_operand.vmem [shape: f32[128,1], index: 2, kind: input, shape index: {}]
  %s3 = inlined_call_operand.vmem [shape: bf16[2,128,64], index: 3, kind: output, shape index: {}]
  %s4 = sld [smem:[#allocation0]]
  $region29: #{conv_head_forward.5} parent=0
    _
  %s6 = ssub.s32 1, %s4
  %s7 = scalar_select 0, %s6, %s4
  // Predicated region
  $region2: #{conv_head_forward.5} parent=0 // pred_check
    _
  $region3: #{conv_head_forward.5} parent=0 // pred_check_branch
    %9 = sbr.rel (0) target = $region5
  $region4: #{conv_head_forward.5} parent=0 // pred_region
    _
  $region5: #{conv_head_forward.5} parent=0 // pred_fallthru
    _
  // Predicated region
  $region6: #{conv_head_forward.5} parent=0 // pred_check
    _
  $region7: #{conv_head_forward.5} parent=0 // pred_check_branch
    %11 = sbr.rel (0) target = $region9
  $region8: #{conv_head_forward.5} parent=0 // pred_region
    _
  $region9: #{conv_head_forward.5} parent=0 // pred_fallthru
    _
  // Predicated region
  $region10: #{conv_head_forward.5} parent=0 // pred_check
    _
  $region11: #{conv_head_forward.5} parent=0 // pred_check_branch
    %13 = sbr.rel (0) target = $region13
  $region12: #{conv_head_forward.5} parent=0 // pred_region
    _
  $region13: #{conv_head_forward.5} parent=0 // pred_fallthru
    _
  loop: start=0, step=1, limit=2
  $region14: #{conv_head_forward.5} parent=0 // loop_pre_header
    _
  $region15: #{conv_head_forward.5} parent=0 // loop_header
    %s16 = sphi 0, %s20
    %p17 = scmp.ge.s32.totalorder %s16, 2
  $region16: #{conv_head_forward.5} parent=0 // loop_header_branch
    %19 = sbr.rel (%p17) target = $region20
  $region17: #{conv_head_forward.5} parent=0 // loop_body
    %v21 = vld [vmem:[%s1] sm:$0xf]
    %v22 = vld [vmem:[%s1 + $0x4] sm:$0xf]
    %v23 = vld [vmem:[%s1 + $0x8] sm:$0xf]
    %v24 = vld [vmem:[%s1 + $0xc] sm:$0xf]
    %v25 = vld [vmem:[%s1 + $0x10] sm:$0xf]
    %v26 = vld [vmem:[%s1 + $0x14] sm:$0xf]
    %v27 = vld [vmem:[%s1 + $0x18] sm:$0xf]
    %v28 = vld [vmem:[%s1 + $0x1c] sm:$0xf]
    %v29 = vld [vmem:[%s1 + $0x20] sm:$0xf]
    %v30 = vld [vmem:[%s1 + $0x24] sm:$0xf]
    %v31 = vld [vmem:[%s1 + $0x28] sm:$0xf]
    %v32 = vld [vmem:[%s1 + $0x2c] sm:$0xf]
    %v33 = vld [vmem:[%s1 + $0x30] sm:$0xf]
    %v34 = vld [vmem:[%s1 + $0x34] sm:$0xf]
    %v35 = vld [vmem:[%s1 + $0x38] sm:$0xf]
    %v36 = vld [vmem:[%s1 + $0x3c] sm:$0xf]
    %s37 = smul.u32 %s16, 8
    %s38 = smul.addr %s37, 4
    %s39 = scalar_lea.vmem %s0, %s38
    %v40 = vld [vmem:[%s39] sm:$0xf]
    %v41 = vld [vmem:[%s39 + $0x4] sm:$0xf]
    %v42 = vld [vmem:[%s39 + $0x8] sm:$0xf]
    %v43 = vld [vmem:[%s39 + $0xc] sm:$0xf]
    %v44 = vld [vmem:[%s39 + $0x10] sm:$0xf]
    %v45 = vld [vmem:[%s39 + $0x14] sm:$0xf]
    %v46 = vld [vmem:[%s39 + $0x18] sm:$0xf]
    %v47 = vld [vmem:[%s39 + $0x1c] sm:$0xf]
    %v48 = vld [vmem:[%s2] sm:$0xff]
    %v49 = vld [vmem:[%s2 + $0x8] sm:$0xff]
    %v50 = vld [vmem:[%s2 + $0x10] sm:$0xff]
    %v51 = vld [vmem:[%s2 + $0x18] sm:$0xff]
    %v52 = vld [vmem:[%s2 + $0x20] sm:$0xff]
    %v53 = vld [vmem:[%s2 + $0x28] sm:$0xff]
    %v54 = vld [vmem:[%s2 + $0x30] sm:$0xff]
    %v55 = vld [vmem:[%s2 + $0x38] sm:$0xff]
    %v56 = vld [vmem:[%s2 + $0x40] sm:$0xff]
    %v57 = vld [vmem:[%s2 + $0x48] sm:$0xff]
    %v58 = vld [vmem:[%s2 + $0x50] sm:$0xff]
    %v59 = vld [vmem:[%s2 + $0x58] sm:$0xff]
    %v60 = vld [vmem:[%s2 + $0x60] sm:$0xff]
    %v61 = vld [vmem:[%s2 + $0x68] sm:$0xff]
    %v62 = vld [vmem:[%s2 + $0x70] sm:$0xff]
    %v63 = vld [vmem:[%s2 + $0x78] sm:$0xff]
    %65 = vset.pattern.permute.xlu0 0
    %66 = vperm.xlu0 %65, %v48
    %v67 = vpop.permute.xlu0 %66
    %70 = vset.pattern.permute.xlu0 0
    %71 = vperm.xlu0 %70, %v49
    %v72 = vpop.permute.xlu0 %71
    %75 = vset.pattern.permute.xlu0 0
    %76 = vperm.xlu0 %75, %v50
    %v77 = vpop.permute.xlu0 %76
    %80 = vset.pattern.permute.xlu0 0
    %81 = vperm.xlu0 %80, %v51
    %v82 = vpop.permute.xlu0 %81
    %85 = vset.pattern.permute.xlu0 0
    %86 = vperm.xlu0 %85, %v52
    %v87 = vpop.permute.xlu0 %86
    %90 = vset.pattern.permute.xlu0 0
    %91 = vperm.xlu0 %90, %v53
    %v92 = vpop.permute.xlu0 %91
    %95 = vset.pattern.permute.xlu0 0
    %96 = vperm.xlu0 %95, %v54
    %v97 = vpop.permute.xlu0 %96
    %100 = vset.pattern.permute.xlu0 0
    %101 = vperm.xlu0 %100, %v55
    %v102 = vpop.permute.xlu0 %101
    %105 = vset.pattern.permute.xlu0 0
    %106 = vperm.xlu0 %105, %v56
    %v107 = vpop.permute.xlu0 %106
    %110 = vset.pattern.permute.xlu0 0
    %111 = vperm.xlu0 %110, %v57
    %v112 = vpop.permute.xlu0 %111
    %115 = vset.pattern.permute.xlu0 0
    %116 = vperm.xlu0 %115, %v58
    %v117 = vpop.permute.xlu0 %116
    %120 = vset.pattern.permute.xlu0 0
    %121 = vperm.xlu0 %120, %v59
    %v122 = vpop.permute.xlu0 %121
    %125 = vset.pattern.permute.xlu0 0
    %126 = vperm.xlu0 %125, %v60
    %v127 = vpop.permute.xlu0 %126
    %130 = vset.pattern.permute.xlu0 0
    %131 = vperm.xlu0 %130, %v61
    %v132 = vpop.permute.xlu0 %131
    %135 = vset.pattern.permute.xlu0 0
    %136 = vperm.xlu0 %135, %v62
    %v137 = vpop.permute.xlu0 %136
    %140 = vset.pattern.permute.xlu0 0
    %141 = vperm.xlu0 %140, %v63
    %v142 = vpop.permute.xlu0 %141
    %v160 = vunpack.c.l.b16 %v21
    %v161 = vunpack.c.l.b16 %v22
    %v162 = vunpack.c.l.b16 %v23
    %v163 = vunpack.c.l.b16 %v24
    %v164 = vunpack.c.l.b16 %v25
    %v165 = vunpack.c.l.b16 %v26
    %v166 = vunpack.c.l.b16 %v27
    %v167 = vunpack.c.l.b16 %v28
    %v168 = vunpack.c.l.b16 %v29
    %v169 = vunpack.c.l.b16 %v30
    %v170 = vunpack.c.l.b16 %v31
    %v171 = vunpack.c.l.b16 %v32
    %v172 = vunpack.c.l.b16 %v33
    %v173 = vunpack.c.l.b16 %v34
    %v174 = vunpack.c.l.b16 %v35
    %v175 = vunpack.c.l.b16 %v36
    %v176 = vpack.c.b16 %v161, %v160
    %v177 = vpack.c.b16 %v163, %v162
    %v178 = vpack.c.b16 %v165, %v164
    %v179 = vpack.c.b16 %v167, %v166
    %v180 = vpack.c.b16 %v169, %v168
    %v181 = vpack.c.b16 %v171, %v170
    %v182 = vpack.c.b16 %v173, %v172
    %v183 = vpack.c.b16 %v175, %v174
    %v192 = vunpack.c.l.b16 %v40
    %v193 = vunpack.c.l.b16 %v41
    %v194 = vunpack.c.l.b16 %v42
    %v195 = vunpack.c.l.b16 %v43
    %v196 = vunpack.c.l.b16 %v44
    %v197 = vunpack.c.l.b16 %v45
    %v198 = vunpack.c.l.b16 %v46
    %v199 = vunpack.c.l.b16 %v47
    %v200 = vpack.c.b16 %v193, %v192
    %v201 = vpack.c.b16 %v195, %v194
    %v202 = vpack.c.b16 %v197, %v196
    %v203 = vpack.c.b16 %v199, %v198
    %vm208 = vcmask 523264
    %v210 = vsel %vm208, %v176, 0
    %v213 = vsel %vm208, %v177, 0
    %v216 = vsel %vm208, %v178, 0
    %v219 = vsel %vm208, %v179, 0
    %v222 = vsel %vm208, %v180, 0
    %v225 = vsel %vm208, %v181, 0
    %v228 = vsel %vm208, %v182, 0
    %v231 = vsel %vm208, %v183, 0
    %233 = vmatprep.subr.bf16.mxu0 0
    %234 = vmatpush1.bf16.msra.mxu0 0
    %235 = vmatprep.subr.bf16.mxu0 0
    %236 = vmatpush1.bf16.msra.mxu0 0
    %237 = vmatprep.subr.bf16.mxu0 0
    %238 = vmatpush1.bf16.msra.mxu0 0
    %239 = vmatprep.subr.bf16.mxu0 0
    %240 = vmatpush1.bf16.msra.mxu0 0
    %241 = vmatprep.subr.bf16.mxu0 0
    %242 = vmatpush1.bf16.msra.mxu0 %v203
    %243 = vmatprep.subr.bf16.mxu0 0
    %244 = vmatpush1.bf16.msra.mxu0 %v202
    %245 = vmatprep.subr.bf16.mxu0 0
    %246 = vmatpush1.bf16.msra.mxu0 %v201
    %247 = vmatprep.subr.bf16.mxu0 0
    %248 = vmatpush1.bf16.msra.mxu0 %v200
    %249 = vmatprep.subr.bf16.mxu0 0
    %250 = vmatpush2.bf16.msra.mxu0 0
    %251 = vmatprep.subr.bf16.mxu0 0
    %252 = vmatpush2.bf16.msra.mxu0 0
    %253 = vmatprep.subr.bf16.mxu0 0
    %254 = vmatpush2.bf16.msra.mxu0 0
    %255 = vmatprep.subr.bf16.mxu0 0
    %256 = vmatpush2.bf16.msra.mxu0 0
    %257 = vmatprep.subr.bf16.mxu0 0
    %258 = vmatpush2.bf16.msra.mxu0 0
    %259 = vmatprep.subr.bf16.mxu0 0
    %260 = vmatpush2.bf16.msra.mxu0 0
    %261 = vmatprep.subr.bf16.mxu0 0
    %262 = vmatpush2.bf16.msra.mxu0 0
    %263 = vmatprep.subr.bf16.mxu0 0
    %264 = vmatpush2.bf16.msra.mxu0 0
    %265 = vmatprep.mubr.bf16.mxu0 0
    %266 = vmatmul.mubr.bf16.gmra.mxu0 %v210
    %v267 = vpop.f32.mrf.mxu0
    %v268 = vadd.f32 %v67, %v267
    %v269 = vpop.f32.mrf.mxu0
    %v270 = vpop.f32.mrf.mxu0
    %v271 = vadd.f32 %v72, %v270
    %v272 = vpop.f32.mrf.mxu0
    %273 = vmatprep.mubr.bf16.mxu0 0
    %274 = vmatmul.mubr.bf16.gmra.mxu0 %v213
    %v275 = vpop.f32.mrf.mxu0
    %v276 = vadd.f32 %v77, %v275
    %v277 = vpop.f32.mrf.mxu0
    %v278 = vpop.f32.mrf.mxu0
    %v279 = vadd.f32 %v82, %v278
    %v280 = vpop.f32.mrf.mxu0
    %281 = vmatprep.mubr.bf16.mxu0 0
    %282 = vmatmul.mubr.bf16.gmra.mxu0 %v216
    %v283 = vpop.f32.mrf.mxu0
    %v284 = vadd.f32 %v87, %v283
    %v285 = vpop.f32.mrf.mxu0
    %v286 = vpop.f32.mrf.mxu0
    %v287 = vadd.f32 %v92, %v286
    %v288 = vpop.f32.mrf.mxu0
    %289 = vmatprep.mubr.bf16.mxu0 0
    %290 = vmatmul.mubr.bf16.gmra.mxu0 %v219
    %v291 = vpop.f32.mrf.mxu0
    %v292 = vadd.f32 %v97, %v291
    %v293 = vpop.f32.mrf.mxu0
    %v294 = vpop.f32.mrf.mxu0
    %v295 = vadd.f32 %v102, %v294
    %v296 = vpop.f32.mrf.mxu0
    %297 = vmatprep.mubr.bf16.mxu0 0
    %298 = vmatmul.mubr.bf16.gmra.mxu0 %v222
    %v299 = vpop.f32.mrf.mxu0
    %v300 = vadd.f32 %v107, %v299
    %v301 = vpop.f32.mrf.mxu0
    %v302 = vpop.f32.mrf.mxu0
    %v303 = vadd.f32 %v112, %v302
    %v304 = vpop.f32.mrf.mxu0
    %305 = vmatprep.mubr.bf16.mxu0 0
    %306 = vmatmul.mubr.bf16.gmra.mxu0 %v225
    %v307 = vpop.f32.mrf.mxu0
    %v308 = vadd.f32 %v117, %v307
    %v309 = vpop.f32.mrf.mxu0
    %v310 = vpop.f32.mrf.mxu0
    %v311 = vadd.f32 %v122, %v310
    %v312 = vpop.f32.mrf.mxu0
    %313 = vmatprep.mubr.bf16.mxu0 0
    %314 = vmatmul.mubr.bf16.gmra.mxu0 %v228
    %v315 = vpop.f32.mrf.mxu0
    %v316 = vadd.f32 %v127, %v315
    %v317 = vpop.f32.mrf.mxu0
    %v318 = vpop.f32.mrf.mxu0
    %v319 = vadd.f32 %v132, %v318
    %v320 = vpop.f32.mrf.mxu0
    %321 = vmatprep.mubr.bf16.mxu0 0
    %322 = vmatmul.mubr.bf16.gmra.mxu0 %v231
    %v323 = vpop.f32.mrf.mxu0
    %v324 = vadd.f32 %v137, %v323
    %v325 = vpop.f32.mrf.mxu0
    %v326 = vpop.f32.mrf.mxu0
    %v327 = vadd.f32 %v142, %v326
    %v328 = vpop.f32.mrf.mxu0
    %329 = vdwg.mxu0
    %v330 = vmul.f32 %v268, 0.5
    %v331 = vmul.f32 %v271, 0.5
    %v332 = vmul.f32 %v276, 0.5
    %v333 = vmul.f32 %v279, 0.5
    %v334 = vmul.f32 %v284, 0.5
    %v335 = vmul.f32 %v287, 0.5
    %v336 = vmul.f32 %v292, 0.5
    %v337 = vmul.f32 %v295, 0.5
    %v338 = vmul.f32 %v300, 0.5
    %v339 = vmul.f32 %v303, 0.5
    %v340 = vmul.f32 %v308, 0.5
    %v341 = vmul.f32 %v311, 0.5
    %v342 = vmul.f32 %v316, 0.5
    %v343 = vmul.f32 %v319, 0.5
    %v344 = vmul.f32 %v324, 0.5
    %v345 = vmul.f32 %v327, 0.5
    %v346 = vmul.f32 %v268, 0.70710677
    %v347 = vmul.f32 %v271, 0.70710677
    %v348 = vmul.f32 %v276, 0.70710677
    %v349 = vmul.f32 %v279, 0.70710677
    %v350 = vmul.f32 %v284, 0.70710677
    %v351 = vmul.f32 %v287, 0.70710677
    %v352 = vmul.f32 %v292, 0.70710677
    %v353 = vmul.f32 %v295, 0.70710677
    %v354 = vmul.f32 %v300, 0.70710677
    %v355 = vmul.f32 %v303, 0.70710677
    %v356 = vmul.f32 %v308, 0.70710677
    %v357 = vmul.f32 %v311, 0.70710677
    %v358 = vmul.f32 %v316, 0.70710677
    %v359 = vmul.f32 %v319, 0.70710677
    %v360 = vmul.f32 %v324, 0.70710677
    %v361 = vmul.f32 %v327, 0.70710677
    %vm362 = vcmp.ge.f32.partialorder %v346, 0.0
    %vm363 = vcmp.ge.f32.partialorder %v347, 0.0
    %vm364 = vcmp.ge.f32.partialorder %v348, 0.0
    %vm365 = vcmp.ge.f32.partialorder %v349, 0.0
    %vm366 = vcmp.ge.f32.partialorder %v350, 0.0
    %vm367 = vcmp.ge.f32.partialorder %v351, 0.0
    %vm368 = vcmp.ge.f32.partialorder %v352, 0.0
    %vm369 = vcmp.ge.f32.partialorder %v353, 0.0
    %vm370 = vcmp.ge.f32.partialorder %v354, 0.0
    %vm371 = vcmp.ge.f32.partialorder %v355, 0.0
    %vm372 = vcmp.ge.f32.partialorder %v356, 0.0
    %vm373 = vcmp.ge.f32.partialorder %v357, 0.0
    %vm374 = vcmp.ge.f32.partialorder %v358, 0.0
    %vm375 = vcmp.ge.f32.partialorder %v359, 0.0
    %vm376 = vcmp.ge.f32.partialorder %v360, 0.0
    %vm377 = vcmp.ge.f32.partialorder %v361, 0.0
    %v378 = vsel %vm362, 1.0, -1.0
    %v379 = vsel %vm363, 1.0, -1.0
    %v380 = vsel %vm364, 1.0, -1.0
    %v381 = vsel %vm365, 1.0, -1.0
    %v382 = vsel %vm366, 1.0, -1.0
    %v383 = vsel %vm367, 1.0, -1.0
    %v384 = vsel %vm368, 1.0, -1.0
    %v385 = vsel %vm369, 1.0, -1.0
    %v386 = vsel %vm370, 1.0, -1.0
    %v387 = vsel %vm371, 1.0, -1.0
    %v388 = vsel %vm372, 1.0, -1.0
    %v389 = vsel %vm373, 1.0, -1.0
    %v390 = vsel %vm374, 1.0, -1.0
    %v391 = vsel %vm375, 1.0, -1.0
    %v392 = vsel %vm376, 1.0, -1.0
    %v393 = vsel %vm377, 1.0, -1.0
    %v394 = vand.u32 2147483647, %v346
    %v395 = vand.u32 2147483647, %v347
    %v396 = vand.u32 2147483647, %v348
    %v397 = vand.u32 2147483647, %v349
    %v398 = vand.u32 2147483647, %v350
    %v399 = vand.u32 2147483647, %v351
    %v400 = vand.u32 2147483647, %v352
    %v401 = vand.u32 2147483647, %v353
    %v402 = vand.u32 2147483647, %v354
    %v403 = vand.u32 2147483647, %v355
    %v404 = vand.u32 2147483647, %v356
    %v405 = vand.u32 2147483647, %v357
    %v406 = vand.u32 2147483647, %v358
    %v407 = vand.u32 2147483647, %v359
    %v408 = vand.u32 2147483647, %v360
    %v409 = vand.u32 2147483647, %v361
    %v410 = vmul.f32 %v394, 0.3275911
    %v411 = vmul.f32 %v395, 0.3275911
    %v412 = vmul.f32 %v396, 0.3275911
    %v413 = vmul.f32 %v397, 0.3275911
    %v414 = vmul.f32 %v398, 0.3275911
    %v415 = vmul.f32 %v399, 0.3275911
    %v416 = vmul.f32 %v400, 0.3275911
    %v417 = vmul.f32 %v401, 0.3275911
    %v418 = vmul.f32 %v402, 0.3275911
    %v419 = vmul.f32 %v403, 0.3275911
    %v420 = vmul.f32 %v404, 0.3275911
    %v421 = vmul.f32 %v405, 0.3275911
    %v422 = vmul.f32 %v406, 0.3275911
    %v423 = vmul.f32 %v407, 0.3275911
    %v424 = vmul.f32 %v408, 0.3275911
    %v425 = vmul.f32 %v409, 0.3275911
    %v426 = vadd.f32 %v410, 1.0
    %v427 = vadd.f32 %v411, 1.0
    %v428 = vadd.f32 %v412, 1.0
    %v429 = vadd.f32 %v413, 1.0
    %v430 = vadd.f32 %v414, 1.0
    %v431 = vadd.f32 %v415, 1.0
    %v432 = vadd.f32 %v416, 1.0
    %v433 = vadd.f32 %v417, 1.0
    %v434 = vadd.f32 %v418, 1.0
    %v435 = vadd.f32 %v419, 1.0
    %v436 = vadd.f32 %v420, 1.0
    %v437 = vadd.f32 %v421, 1.0
    %v438 = vadd.f32 %v422, 1.0
    %v439 = vadd.f32 %v423, 1.0
    %v440 = vadd.f32 %v424, 1.0
    %v441 = vadd.f32 %v425, 1.0
    %v442 = vrcp.pop %v426
    %v443 = vmul.f32 1.0, %v442
    %v444 = vrcp.pop %v427
    %v445 = vmul.f32 1.0, %v444
    %v446 = vrcp.pop %v428
    %v447 = vmul.f32 1.0, %v446
    %v448 = vrcp.pop %v429
    %v449 = vmul.f32 1.0, %v448
    %v450 = vrcp.pop %v430
    %v451 = vmul.f32 1.0, %v450
    %v452 = vrcp.pop %v431
    %v453 = vmul.f32 1.0, %v452
    %v454 = vrcp.pop %v432
    %v455 = vmul.f32 1.0, %v454
    %v456 = vrcp.pop %v433
    %v457 = vmul.f32 1.0, %v456
    %v458 = vrcp.pop %v434
    %v459 = vmul.f32 1.0, %v458
    %v460 = vrcp.pop %v435
    %v461 = vmul.f32 1.0, %v460
    %v462 = vrcp.pop %v436
    %v463 = vmul.f32 1.0, %v462
    %v464 = vrcp.pop %v437
    %v465 = vmul.f32 1.0, %v464
    %v466 = vrcp.pop %v438
    %v467 = vmul.f32 1.0, %v466
    %v468 = vrcp.pop %v439
    %v469 = vmul.f32 1.0, %v468
    %v470 = vrcp.pop %v440
    %v471 = vmul.f32 1.0, %v470
    %v472 = vrcp.pop %v441
    %v473 = vmul.f32 1.0, %v472
    %v474 = vmul.f32 %v443, 1.0614054
    %v475 = vmul.f32 %v445, 1.0614054
    %v476 = vmul.f32 %v447, 1.0614054
    %v477 = vmul.f32 %v449, 1.0614054
    %v478 = vmul.f32 %v451, 1.0614054
    %v479 = vmul.f32 %v453, 1.0614054
    %v480 = vmul.f32 %v455, 1.0614054
    %v481 = vmul.f32 %v457, 1.0614054
    %v482 = vmul.f32 %v459, 1.0614054
    %v483 = vmul.f32 %v461, 1.0614054
    %v484 = vmul.f32 %v463, 1.0614054
    %v485 = vmul.f32 %v465, 1.0614054
    %v486 = vmul.f32 %v467, 1.0614054
    %v487 = vmul.f32 %v469, 1.0614054
    %v488 = vmul.f32 %v471, 1.0614054
    %v489 = vmul.f32 %v473, 1.0614054
    %v490 = vadd.f32 %v474, -1.4531521
    %v491 = vadd.f32 %v475, -1.4531521
    %v492 = vadd.f32 %v476, -1.4531521
    %v493 = vadd.f32 %v477, -1.4531521
    %v494 = vadd.f32 %v478, -1.4531521
    %v495 = vadd.f32 %v479, -1.4531521
    %v496 = vadd.f32 %v480, -1.4531521
    %v497 = vadd.f32 %v481, -1.4531521
    %v498 = vadd.f32 %v482, -1.4531521
    %v499 = vadd.f32 %v483, -1.4531521
    %v500 = vadd.f32 %v484, -1.4531521
    %v501 = vadd.f32 %v485, -1.4531521
    %v502 = vadd.f32 %v486, -1.4531521
    %v503 = vadd.f32 %v487, -1.4531521
    %v504 = vadd.f32 %v488, -1.4531521
    %v505 = vadd.f32 %v489, -1.4531521
    %v506 = vmul.f32 %v490, %v443
    %v507 = vmul.f32 %v491, %v445
    %v508 = vmul.f32 %v492, %v447
    %v509 = vmul.f32 %v493, %v449
    %v510 = vmul.f32 %v494, %v451
    %v511 = vmul.f32 %v495, %v453
    %v512 = vmul.f32 %v496, %v455
    %v513 = vmul.f32 %v497, %v457
    %v514 = vmul.f32 %v498, %v459
    %v515 = vmul.f32 %v499, %v461
    %v516 = vmul.f32 %v500, %v463
    %v517 = vmul.f32 %v501, %v465
    %v518 = vmul.f32 %v502, %v467
    %v519 = vmul.f32 %v503, %v469
    %v520 = vmul.f32 %v504, %v471
    %v521 = vmul.f32 %v505, %v473
    %v522 = vadd.f32 %v506, 1.4214138
    %v523 = vadd.f32 %v507, 1.4214138
    %v524 = vadd.f32 %v508, 1.4214138
    %v525 = vadd.f32 %v509, 1.4214138
    %v526 = vadd.f32 %v510, 1.4214138
    %v527 = vadd.f32 %v511, 1.4214138
    %v528 = vadd.f32 %v512, 1.4214138
    %v529 = vadd.f32 %v513, 1.4214138
    %v530 = vadd.f32 %v514, 1.4214138
    %v531 = vadd.f32 %v515, 1.4214138
    %v532 = vadd.f32 %v516, 1.4214138
    %v533 = vadd.f32 %v517, 1.4214138
    %v534 = vadd.f32 %v518, 1.4214138
    %v535 = vadd.f32 %v519, 1.4214138
    %v536 = vadd.f32 %v520, 1.4214138
    %v537 = vadd.f32 %v521, 1.4214138
    %v538 = vmul.f32 %v522, %v443
    %v539 = vmul.f32 %v523, %v445
    %v540 = vmul.f32 %v524, %v447
    %v541 = vmul.f32 %v525, %v449
    %v542 = vmul.f32 %v526, %v451
    %v543 = vmul.f32 %v527, %v453
    %v544 = vmul.f32 %v528, %v455
    %v545 = vmul.f32 %v529, %v457
    %v546 = vmul.f32 %v530, %v459
    %v547 = vmul.f32 %v531, %v461
    %v548 = vmul.f32 %v532, %v463
    %v549 = vmul.f32 %v533, %v465
    %v550 = vmul.f32 %v534, %v467
    %v551 = vmul.f32 %v535, %v469
    %v552 = vmul.f32 %v536, %v471
    %v553 = vmul.f32 %v537, %v473
    %v554 = vadd.f32 %v538, -0.28449672
    %v555 = vadd.f32 %v539, -0.28449672
    %v556 = vadd.f32 %v540, -0.28449672
    %v557 = vadd.f32 %v541, -0.28449672
    %v558 = vadd.f32 %v542, -0.28449672
    %v559 = vadd.f32 %v543, -0.28449672
    %v560 = vadd.f32 %v544, -0.28449672
    %v561 = vadd.f32 %v545, -0.28449672
    %v562 = vadd.f32 %v546, -0.28449672
    %v563 = vadd.f32 %v547, -0.28449672
    %v564 = vadd.f32 %v548, -0.28449672
    %v565 = vadd.f32 %v549, -0.28449672
    %v566 = vadd.f32 %v550, -0.28449672
    %v567 = vadd.f32 %v551, -0.28449672
    %v568 = vadd.f32 %v552, -0.28449672
    %v569 = vadd.f32 %v553, -0.28449672
    %v570 = vmul.f32 %v554, %v443
    %v571 = vmul.f32 %v555, %v445
    %v572 = vmul.f32 %v556, %v447
    %v573 = vmul.f32 %v557, %v449
    %v574 = vmul.f32 %v558, %v451
    %v575 = vmul.f32 %v559, %v453
    %v576 = vmul.f32 %v560, %v455
    %v577 = vmul.f32 %v561, %v457
    %v578 = vmul.f32 %v562, %v459
    %v579 = vmul.f32 %v563, %v461
    %v580 = vmul.f32 %v564, %v463
    %v581 = vmul.f32 %v565, %v465
    %v582 = vmul.f32 %v566, %v467
    %v583 = vmul.f32 %v567, %v469
    %v584 = vmul.f32 %v568, %v471
    %v585 = vmul.f32 %v569, %v473
    %v586 = vadd.f32 %v570, 0.2548296
    %v587 = vadd.f32 %v571, 0.2548296
    %v588 = vadd.f32 %v572, 0.2548296
    %v589 = vadd.f32 %v573, 0.2548296
    %v590 = vadd.f32 %v574, 0.2548296
    %v591 = vadd.f32 %v575, 0.2548296
    %v592 = vadd.f32 %v576, 0.2548296
    %v593 = vadd.f32 %v577, 0.2548296
    %v594 = vadd.f32 %v578, 0.2548296
    %v595 = vadd.f32 %v579, 0.2548296
    %v596 = vadd.f32 %v580, 0.2548296
    %v597 = vadd.f32 %v581, 0.2548296
    %v598 = vadd.f32 %v582, 0.2548296
    %v599 = vadd.f32 %v583, 0.2548296
    %v600 = vadd.f32 %v584, 0.2548296
    %v601 = vadd.f32 %v585, 0.2548296
    %v602 = vmul.f32 %v586, %v443
    %v603 = vmul.f32 %v587, %v445
    %v604 = vmul.f32 %v588, %v447
    %v605 = vmul.f32 %v589, %v449
    %v606 = vmul.f32 %v590, %v451
    %v607 = vmul.f32 %v591, %v453
    %v608 = vmul.f32 %v592, %v455
    %v609 = vmul.f32 %v593, %v457
    %v610 = vmul.f32 %v594, %v459
    %v611 = vmul.f32 %v595, %v461
    %v612 = vmul.f32 %v596, %v463
    %v613 = vmul.f32 %v597, %v465
    %v614 = vmul.f32 %v598, %v467
    %v615 = vmul.f32 %v599, %v469
    %v616 = vmul.f32 %v600, %v471
    %v617 = vmul.f32 %v601, %v473
    %v618 = vsub.f32 0.0, %v394
    %v619 = vsub.f32 0.0, %v395
    %v620 = vsub.f32 0.0, %v396
    %v621 = vsub.f32 0.0, %v397
    %v622 = vsub.f32 0.0, %v398
    %v623 = vsub.f32 0.0, %v399
    %v624 = vsub.f32 0.0, %v400
    %v625 = vsub.f32 0.0, %v401
    %v626 = vsub.f32 0.0, %v402
    %v627 = vsub.f32 0.0, %v403
    %v628 = vsub.f32 0.0, %v404
    %v629 = vsub.f32 0.0, %v405
    %v630 = vsub.f32 0.0, %v406
    %v631 = vsub.f32 0.0, %v407
    %v632 = vsub.f32 0.0, %v408
    %v633 = vsub.f32 0.0, %v409
    %v634 = vmul.f32 %v618, %v394
    %v635 = vmul.f32 %v619, %v395
    %v636 = vmul.f32 %v620, %v396
    %v637 = vmul.f32 %v621, %v397
    %v638 = vmul.f32 %v622, %v398
    %v639 = vmul.f32 %v623, %v399
    %v640 = vmul.f32 %v624, %v400
    %v641 = vmul.f32 %v625, %v401
    %v642 = vmul.f32 %v626, %v402
    %v643 = vmul.f32 %v627, %v403
    %v644 = vmul.f32 %v628, %v404
    %v645 = vmul.f32 %v629, %v405
    %v646 = vmul.f32 %v630, %v406
    %v647 = vmul.f32 %v631, %v407
    %v648 = vmul.f32 %v632, %v408
    %v649 = vmul.f32 %v633, %v409
    %v650 = vmul.f32 %v634, 1.442695
    %v651 = vpow.pop %v650
    %v652 = vmul.f32 %v635, 1.442695
    %v653 = vpow.pop %v652
    %v654 = vmul.f32 %v636, 1.442695
    %v655 = vpow.pop %v654
    %v656 = vmul.f32 %v637, 1.442695
    %v657 = vpow.pop %v656
    %v658 = vmul.f32 %v638, 1.442695
    %v659 = vpow.pop %v658
    %v660 = vmul.f32 %v639, 1.442695
    %v661 = vpow.pop %v660
    %v662 = vmul.f32 %v640, 1.442695
    %v663 = vpow.pop %v662
    %v664 = vmul.f32 %v641, 1.442695
    %v665 = vpow.pop %v664
    %v666 = vmul.f32 %v642, 1.442695
    %v667 = vpow.pop %v666
    %v668 = vmul.f32 %v643, 1.442695
    %v669 = vpow.pop %v668
    %v670 = vmul.f32 %v644, 1.442695
    %v671 = vpow.pop %v670
    %v672 = vmul.f32 %v645, 1.442695
    %v673 = vpow.pop %v672
    %v674 = vmul.f32 %v646, 1.442695
    %v675 = vpow.pop %v674
    %v676 = vmul.f32 %v647, 1.442695
    %v677 = vpow.pop %v676
    %v678 = vmul.f32 %v648, 1.442695
    %v679 = vpow.pop %v678
    %v680 = vmul.f32 %v649, 1.442695
    %v681 = vpow.pop %v680
    %v682 = vmul.f32 %v602, %v651
    %v683 = vmul.f32 %v603, %v653
    %v684 = vmul.f32 %v604, %v655
    %v685 = vmul.f32 %v605, %v657
    %v686 = vmul.f32 %v606, %v659
    %v687 = vmul.f32 %v607, %v661
    %v688 = vmul.f32 %v608, %v663
    %v689 = vmul.f32 %v609, %v665
    %v690 = vmul.f32 %v610, %v667
    %v691 = vmul.f32 %v611, %v669
    %v692 = vmul.f32 %v612, %v671
    %v693 = vmul.f32 %v613, %v673
    %v694 = vmul.f32 %v614, %v675
    %v695 = vmul.f32 %v615, %v677
    %v696 = vmul.f32 %v616, %v679
    %v697 = vmul.f32 %v617, %v681
    %v698 = vsub.f32 1.0, %v682
    %v699 = vsub.f32 1.0, %v683
    %v700 = vsub.f32 1.0, %v684
    %v701 = vsub.f32 1.0, %v685
    %v702 = vsub.f32 1.0, %v686
    %v703 = vsub.f32 1.0, %v687
    %v704 = vsub.f32 1.0, %v688
    %v705 = vsub.f32 1.0, %v689
    %v706 = vsub.f32 1.0, %v690
    %v707 = vsub.f32 1.0, %v691
    %v708 = vsub.f32 1.0, %v692
    %v709 = vsub.f32 1.0, %v693
    %v710 = vsub.f32 1.0, %v694
    %v711 = vsub.f32 1.0, %v695
    %v712 = vsub.f32 1.0, %v696
    %v713 = vsub.f32 1.0, %v697
    %v714 = vmul.f32 %v378, %v698
    %v715 = vmul.f32 %v379, %v699
    %v716 = vmul.f32 %v380, %v700
    %v717 = vmul.f32 %v381, %v701
    %v718 = vmul.f32 %v382, %v702
    %v719 = vmul.f32 %v383, %v703
    %v720 = vmul.f32 %v384, %v704
    %v721 = vmul.f32 %v385, %v705
    %v722 = vmul.f32 %v386, %v706
    %v723 = vmul.f32 %v387, %v707
    %v724 = vmul.f32 %v388, %v708
    %v725 = vmul.f32 %v389, %v709
    %v726 = vmul.f32 %v390, %v710
    %v727 = vmul.f32 %v391, %v711
    %v728 = vmul.f32 %v392, %v712
    %v729 = vmul.f32 %v393, %v713
    %v730 = vadd.f32 %v714, 1.0
    %v731 = vadd.f32 %v715, 1.0
    %v732 = vadd.f32 %v716, 1.0
    %v733 = vadd.f32 %v717, 1.0
    %v734 = vadd.f32 %v718, 1.0
    %v735 = vadd.f32 %v719, 1.0
    %v736 = vadd.f32 %v720, 1.0
    %v737 = vadd.f32 %v721, 1.0
    %v738 = vadd.f32 %v722, 1.0
    %v739 = vadd.f32 %v723, 1.0
    %v740 = vadd.f32 %v724, 1.0
    %v741 = vadd.f32 %v725, 1.0
    %v742 = vadd.f32 %v726, 1.0
    %v743 = vadd.f32 %v727, 1.0
    %v744 = vadd.f32 %v728, 1.0
    %v745 = vadd.f32 %v729, 1.0
    %v746 = vmul.f32 %v330, %v730
    %v747 = vmul.f32 %v331, %v731
    %v748 = vmul.f32 %v332, %v732
    %v749 = vmul.f32 %v333, %v733
    %v750 = vmul.f32 %v334, %v734
    %v751 = vmul.f32 %v335, %v735
    %v752 = vmul.f32 %v336, %v736
    %v753 = vmul.f32 %v337, %v737
    %v754 = vmul.f32 %v338, %v738
    %v755 = vmul.f32 %v339, %v739
    %v756 = vmul.f32 %v340, %v740
    %v757 = vmul.f32 %v341, %v741
    %v758 = vmul.f32 %v342, %v742
    %v759 = vmul.f32 %v343, %v743
    %v760 = vmul.f32 %v344, %v744
    %v761 = vmul.f32 %v345, %v745
    %v762 = vpack.c.bf16 %v747, %v746
    %v763 = vpack.c.bf16 %v749, %v748
    %v764 = vpack.c.bf16 %v751, %v750
    %v765 = vpack.c.bf16 %v753, %v752
    %v766 = vpack.c.bf16 %v755, %v754
    %v767 = vpack.c.bf16 %v757, %v756
    %v768 = vpack.c.bf16 %v759, %v758
    %v769 = vpack.c.bf16 %v761, %v760
    %v778 = vunpack.c.l.b16 %v762
    %v779 = vunpack.c.h.b16 %v762
    %v780 = vunpack.c.l.b16 %v763
    %v781 = vunpack.c.h.b16 %v763
    %v782 = vunpack.c.l.b16 %v764
    %v783 = vunpack.c.h.b16 %v764
    %v784 = vunpack.c.l.b16 %v765
    %v785 = vunpack.c.h.b16 %v765
    %v786 = vunpack.c.l.b16 %v766
    %v787 = vunpack.c.h.b16 %v766
    %v788 = vunpack.c.l.b16 %v767
    %v789 = vunpack.c.h.b16 %v767
    %v790 = vunpack.c.l.b16 %v768
    %v791 = vunpack.c.h.b16 %v768
    %v792 = vunpack.c.l.b16 %v769
    %v793 = vunpack.c.h.b16 %v769
    %v794 = vpack.c.b16 %v778, %v778
    %v795 = vpack.c.b16 %v779, %v779
    %v796 = vpack.c.b16 %v780, %v780
    %v797 = vpack.c.b16 %v781, %v781
    %v798 = vpack.c.b16 %v782, %v782
    %v799 = vpack.c.b16 %v783, %v783
    %v800 = vpack.c.b16 %v784, %v784
    %v801 = vpack.c.b16 %v785, %v785
    %v802 = vpack.c.b16 %v786, %v786
    %v803 = vpack.c.b16 %v787, %v787
    %v804 = vpack.c.b16 %v788, %v788
    %v805 = vpack.c.b16 %v789, %v789
    %v806 = vpack.c.b16 %v790, %v790
    %v807 = vpack.c.b16 %v791, %v791
    %v808 = vpack.c.b16 %v792, %v792
    %v809 = vpack.c.b16 %v793, %v793
    %s826 = smul.u32 %s16, 16
    %s827 = smul.addr %s826, 4
    %s828 = scalar_lea.vmem %s3, %s827
    %vm829 = vcmask 519168
    %830 = vst.msk [vmem:[%s828] sm:$0xf] %vm829, %v794
    %831 = vst.msk [vmem:[%s828 + $0x4] sm:$0xf] %vm829, %v795
    %832 = vst.msk [vmem:[%s828 + $0x8] sm:$0xf] %vm829, %v796
    %833 = vst.msk [vmem:[%s828 + $0xc] sm:$0xf] %vm829, %v797
    %834 = vst.msk [vmem:[%s828 + $0x10] sm:$0xf] %vm829, %v798
    %835 = vst.msk [vmem:[%s828 + $0x14] sm:$0xf] %vm829, %v799
    %836 = vst.msk [vmem:[%s828 + $0x18] sm:$0xf] %vm829, %v800
    %837 = vst.msk [vmem:[%s828 + $0x1c] sm:$0xf] %vm829, %v801
    %838 = vst.msk [vmem:[%s828 + $0x20] sm:$0xf] %vm829, %v802
    %839 = vst.msk [vmem:[%s828 + $0x24] sm:$0xf] %vm829, %v803
    %840 = vst.msk [vmem:[%s828 + $0x28] sm:$0xf] %vm829, %v804
    %841 = vst.msk [vmem:[%s828 + $0x2c] sm:$0xf] %vm829, %v805
    %842 = vst.msk [vmem:[%s828 + $0x30] sm:$0xf] %vm829, %v806
    %843 = vst.msk [vmem:[%s828 + $0x34] sm:$0xf] %vm829, %v807
    %844 = vst.msk [vmem:[%s828 + $0x38] sm:$0xf] %vm829, %v808
    %845 = vst.msk [vmem:[%s828 + $0x3c] sm:$0xf] %vm829, %v809
  $region18: #{conv_head_forward.5} parent=0 // loop_footer
    %s20 = sadd.s32 1, %s16
  $region19: #{conv_head_forward.5} parent=0 // loop_footer_branch
    %15 = sbr.rel target = $region15
  $region20: #{conv_head_forward.5} parent=0 // loop_exit
    _
  // Predicated region
  $region21: #{conv_head_forward.5} parent=0 // pred_check
    _
  $region22: #{conv_head_forward.5} parent=0 // pred_check_branch
    %847 = sbr.rel (0) target = $region24
  $region23: #{conv_head_forward.5} parent=0 // pred_region
    _
  $region24: #{conv_head_forward.5} parent=0 // pred_fallthru
    _
  // Predicated region
  $region25: #{conv_head_forward.5} parent=0 // pred_check
    _
  $region26: #{conv_head_forward.5} parent=0 // pred_check_branch
    %849 = sbr.rel (0) target = $region28
  $region27: #{conv_head_forward.5} parent=0 // pred_region
    _
  $region28: #{conv_head_forward.5} parent=0 // pred_fallthru
    _

// kernel: conv_head_forward.6
$region0: #{conv_head_forward.6}
  #allocation0 [shape = 'u32[]', space=smem, size = 0x4, offset = 0x4, fixed_abs, tag = 'smem constant byte address 0x4 - core index']
  #allocation1 [shape = 'u32[144,128]{1,0:T(1,128)}', space=vmem, size = 0x12000, scoped, tag = 'internal scratch']
  %s0 = inlined_call_operand.vmem [shape: bf16[8,32,64], index: 0, kind: input, shape index: {}]
  %s1 = inlined_call_operand.vmem [shape: bf16[128,32], index: 1, kind: input, shape index: {}]
  %s2 = inlined_call_operand.vmem [shape: f32[128,1], index: 2, kind: input, shape index: {}]
  %s3 = inlined_call_operand.vmem [shape: bf16[8,128,64], index: 3, kind: output, shape index: {}]
  %s4 = sld [smem:[#allocation0]]
  $region29: #{conv_head_forward.6} parent=0
    _
  %s6 = ssub.s32 1, %s4
  %s7 = scalar_select 0, %s6, %s4
  // Predicated region
  $region2: #{conv_head_forward.6} parent=0 // pred_check
    _
  $region3: #{conv_head_forward.6} parent=0 // pred_check_branch
    %9 = sbr.rel (0) target = $region5
  $region4: #{conv_head_forward.6} parent=0 // pred_region
    _
  $region5: #{conv_head_forward.6} parent=0 // pred_fallthru
    _
  // Predicated region
  $region6: #{conv_head_forward.6} parent=0 // pred_check
    _
  $region7: #{conv_head_forward.6} parent=0 // pred_check_branch
    %11 = sbr.rel (0) target = $region9
  $region8: #{conv_head_forward.6} parent=0 // pred_region
    _
  $region9: #{conv_head_forward.6} parent=0 // pred_fallthru
    _
  // Predicated region
  $region10: #{conv_head_forward.6} parent=0 // pred_check
    _
  $region11: #{conv_head_forward.6} parent=0 // pred_check_branch
    %13 = sbr.rel (0) target = $region13
  $region12: #{conv_head_forward.6} parent=0 // pred_region
    _
  $region13: #{conv_head_forward.6} parent=0 // pred_fallthru
    _
  loop: start=0, step=1, limit=8
  $region14: #{conv_head_forward.6} parent=0 // loop_pre_header
    _
  $region15: #{conv_head_forward.6} parent=0 // loop_header
    %s16 = sphi 0, %s20
    %p17 = scmp.ge.s32.totalorder %s16, 8
  $region16: #{conv_head_forward.6} parent=0 // loop_header_branch
    %19 = sbr.rel (%p17) target = $region20
  $region17: #{conv_head_forward.6} parent=0 // loop_body
    %v21 = vld [vmem:[%s1] sm:$0xf]
    %v22 = vld [vmem:[%s1 + $0x4] sm:$0xf]
    %v23 = vld [vmem:[%s1 + $0x8] sm:$0xf]
    %v24 = vld [vmem:[%s1 + $0xc] sm:$0xf]
    %v25 = vld [vmem:[%s1 + $0x10] sm:$0xf]
    %v26 = vld [vmem:[%s1 + $0x14] sm:$0xf]
    %v27 = vld [vmem:[%s1 + $0x18] sm:$0xf]
    %v28 = vld [vmem:[%s1 + $0x1c] sm:$0xf]
    %v29 = vld [vmem:[%s1 + $0x20] sm:$0xf]
    %v30 = vld [vmem:[%s1 + $0x24] sm:$0xf]
    %v31 = vld [vmem:[%s1 + $0x28] sm:$0xf]
    %v32 = vld [vmem:[%s1 + $0x2c] sm:$0xf]
    %v33 = vld [vmem:[%s1 + $0x30] sm:$0xf]
    %v34 = vld [vmem:[%s1 + $0x34] sm:$0xf]
    %v35 = vld [vmem:[%s1 + $0x38] sm:$0xf]
    %v36 = vld [vmem:[%s1 + $0x3c] sm:$0xf]
    %s37 = smul.u32 %s16, 4
    %s38 = smul.addr %s37, 4
    %s39 = scalar_lea.vmem %s0, %s38
    %v40 = vld [vmem:[%s39] sm:$0xf]
    %v41 = vld [vmem:[%s39 + $0x4] sm:$0xf]
    %v42 = vld [vmem:[%s39 + $0x8] sm:$0xf]
    %v43 = vld [vmem:[%s39 + $0xc] sm:$0xf]
    %v44 = vld [vmem:[%s2] sm:$0xff]
    %v45 = vld [vmem:[%s2 + $0x8] sm:$0xff]
    %v46 = vld [vmem:[%s2 + $0x10] sm:$0xff]
    %v47 = vld [vmem:[%s2 + $0x18] sm:$0xff]
    %v48 = vld [vmem:[%s2 + $0x20] sm:$0xff]
    %v49 = vld [vmem:[%s2 + $0x28] sm:$0xff]
    %v50 = vld [vmem:[%s2 + $0x30] sm:$0xff]
    %v51 = vld [vmem:[%s2 + $0x38] sm:$0xff]
    %v52 = vld [vmem:[%s2 + $0x40] sm:$0xff]
    %v53 = vld [vmem:[%s2 + $0x48] sm:$0xff]
    %v54 = vld [vmem:[%s2 + $0x50] sm:$0xff]
    %v55 = vld [vmem:[%s2 + $0x58] sm:$0xff]
    %v56 = vld [vmem:[%s2 + $0x60] sm:$0xff]
    %v57 = vld [vmem:[%s2 + $0x68] sm:$0xff]
    %v58 = vld [vmem:[%s2 + $0x70] sm:$0xff]
    %v59 = vld [vmem:[%s2 + $0x78] sm:$0xff]
    %61 = vset.pattern.permute.xlu0 0
    %62 = vperm.xlu0 %61, %v44
    %v63 = vpop.permute.xlu0 %62
    %66 = vset.pattern.permute.xlu0 0
    %67 = vperm.xlu0 %66, %v45
    %v68 = vpop.permute.xlu0 %67
    %71 = vset.pattern.permute.xlu0 0
    %72 = vperm.xlu0 %71, %v46
    %v73 = vpop.permute.xlu0 %72
    %76 = vset.pattern.permute.xlu0 0
    %77 = vperm.xlu0 %76, %v47
    %v78 = vpop.permute.xlu0 %77
    %81 = vset.pattern.permute.xlu0 0
    %82 = vperm.xlu0 %81, %v48
    %v83 = vpop.permute.xlu0 %82
    %86 = vset.pattern.permute.xlu0 0
    %87 = vperm.xlu0 %86, %v49
    %v88 = vpop.permute.xlu0 %87
    %91 = vset.pattern.permute.xlu0 0
    %92 = vperm.xlu0 %91, %v50
    %v93 = vpop.permute.xlu0 %92
    %96 = vset.pattern.permute.xlu0 0
    %97 = vperm.xlu0 %96, %v51
    %v98 = vpop.permute.xlu0 %97
    %101 = vset.pattern.permute.xlu0 0
    %102 = vperm.xlu0 %101, %v52
    %v103 = vpop.permute.xlu0 %102
    %106 = vset.pattern.permute.xlu0 0
    %107 = vperm.xlu0 %106, %v53
    %v108 = vpop.permute.xlu0 %107
    %111 = vset.pattern.permute.xlu0 0
    %112 = vperm.xlu0 %111, %v54
    %v113 = vpop.permute.xlu0 %112
    %116 = vset.pattern.permute.xlu0 0
    %117 = vperm.xlu0 %116, %v55
    %v118 = vpop.permute.xlu0 %117
    %121 = vset.pattern.permute.xlu0 0
    %122 = vperm.xlu0 %121, %v56
    %v123 = vpop.permute.xlu0 %122
    %126 = vset.pattern.permute.xlu0 0
    %127 = vperm.xlu0 %126, %v57
    %v128 = vpop.permute.xlu0 %127
    %131 = vset.pattern.permute.xlu0 0
    %132 = vperm.xlu0 %131, %v58
    %v133 = vpop.permute.xlu0 %132
    %136 = vset.pattern.permute.xlu0 0
    %137 = vperm.xlu0 %136, %v59
    %v138 = vpop.permute.xlu0 %137
    %v156 = vunpack.c.l.b16 %v21
    %v157 = vunpack.c.l.b16 %v22
    %v158 = vunpack.c.l.b16 %v23
    %v159 = vunpack.c.l.b16 %v24
    %v160 = vunpack.c.l.b16 %v25
    %v161 = vunpack.c.l.b16 %v26
    %v162 = vunpack.c.l.b16 %v27
    %v163 = vunpack.c.l.b16 %v28
    %v164 = vunpack.c.l.b16 %v29
    %v165 = vunpack.c.l.b16 %v30
    %v166 = vunpack.c.l.b16 %v31
    %v167 = vunpack.c.l.b16 %v32
    %v168 = vunpack.c.l.b16 %v33
    %v169 = vunpack.c.l.b16 %v34
    %v170 = vunpack.c.l.b16 %v35
    %v171 = vunpack.c.l.b16 %v36
    %v172 = vpack.c.b16 %v157, %v156
    %v173 = vpack.c.b16 %v159, %v158
    %v174 = vpack.c.b16 %v161, %v160
    %v175 = vpack.c.b16 %v163, %v162
    %v176 = vpack.c.b16 %v165, %v164
    %v177 = vpack.c.b16 %v167, %v166
    %v178 = vpack.c.b16 %v169, %v168
    %v179 = vpack.c.b16 %v171, %v170
    %v184 = vunpack.c.l.b16 %v40
    %v185 = vunpack.c.l.b16 %v41
    %v186 = vunpack.c.l.b16 %v42
    %v187 = vunpack.c.l.b16 %v43
    %v188 = vpack.c.b16 %v185, %v184
    %v189 = vpack.c.b16 %v187, %v186
    %vm192 = vcmask 261120
    %v194 = vsel %vm192, %v172, 0
    %v197 = vsel %vm192, %v173, 0
    %v200 = vsel %vm192, %v174, 0
    %v203 = vsel %vm192, %v175, 0
    %v206 = vsel %vm192, %v176, 0
    %v209 = vsel %vm192, %v177, 0
    %v212 = vsel %vm192, %v178, 0
    %v215 = vsel %vm192, %v179, 0
    %217 = vmatprep.subr.bf16.mxu0 0
    %218 = vmatpush1.bf16.msra.mxu0 0
    %219 = vmatprep.subr.bf16.mxu0 0
    %220 = vmatpush1.bf16.msra.mxu0 0
    %221 = vmatprep.subr.bf16.mxu0 0
    %222 = vmatpush1.bf16.msra.mxu0 0
    %223 = vmatprep.subr.bf16.mxu0 0
    %224 = vmatpush1.bf16.msra.mxu0 0
    %225 = vmatprep.subr.bf16.mxu0 0
    %226 = vmatpush1.bf16.msra.mxu0 0
    %227 = vmatprep.subr.bf16.mxu0 0
    %228 = vmatpush1.bf16.msra.mxu0 0
    %229 = vmatprep.subr.bf16.mxu0 0
    %230 = vmatpush1.bf16.msra.mxu0 %v189
    %231 = vmatprep.subr.bf16.mxu0 0
    %232 = vmatpush1.bf16.msra.mxu0 %v188
    %233 = vmatprep.subr.bf16.mxu0 0
    %234 = vmatpush2.bf16.msra.mxu0 0
    %235 = vmatprep.subr.bf16.mxu0 0
    %236 = vmatpush2.bf16.msra.mxu0 0
    %237 = vmatprep.subr.bf16.mxu0 0
    %238 = vmatpush2.bf16.msra.mxu0 0
    %239 = vmatprep.subr.bf16.mxu0 0
    %240 = vmatpush2.bf16.msra.mxu0 0
    %241 = vmatprep.subr.bf16.mxu0 0
    %242 = vmatpush2.bf16.msra.mxu0 0
    %243 = vmatprep.subr.bf16.mxu0 0
    %244 = vmatpush2.bf16.msra.mxu0 0
    %245 = vmatprep.subr.bf16.mxu0 0
    %246 = vmatpush2.bf16.msra.mxu0 0
    %247 = vmatprep.subr.bf16.mxu0 0
    %248 = vmatpush2.bf16.msra.mxu0 0
    %249 = vmatprep.mubr.bf16.mxu0 0
    %250 = vmatmul.mubr.bf16.gmra.mxu0 %v194
    %v251 = vpop.f32.mrf.mxu0
    %v252 = vadd.f32 %v63, %v251
    %v253 = vpop.f32.mrf.mxu0
    %v254 = vpop.f32.mrf.mxu0
    %v255 = vadd.f32 %v68, %v254
    %v256 = vpop.f32.mrf.mxu0
    %257 = vmatprep.mubr.bf16.mxu0 0
    %258 = vmatmul.mubr.bf16.gmra.mxu0 %v197
    %v259 = vpop.f32.mrf.mxu0
    %v260 = vadd.f32 %v73, %v259
    %v261 = vpop.f32.mrf.mxu0
    %v262 = vpop.f32.mrf.mxu0
    %v263 = vadd.f32 %v78, %v262
    %v264 = vpop.f32.mrf.mxu0
    %265 = vmatprep.mubr.bf16.mxu0 0
    %266 = vmatmul.mubr.bf16.gmra.mxu0 %v200
    %v267 = vpop.f32.mrf.mxu0
    %v268 = vadd.f32 %v83, %v267
    %v269 = vpop.f32.mrf.mxu0
    %v270 = vpop.f32.mrf.mxu0
    %v271 = vadd.f32 %v88, %v270
    %v272 = vpop.f32.mrf.mxu0
    %273 = vmatprep.mubr.bf16.mxu0 0
    %274 = vmatmul.mubr.bf16.gmra.mxu0 %v203
    %v275 = vpop.f32.mrf.mxu0
    %v276 = vadd.f32 %v93, %v275
    %v277 = vpop.f32.mrf.mxu0
    %v278 = vpop.f32.mrf.mxu0
    %v279 = vadd.f32 %v98, %v278
    %v280 = vpop.f32.mrf.mxu0
    %281 = vmatprep.mubr.bf16.mxu0 0
    %282 = vmatmul.mubr.bf16.gmra.mxu0 %v206
    %v283 = vpop.f32.mrf.mxu0
    %v284 = vadd.f32 %v103, %v283
    %v285 = vpop.f32.mrf.mxu0
    %v286 = vpop.f32.mrf.mxu0
    %v287 = vadd.f32 %v108, %v286
    %v288 = vpop.f32.mrf.mxu0
    %289 = vmatprep.mubr.bf16.mxu0 0
    %290 = vmatmul.mubr.bf16.gmra.mxu0 %v209
    %v291 = vpop.f32.mrf.mxu0
    %v292 = vadd.f32 %v113, %v291
    %v293 = vpop.f32.mrf.mxu0
    %v294 = vpop.f32.mrf.mxu0
    %v295 = vadd.f32 %v118, %v294
    %v296 = vpop.f32.mrf.mxu0
    %297 = vmatprep.mubr.bf16.mxu0 0
    %298 = vmatmul.mubr.bf16.gmra.mxu0 %v212
    %v299 = vpop.f32.mrf.mxu0
    %v300 = vadd.f32 %v123, %v299
    %v301 = vpop.f32.mrf.mxu0
    %v302 = vpop.f32.mrf.mxu0
    %v303 = vadd.f32 %v128, %v302
    %v304 = vpop.f32.mrf.mxu0
    %305 = vmatprep.mubr.bf16.mxu0 0
    %306 = vmatmul.mubr.bf16.gmra.mxu0 %v215
    %v307 = vpop.f32.mrf.mxu0
    %v308 = vadd.f32 %v133, %v307
    %v309 = vpop.f32.mrf.mxu0
    %v310 = vpop.f32.mrf.mxu0
    %v311 = vadd.f32 %v138, %v310
    %v312 = vpop.f32.mrf.mxu0
    %313 = vdwg.mxu0
    %v314 = vmul.f32 %v252, 0.5
    %v315 = vmul.f32 %v255, 0.5
    %v316 = vmul.f32 %v260, 0.5
    %v317 = vmul.f32 %v263, 0.5
    %v318 = vmul.f32 %v268, 0.5
    %v319 = vmul.f32 %v271, 0.5
    %v320 = vmul.f32 %v276, 0.5
    %v321 = vmul.f32 %v279, 0.5
    %v322 = vmul.f32 %v284, 0.5
    %v323 = vmul.f32 %v287, 0.5
    %v324 = vmul.f32 %v292, 0.5
    %v325 = vmul.f32 %v295, 0.5
    %v326 = vmul.f32 %v300, 0.5
    %v327 = vmul.f32 %v303, 0.5
    %v328 = vmul.f32 %v308, 0.5
    %v329 = vmul.f32 %v311, 0.5
    %v330 = vmul.f32 %v252, 0.70710677
    %v331 = vmul.f32 %v255, 0.70710677
    %v332 = vmul.f32 %v260, 0.70710677
    %v333 = vmul.f32 %v263, 0.70710677
    %v334 = vmul.f32 %v268, 0.70710677
    %v335 = vmul.f32 %v271, 0.70710677
    %v336 = vmul.f32 %v276, 0.70710677
    %v337 = vmul.f32 %v279, 0.70710677
    %v338 = vmul.f32 %v284, 0.70710677
    %v339 = vmul.f32 %v287, 0.70710677
    %v340 = vmul.f32 %v292, 0.70710677
    %v341 = vmul.f32 %v295, 0.70710677
    %v342 = vmul.f32 %v300, 0.70710677
    %v343 = vmul.f32 %v303, 0.70710677
    %v344 = vmul.f32 %v308, 0.70710677
    %v345 = vmul.f32 %v311, 0.70710677
    %vm346 = vcmp.ge.f32.partialorder %v330, 0.0
    %vm347 = vcmp.ge.f32.partialorder %v331, 0.0
    %vm348 = vcmp.ge.f32.partialorder %v332, 0.0
    %vm349 = vcmp.ge.f32.partialorder %v333, 0.0
    %vm350 = vcmp.ge.f32.partialorder %v334, 0.0
    %vm351 = vcmp.ge.f32.partialorder %v335, 0.0
    %vm352 = vcmp.ge.f32.partialorder %v336, 0.0
    %vm353 = vcmp.ge.f32.partialorder %v337, 0.0
    %vm354 = vcmp.ge.f32.partialorder %v338, 0.0
    %vm355 = vcmp.ge.f32.partialorder %v339, 0.0
    %vm356 = vcmp.ge.f32.partialorder %v340, 0.0
    %vm357 = vcmp.ge.f32.partialorder %v341, 0.0
    %vm358 = vcmp.ge.f32.partialorder %v342, 0.0
    %vm359 = vcmp.ge.f32.partialorder %v343, 0.0
    %vm360 = vcmp.ge.f32.partialorder %v344, 0.0
    %vm361 = vcmp.ge.f32.partialorder %v345, 0.0
    %v362 = vsel %vm346, 1.0, -1.0
    %v363 = vsel %vm347, 1.0, -1.0
    %v364 = vsel %vm348, 1.0, -1.0
    %v365 = vsel %vm349, 1.0, -1.0
    %v366 = vsel %vm350, 1.0, -1.0
    %v367 = vsel %vm351, 1.0, -1.0
    %v368 = vsel %vm352, 1.0, -1.0
    %v369 = vsel %vm353, 1.0, -1.0
    %v370 = vsel %vm354, 1.0, -1.0
    %v371 = vsel %vm355, 1.0, -1.0
    %v372 = vsel %vm356, 1.0, -1.0
    %v373 = vsel %vm357, 1.0, -1.0
    %v374 = vsel %vm358, 1.0, -1.0
    %v375 = vsel %vm359, 1.0, -1.0
    %v376 = vsel %vm360, 1.0, -1.0
    %v377 = vsel %vm361, 1.0, -1.0
    %v378 = vand.u32 2147483647, %v330
    %v379 = vand.u32 2147483647, %v331
    %v380 = vand.u32 2147483647, %v332
    %v381 = vand.u32 2147483647, %v333
    %v382 = vand.u32 2147483647, %v334
    %v383 = vand.u32 2147483647, %v335
    %v384 = vand.u32 2147483647, %v336
    %v385 = vand.u32 2147483647, %v337
    %v386 = vand.u32 2147483647, %v338
    %v387 = vand.u32 2147483647, %v339
    %v388 = vand.u32 2147483647, %v340
    %v389 = vand.u32 2147483647, %v341
    %v390 = vand.u32 2147483647, %v342
    %v391 = vand.u32 2147483647, %v343
    %v392 = vand.u32 2147483647, %v344
    %v393 = vand.u32 2147483647, %v345
    %v394 = vmul.f32 %v378, 0.3275911
    %v395 = vmul.f32 %v379, 0.3275911
    %v396 = vmul.f32 %v380, 0.3275911
    %v397 = vmul.f32 %v381, 0.3275911
    %v398 = vmul.f32 %v382, 0.3275911
    %v399 = vmul.f32 %v383, 0.3275911
    %v400 = vmul.f32 %v384, 0.3275911
    %v401 = vmul.f32 %v385, 0.3275911
    %v402 = vmul.f32 %v386, 0.3275911
    %v403 = vmul.f32 %v387, 0.3275911
    %v404 = vmul.f32 %v388, 0.3275911
    %v405 = vmul.f32 %v389, 0.3275911
    %v406 = vmul.f32 %v390, 0.3275911
    %v407 = vmul.f32 %v391, 0.3275911
    %v408 = vmul.f32 %v392, 0.3275911
    %v409 = vmul.f32 %v393, 0.3275911
    %v410 = vadd.f32 %v394, 1.0
    %v411 = vadd.f32 %v395, 1.0
    %v412 = vadd.f32 %v396, 1.0
    %v413 = vadd.f32 %v397, 1.0
    %v414 = vadd.f32 %v398, 1.0
    %v415 = vadd.f32 %v399, 1.0
    %v416 = vadd.f32 %v400, 1.0
    %v417 = vadd.f32 %v401, 1.0
    %v418 = vadd.f32 %v402, 1.0
    %v419 = vadd.f32 %v403, 1.0
    %v420 = vadd.f32 %v404, 1.0
    %v421 = vadd.f32 %v405, 1.0
    %v422 = vadd.f32 %v406, 1.0
    %v423 = vadd.f32 %v407, 1.0
    %v424 = vadd.f32 %v408, 1.0
    %v425 = vadd.f32 %v409, 1.0
    %v426 = vrcp.pop %v410
    %v427 = vmul.f32 1.0, %v426
    %v428 = vrcp.pop %v411
    %v429 = vmul.f32 1.0, %v428
    %v430 = vrcp.pop %v412
    %v431 = vmul.f32 1.0, %v430
    %v432 = vrcp.pop %v413
    %v433 = vmul.f32 1.0, %v432
    %v434 = vrcp.pop %v414
    %v435 = vmul.f32 1.0, %v434
    %v436 = vrcp.pop %v415
    %v437 = vmul.f32 1.0, %v436
    %v438 = vrcp.pop %v416
    %v439 = vmul.f32 1.0, %v438
    %v440 = vrcp.pop %v417
    %v441 = vmul.f32 1.0, %v440
    %v442 = vrcp.pop %v418
    %v443 = vmul.f32 1.0, %v442
    %v444 = vrcp.pop %v419
    %v445 = vmul.f32 1.0, %v444
    %v446 = vrcp.pop %v420
    %v447 = vmul.f32 1.0, %v446
    %v448 = vrcp.pop %v421
    %v449 = vmul.f32 1.0, %v448
    %v450 = vrcp.pop %v422
    %v451 = vmul.f32 1.0, %v450
    %v452 = vrcp.pop %v423
    %v453 = vmul.f32 1.0, %v452
    %v454 = vrcp.pop %v424
    %v455 = vmul.f32 1.0, %v454
    %v456 = vrcp.pop %v425
    %v457 = vmul.f32 1.0, %v456
    %v458 = vmul.f32 %v427, 1.0614054
    %v459 = vmul.f32 %v429, 1.0614054
    %v460 = vmul.f32 %v431, 1.0614054
    %v461 = vmul.f32 %v433, 1.0614054
    %v462 = vmul.f32 %v435, 1.0614054
    %v463 = vmul.f32 %v437, 1.0614054
    %v464 = vmul.f32 %v439, 1.0614054
    %v465 = vmul.f32 %v441, 1.0614054
    %v466 = vmul.f32 %v443, 1.0614054
    %v467 = vmul.f32 %v445, 1.0614054
    %v468 = vmul.f32 %v447, 1.0614054
    %v469 = vmul.f32 %v449, 1.0614054
    %v470 = vmul.f32 %v451, 1.0614054
    %v471 = vmul.f32 %v453, 1.0614054
    %v472 = vmul.f32 %v455, 1.0614054
    %v473 = vmul.f32 %v457, 1.0614054
    %v474 = vadd.f32 %v458, -1.4531521
    %v475 = vadd.f32 %v459, -1.4531521
    %v476 = vadd.f32 %v460, -1.4531521
    %v477 = vadd.f32 %v461, -1.4531521
    %v478 = vadd.f32 %v462, -1.4531521
    %v479 = vadd.f32 %v463, -1.4531521
    %v480 = vadd.f32 %v464, -1.4531521
    %v481 = vadd.f32 %v465, -1.4531521
    %v482 = vadd.f32 %v466, -1.4531521
    %v483 = vadd.f32 %v467, -1.4531521
    %v484 = vadd.f32 %v468, -1.4531521
    %v485 = vadd.f32 %v469, -1.4531521
    %v486 = vadd.f32 %v470, -1.4531521
    %v487 = vadd.f32 %v471, -1.4531521
    %v488 = vadd.f32 %v472, -1.4531521
    %v489 = vadd.f32 %v473, -1.4531521
    %v490 = vmul.f32 %v474, %v427
    %v491 = vmul.f32 %v475, %v429
    %v492 = vmul.f32 %v476, %v431
    %v493 = vmul.f32 %v477, %v433
    %v494 = vmul.f32 %v478, %v435
    %v495 = vmul.f32 %v479, %v437
    %v496 = vmul.f32 %v480, %v439
    %v497 = vmul.f32 %v481, %v441
    %v498 = vmul.f32 %v482, %v443
    %v499 = vmul.f32 %v483, %v445
    %v500 = vmul.f32 %v484, %v447
    %v501 = vmul.f32 %v485, %v449
    %v502 = vmul.f32 %v486, %v451
    %v503 = vmul.f32 %v487, %v453
    %v504 = vmul.f32 %v488, %v455
    %v505 = vmul.f32 %v489, %v457
    %v506 = vadd.f32 %v490, 1.4214138
    %v507 = vadd.f32 %v491, 1.4214138
    %v508 = vadd.f32 %v492, 1.4214138
    %v509 = vadd.f32 %v493, 1.4214138
    %v510 = vadd.f32 %v494, 1.4214138
    %v511 = vadd.f32 %v495, 1.4214138
    %v512 = vadd.f32 %v496, 1.4214138
    %v513 = vadd.f32 %v497, 1.4214138
    %v514 = vadd.f32 %v498, 1.4214138
    %v515 = vadd.f32 %v499, 1.4214138
    %v516 = vadd.f32 %v500, 1.4214138
    %v517 = vadd.f32 %v501, 1.4214138
    %v518 = vadd.f32 %v502, 1.4214138
    %v519 = vadd.f32 %v503, 1.4214138
    %v520 = vadd.f32 %v504, 1.4214138
    %v521 = vadd.f32 %v505, 1.4214138
    %v522 = vmul.f32 %v506, %v427
    %v523 = vmul.f32 %v507, %v429
    %v524 = vmul.f32 %v508, %v431
    %v525 = vmul.f32 %v509, %v433
    %v526 = vmul.f32 %v510, %v435
    %v527 = vmul.f32 %v511, %v437
    %v528 = vmul.f32 %v512, %v439
    %v529 = vmul.f32 %v513, %v441
    %v530 = vmul.f32 %v514, %v443
    %v531 = vmul.f32 %v515, %v445
    %v532 = vmul.f32 %v516, %v447
    %v533 = vmul.f32 %v517, %v449
    %v534 = vmul.f32 %v518, %v451
    %v535 = vmul.f32 %v519, %v453
    %v536 = vmul.f32 %v520, %v455
    %v537 = vmul.f32 %v521, %v457
    %v538 = vadd.f32 %v522, -0.28449672
    %v539 = vadd.f32 %v523, -0.28449672
    %v540 = vadd.f32 %v524, -0.28449672
    %v541 = vadd.f32 %v525, -0.28449672
    %v542 = vadd.f32 %v526, -0.28449672
    %v543 = vadd.f32 %v527, -0.28449672
    %v544 = vadd.f32 %v528, -0.28449672
    %v545 = vadd.f32 %v529, -0.28449672
    %v546 = vadd.f32 %v530, -0.28449672
    %v547 = vadd.f32 %v531, -0.28449672
    %v548 = vadd.f32 %v532, -0.28449672
    %v549 = vadd.f32 %v533, -0.28449672
    %v550 = vadd.f32 %v534, -0.28449672
    %v551 = vadd.f32 %v535, -0.28449672
    %v552 = vadd.f32 %v536, -0.28449672
    %v553 = vadd.f32 %v537, -0.28449672
    %v554 = vmul.f32 %v538, %v427
    %v555 = vmul.f32 %v539, %v429
    %v556 = vmul.f32 %v540, %v431
    %v557 = vmul.f32 %v541, %v433
    %v558 = vmul.f32 %v542, %v435
    %v559 = vmul.f32 %v543, %v437
    %v560 = vmul.f32 %v544, %v439
    %v561 = vmul.f32 %v545, %v441
    %v562 = vmul.f32 %v546, %v443
    %v563 = vmul.f32 %v547, %v445
    %v564 = vmul.f32 %v548, %v447
    %v565 = vmul.f32 %v549, %v449
    %v566 = vmul.f32 %v550, %v451
    %v567 = vmul.f32 %v551, %v453
    %v568 = vmul.f32 %v552, %v455
    %v569 = vmul.f32 %v553, %v457
    %v570 = vadd.f32 %v554, 0.2548296
    %v571 = vadd.f32 %v555, 0.2548296
    %v572 = vadd.f32 %v556, 0.2548296
    %v573 = vadd.f32 %v557, 0.2548296
    %v574 = vadd.f32 %v558, 0.2548296
    %v575 = vadd.f32 %v559, 0.2548296
    %v576 = vadd.f32 %v560, 0.2548296
    %v577 = vadd.f32 %v561, 0.2548296
    %v578 = vadd.f32 %v562, 0.2548296
    %v579 = vadd.f32 %v563, 0.2548296
    %v580 = vadd.f32 %v564, 0.2548296
    %v581 = vadd.f32 %v565, 0.2548296
    %v582 = vadd.f32 %v566, 0.2548296
    %v583 = vadd.f32 %v567, 0.2548296
    %v584 = vadd.f32 %v568, 0.2548296
    %v585 = vadd.f32 %v569, 0.2548296
    %v586 = vmul.f32 %v570, %v427
    %v587 = vmul.f32 %v571, %v429
    %v588 = vmul.f32 %v572, %v431
    %v589 = vmul.f32 %v573, %v433
    %v590 = vmul.f32 %v574, %v435
    %v591 = vmul.f32 %v575, %v437
    %v592 = vmul.f32 %v576, %v439
    %v593 = vmul.f32 %v577, %v441
    %v594 = vmul.f32 %v578, %v443
    %v595 = vmul.f32 %v579, %v445
    %v596 = vmul.f32 %v580, %v447
    %v597 = vmul.f32 %v581, %v449
    %v598 = vmul.f32 %v582, %v451
    %v599 = vmul.f32 %v583, %v453
    %v600 = vmul.f32 %v584, %v455
    %v601 = vmul.f32 %v585, %v457
    %v602 = vsub.f32 0.0, %v378
    %v603 = vsub.f32 0.0, %v379
    %v604 = vsub.f32 0.0, %v380
    %v605 = vsub.f32 0.0, %v381
    %v606 = vsub.f32 0.0, %v382
    %v607 = vsub.f32 0.0, %v383
    %v608 = vsub.f32 0.0, %v384
    %v609 = vsub.f32 0.0, %v385
    %v610 = vsub.f32 0.0, %v386
    %v611 = vsub.f32 0.0, %v387
    %v612 = vsub.f32 0.0, %v388
    %v613 = vsub.f32 0.0, %v389
    %v614 = vsub.f32 0.0, %v390
    %v615 = vsub.f32 0.0, %v391
    %v616 = vsub.f32 0.0, %v392
    %v617 = vsub.f32 0.0, %v393
    %v618 = vmul.f32 %v602, %v378
    %v619 = vmul.f32 %v603, %v379
    %v620 = vmul.f32 %v604, %v380
    %v621 = vmul.f32 %v605, %v381
    %v622 = vmul.f32 %v606, %v382
    %v623 = vmul.f32 %v607, %v383
    %v624 = vmul.f32 %v608, %v384
    %v625 = vmul.f32 %v609, %v385
    %v626 = vmul.f32 %v610, %v386
    %v627 = vmul.f32 %v611, %v387
    %v628 = vmul.f32 %v612, %v388
    %v629 = vmul.f32 %v613, %v389
    %v630 = vmul.f32 %v614, %v390
    %v631 = vmul.f32 %v615, %v391
    %v632 = vmul.f32 %v616, %v392
    %v633 = vmul.f32 %v617, %v393
    %v634 = vmul.f32 %v618, 1.442695
    %v635 = vpow.pop %v634
    %v636 = vmul.f32 %v619, 1.442695
    %v637 = vpow.pop %v636
    %v638 = vmul.f32 %v620, 1.442695
    %v639 = vpow.pop %v638
    %v640 = vmul.f32 %v621, 1.442695
    %v641 = vpow.pop %v640
    %v642 = vmul.f32 %v622, 1.442695
    %v643 = vpow.pop %v642
    %v644 = vmul.f32 %v623, 1.442695
    %v645 = vpow.pop %v644
    %v646 = vmul.f32 %v624, 1.442695
    %v647 = vpow.pop %v646
    %v648 = vmul.f32 %v625, 1.442695
    %v649 = vpow.pop %v648
    %v650 = vmul.f32 %v626, 1.442695
    %v651 = vpow.pop %v650
    %v652 = vmul.f32 %v627, 1.442695
    %v653 = vpow.pop %v652
    %v654 = vmul.f32 %v628, 1.442695
    %v655 = vpow.pop %v654
    %v656 = vmul.f32 %v629, 1.442695
    %v657 = vpow.pop %v656
    %v658 = vmul.f32 %v630, 1.442695
    %v659 = vpow.pop %v658
    %v660 = vmul.f32 %v631, 1.442695
    %v661 = vpow.pop %v660
    %v662 = vmul.f32 %v632, 1.442695
    %v663 = vpow.pop %v662
    %v664 = vmul.f32 %v633, 1.442695
    %v665 = vpow.pop %v664
    %v666 = vmul.f32 %v586, %v635
    %v667 = vmul.f32 %v587, %v637
    %v668 = vmul.f32 %v588, %v639
    %v669 = vmul.f32 %v589, %v641
    %v670 = vmul.f32 %v590, %v643
    %v671 = vmul.f32 %v591, %v645
    %v672 = vmul.f32 %v592, %v647
    %v673 = vmul.f32 %v593, %v649
    %v674 = vmul.f32 %v594, %v651
    %v675 = vmul.f32 %v595, %v653
    %v676 = vmul.f32 %v596, %v655
    %v677 = vmul.f32 %v597, %v657
    %v678 = vmul.f32 %v598, %v659
    %v679 = vmul.f32 %v599, %v661
    %v680 = vmul.f32 %v600, %v663
    %v681 = vmul.f32 %v601, %v665
    %v682 = vsub.f32 1.0, %v666
    %v683 = vsub.f32 1.0, %v667
    %v684 = vsub.f32 1.0, %v668
    %v685 = vsub.f32 1.0, %v669
    %v686 = vsub.f32 1.0, %v670
    %v687 = vsub.f32 1.0, %v671
    %v688 = vsub.f32 1.0, %v672
    %v689 = vsub.f32 1.0, %v673
    %v690 = vsub.f32 1.0, %v674
    %v691 = vsub.f32 1.0, %v675
    %v692 = vsub.f32 1.0, %v676
    %v693 = vsub.f32 1.0, %v677
    %v694 = vsub.f32 1.0, %v678
    %v695 = vsub.f32 1.0, %v679
    %v696 = vsub.f32 1.0, %v680
    %v697 = vsub.f32 1.0, %v681
    %v698 = vmul.f32 %v362, %v682
    %v699 = vmul.f32 %v363, %v683
    %v700 = vmul.f32 %v364, %v684
    %v701 = vmul.f32 %v365, %v685
    %v702 = vmul.f32 %v366, %v686
    %v703 = vmul.f32 %v367, %v687
    %v704 = vmul.f32 %v368, %v688
    %v705 = vmul.f32 %v369, %v689
    %v706 = vmul.f32 %v370, %v690
    %v707 = vmul.f32 %v371, %v691
    %v708 = vmul.f32 %v372, %v692
    %v709 = vmul.f32 %v373, %v693
    %v710 = vmul.f32 %v374, %v694
    %v711 = vmul.f32 %v375, %v695
    %v712 = vmul.f32 %v376, %v696
    %v713 = vmul.f32 %v377, %v697
    %v714 = vadd.f32 %v698, 1.0
    %v715 = vadd.f32 %v699, 1.0
    %v716 = vadd.f32 %v700, 1.0
    %v717 = vadd.f32 %v701, 1.0
    %v718 = vadd.f32 %v702, 1.0
    %v719 = vadd.f32 %v703, 1.0
    %v720 = vadd.f32 %v704, 1.0
    %v721 = vadd.f32 %v705, 1.0
    %v722 = vadd.f32 %v706, 1.0
    %v723 = vadd.f32 %v707, 1.0
    %v724 = vadd.f32 %v708, 1.0
    %v725 = vadd.f32 %v709, 1.0
    %v726 = vadd.f32 %v710, 1.0
    %v727 = vadd.f32 %v711, 1.0
    %v728 = vadd.f32 %v712, 1.0
    %v729 = vadd.f32 %v713, 1.0
    %v730 = vmul.f32 %v314, %v714
    %v731 = vmul.f32 %v315, %v715
    %v732 = vmul.f32 %v316, %v716
    %v733 = vmul.f32 %v317, %v717
    %v734 = vmul.f32 %v318, %v718
    %v735 = vmul.f32 %v319, %v719
    %v736 = vmul.f32 %v320, %v720
    %v737 = vmul.f32 %v321, %v721
    %v738 = vmul.f32 %v322, %v722
    %v739 = vmul.f32 %v323, %v723
    %v740 = vmul.f32 %v324, %v724
    %v741 = vmul.f32 %v325, %v725
    %v742 = vmul.f32 %v326, %v726
    %v743 = vmul.f32 %v327, %v727
    %v744 = vmul.f32 %v328, %v728
    %v745 = vmul.f32 %v329, %v729
    %v746 = vpack.c.bf16 %v731, %v730
    %v747 = vpack.c.bf16 %v733, %v732
    %v748 = vpack.c.bf16 %v735, %v734
    %v749 = vpack.c.bf16 %v737, %v736
    %v750 = vpack.c.bf16 %v739, %v738
    %v751 = vpack.c.bf16 %v741, %v740
    %v752 = vpack.c.bf16 %v743, %v742
    %v753 = vpack.c.bf16 %v745, %v744
    %v762 = vunpack.c.l.b16 %v746
    %v763 = vunpack.c.h.b16 %v746
    %v764 = vunpack.c.l.b16 %v747
    %v765 = vunpack.c.h.b16 %v747
    %v766 = vunpack.c.l.b16 %v748
    %v767 = vunpack.c.h.b16 %v748
    %v768 = vunpack.c.l.b16 %v749
    %v769 = vunpack.c.h.b16 %v749
    %v770 = vunpack.c.l.b16 %v750
    %v771 = vunpack.c.h.b16 %v750
    %v772 = vunpack.c.l.b16 %v751
    %v773 = vunpack.c.h.b16 %v751
    %v774 = vunpack.c.l.b16 %v752
    %v775 = vunpack.c.h.b16 %v752
    %v776 = vunpack.c.l.b16 %v753
    %v777 = vunpack.c.h.b16 %v753
    %v778 = vpack.c.b16 %v762, %v762
    %v779 = vpack.c.b16 %v763, %v763
    %v780 = vpack.c.b16 %v764, %v764
    %v781 = vpack.c.b16 %v765, %v765
    %v782 = vpack.c.b16 %v766, %v766
    %v783 = vpack.c.b16 %v767, %v767
    %v784 = vpack.c.b16 %v768, %v768
    %v785 = vpack.c.b16 %v769, %v769
    %v786 = vpack.c.b16 %v770, %v770
    %v787 = vpack.c.b16 %v771, %v771
    %v788 = vpack.c.b16 %v772, %v772
    %v789 = vpack.c.b16 %v773, %v773
    %v790 = vpack.c.b16 %v774, %v774
    %v791 = vpack.c.b16 %v775, %v775
    %v792 = vpack.c.b16 %v776, %v776
    %v793 = vpack.c.b16 %v777, %v777
    %s810 = smul.u32 %s16, 16
    %s811 = smul.addr %s810, 4
    %s812 = scalar_lea.vmem %s3, %s811
    %vm813 = vcmask 519168
    %814 = vst.msk [vmem:[%s812] sm:$0xf] %vm813, %v778
    %815 = vst.msk [vmem:[%s812 + $0x4] sm:$0xf] %vm813, %v779
    %816 = vst.msk [vmem:[%s812 + $0x8] sm:$0xf] %vm813, %v780
    %817 = vst.msk [vmem:[%s812 + $0xc] sm:$0xf] %vm813, %v781
    %818 = vst.msk [vmem:[%s812 + $0x10] sm:$0xf] %vm813, %v782
    %819 = vst.msk [vmem:[%s812 + $0x14] sm:$0xf] %vm813, %v783
    %820 = vst.msk [vmem:[%s812 + $0x18] sm:$0xf] %vm813, %v784
    %821 = vst.msk [vmem:[%s812 + $0x1c] sm:$0xf] %vm813, %v785
    %822 = vst.msk [vmem:[%s812 + $0x20] sm:$0xf] %vm813, %v786
    %823 = vst.msk [vmem:[%s812 + $0x24] sm:$0xf] %vm813, %v787
    %824 = vst.msk [vmem:[%s812 + $0x28] sm:$0xf] %vm813, %v788
    %825 = vst.msk [vmem:[%s812 + $0x2c] sm:$0xf] %vm813, %v789
    %826 = vst.msk [vmem:[%s812 + $0x30] sm:$0xf] %vm813, %v790
    %827 = vst.msk [vmem:[%s812 + $0x34] sm:$0xf] %vm813, %v791
    %828 = vst.msk [vmem:[%s812 + $0x38] sm:$0xf] %vm813, %v792
    %829 = vst.msk [vmem:[%s812 + $0x3c] sm:$0xf] %vm813, %v793
  $region18: #{conv_head_forward.6} parent=0 // loop_footer
    %s20 = sadd.s32 1, %s16
  $region19: #{conv_head_forward.6} parent=0 // loop_footer_branch
    %15 = sbr.rel target = $region15
  $region20: #{conv_head_forward.6} parent=0 // loop_exit
    _
  // Predicated region
  $region21: #{conv_head_forward.6} parent=0 // pred_check
    _
  $region22: #{conv_head_forward.6} parent=0 // pred_check_branch
    %831 = sbr.rel (0) target = $region24
  $region23: #{conv_head_forward.6} parent=0 // pred_region
    _
  $region24: #{conv_head_forward.6} parent=0 // pred_fallthru
    _
  // Predicated region
  $region25: #{conv_head_forward.6} parent=0 // pred_check
    _
  $region26: #{conv_head_forward.6} parent=0 // pred_check_branch
    %833 = sbr.rel (0) target = $region28
  $region27: #{conv_head_forward.6} parent=0 // pred_region
    _
  $region28: #{conv_head_forward.6} parent=0 // pred_fallthru
    _

// kernel: conv_head_forward.9
$region0: #{conv_head_forward.9}
  #allocation0 [shape = 'u32[]', space=smem, size = 0x4, offset = 0x4, fixed_abs, tag = 'smem constant byte address 0x4 - core index']
  #allocation1 [shape = 'u32[144,128]{1,0:T(1,128)}', space=vmem, size = 0x12000, scoped, tag = 'internal scratch']
  %s0 = inlined_call_operand.vmem [shape: bf16[512,8,64], index: 0, kind: input, shape index: {}]
  %s1 = inlined_call_operand.vmem [shape: bf16[16,8], index: 1, kind: input, shape index: {}]
  %s2 = inlined_call_operand.vmem [shape: f32[16,1], index: 2, kind: input, shape index: {}]
  %s3 = inlined_call_operand.vmem [shape: bf16[4,16], index: 3, kind: input, shape index: {}]
  %s4 = inlined_call_operand.vmem [shape: f32[4,1], index: 4, kind: input, shape index: {}]
  %s5 = inlined_call_operand.vmem [shape: f32[512,4,64], index: 5, kind: output, shape index: {}]
  %s6 = sld [smem:[#allocation0]]
  $region37: #{conv_head_forward.9} parent=0
    _
  %s8 = ssub.s32 1, %s6
  %s9 = scalar_select 0, %s8, %s6
  // Predicated region
  $region2: #{conv_head_forward.9} parent=0 // pred_check
    _
  $region3: #{conv_head_forward.9} parent=0 // pred_check_branch
    %11 = sbr.rel (0) target = $region5
  $region4: #{conv_head_forward.9} parent=0 // pred_region
    _
  $region5: #{conv_head_forward.9} parent=0 // pred_fallthru
    _
  // Predicated region
  $region6: #{conv_head_forward.9} parent=0 // pred_check
    _
  $region7: #{conv_head_forward.9} parent=0 // pred_check_branch
    %13 = sbr.rel (0) target = $region9
  $region8: #{conv_head_forward.9} parent=0 // pred_region
    _
  $region9: #{conv_head_forward.9} parent=0 // pred_fallthru
    _
  // Predicated region
  $region10: #{conv_head_forward.9} parent=0 // pred_check
    _
  $region11: #{conv_head_forward.9} parent=0 // pred_check_branch
    %15 = sbr.rel (0) target = $region13
  $region12: #{conv_head_forward.9} parent=0 // pred_region
    _
  $region13: #{conv_head_forward.9} parent=0 // pred_fallthru
    _
  // Predicated region
  $region14: #{conv_head_forward.9} parent=0 // pred_check
    _
  $region15: #{conv_head_forward.9} parent=0 // pred_check_branch
    %17 = sbr.rel (0) target = $region17
  $region16: #{conv_head_forward.9} parent=0 // pred_region
    _
  $region17: #{conv_head_forward.9} parent=0 // pred_fallthru
    _
  // Predicated region
  $region18: #{conv_head_forward.9} parent=0 // pred_check
    _
  $region19: #{conv_head_forward.9} parent=0 // pred_check_branch
    %19 = sbr.rel (0) target = $region21
  $region20: #{conv_head_forward.9} parent=0 // pred_region
    _
  $region21: #{conv_head_forward.9} parent=0 // pred_fallthru
    _
  loop: start=0, step=1, limit=512
  $region22: #{conv_head_forward.9} parent=0 // loop_pre_header
    _
  $region23: #{conv_head_forward.9} parent=0 // loop_header
    %s22 = sphi 0, %s26
    %p23 = scmp.ge.s32.totalorder %s22, 512
  $region24: #{conv_head_forward.9} parent=0 // loop_header_branch
    %25 = sbr.rel (%p23) target = $region28
  $region25: #{conv_head_forward.9} parent=0 // loop_body
    %v27 = vld [vmem:[%s1] sm:$0xf]
    %v28 = vld [vmem:[%s1 + $0x4] sm:$0xf]
    %s29 = smul.addr %s22, 4
    %s30 = scalar_lea.vmem %s0, %s29
    %v31 = vld [vmem:[%s30] sm:$0xf]
    %v32 = vld [vmem:[%s2] sm:$0xff]
    %v33 = vld [vmem:[%s2 + $0x8] sm:$0xff]
    %35 = vset.pattern.permute.xlu0 0
    %36 = vperm.xlu0 %35, %v32
    %v37 = vpop.permute.xlu0 %36
    %40 = vset.pattern.permute.xlu0 0
    %41 = vperm.xlu0 %40, %v33
    %v42 = vpop.permute.xlu0 %41
    %v46 = vunpack.c.l.b16 %v27
    %v47 = vunpack.c.l.b16 %v28
    %v48 = vpack.c.b16 %v47, %v46
    %vm49 = vcmask 64512
    %v51 = vsel %vm49, %v48, 0
    %vm53 = vcmask 1043456
    %v55 = vsel %vm53, %v31, 0
    %57 = vmatprep.subr.bf16.mxu0 0
    %58 = vmatpush1.bf16.msra.mxu0 0
    %59 = vmatprep.subr.bf16.mxu0 0
    %60 = vmatpush1.bf16.msra.mxu0 0
    %61 = vmatprep.subr.bf16.mxu0 0
    %62 = vmatpush1.bf16.msra.mxu0 0
    %63 = vmatprep.subr.bf16.mxu0 0
    %64 = vmatpush1.bf16.msra.mxu0 0
    %65 = vmatprep.subr.bf16.mxu0 0
    %66 = vmatpush1.bf16.msra.mxu0 0
    %67 = vmatprep.subr.bf16.mxu0 0
    %68 = vmatpush1.bf16.msra.mxu0 0
    %69 = vmatprep.subr.bf16.mxu0 0
    %70 = vmatpush1.bf16.msra.mxu0 0
    %71 = vmatprep.subr.bf16.mxu0 0
    %72 = vmatpush1.bf16.msra.mxu0 %v55
    %73 = vmatprep.subr.bf16.mxu0 0
    %74 = vmatpush2.bf16.msra.mxu0 0
    %75 = vmatprep.subr.bf16.mxu0 0
    %76 = vmatpush2.bf16.msra.mxu0 0
    %77 = vmatprep.subr.bf16.mxu0 0
    %78 = vmatpush2.bf16.msra.mxu0 0
    %79 = vmatprep.subr.bf16.mxu0 0
    %80 = vmatpush2.bf16.msra.mxu0 0
    %81 = vmatprep.subr.bf16.mxu0 0
    %82 = vmatpush2.bf16.msra.mxu0 0
    %83 = vmatprep.subr.bf16.mxu0 0
    %84 = vmatpush2.bf16.msra.mxu0 0
    %85 = vmatprep.subr.bf16.mxu0 0
    %86 = vmatpush2.bf16.msra.mxu0 0
    %87 = vmatprep.subr.bf16.mxu0 0
    %88 = vmatpush2.bf16.msra.mxu0 0
    %89 = vmatprep.mubr.bf16.mxu0 0
    %90 = vmatmul.mubr.bf16.gmra.mxu0 %v51
    %v91 = vpop.f32.mrf.mxu0
    %v92 = vadd.f32 %v37, %v91
    %v93 = vpop.f32.mrf.mxu0
    %v94 = vpop.f32.mrf.mxu0
    %v95 = vadd.f32 %v42, %v94
    %v96 = vpop.f32.mrf.mxu0
    %97 = vdwg.mxu0
    %v98 = vmul.f32 %v92, 0.5
    %v99 = vmul.f32 %v95, 0.5
    %v100 = vmul.f32 %v92, 0.70710677
    %v101 = vmul.f32 %v95, 0.70710677
    %vm102 = vcmp.ge.f32.partialorder %v100, 0.0
    %vm103 = vcmp.ge.f32.partialorder %v101, 0.0
    %v104 = vsel %vm102, 1.0, -1.0
    %v105 = vsel %vm103, 1.0, -1.0
    %v106 = vand.u32 2147483647, %v100
    %v107 = vand.u32 2147483647, %v101
    %v108 = vmul.f32 %v106, 0.3275911
    %v109 = vmul.f32 %v107, 0.3275911
    %v110 = vadd.f32 %v108, 1.0
    %v111 = vadd.f32 %v109, 1.0
    %v112 = vrcp.pop %v110
    %v113 = vmul.f32 1.0, %v112
    %v114 = vrcp.pop %v111
    %v115 = vmul.f32 1.0, %v114
    %v116 = vmul.f32 %v113, 1.0614054
    %v117 = vmul.f32 %v115, 1.0614054
    %v118 = vadd.f32 %v116, -1.4531521
    %v119 = vadd.f32 %v117, -1.4531521
    %v120 = vmul.f32 %v118, %v113
    %v121 = vmul.f32 %v119, %v115
    %v122 = vadd.f32 %v120, 1.4214138
    %v123 = vadd.f32 %v121, 1.4214138
    %v124 = vmul.f32 %v122, %v113
    %v125 = vmul.f32 %v123, %v115
    %v126 = vadd.f32 %v124, -0.28449672
    %v127 = vadd.f32 %v125, -0.28449672
    %v128 = vmul.f32 %v126, %v113
    %v129 = vmul.f32 %v127, %v115
    %v130 = vadd.f32 %v128, 0.2548296
    %v131 = vadd.f32 %v129, 0.2548296
    %v132 = vmul.f32 %v130, %v113
    %v133 = vmul.f32 %v131, %v115
    %v134 = vsub.f32 0.0, %v106
    %v135 = vsub.f32 0.0, %v107
    %v136 = vmul.f32 %v134, %v106
    %v137 = vmul.f32 %v135, %v107
    %v138 = vmul.f32 %v136, 1.442695
    %v139 = vpow.pop %v138
    %v140 = vmul.f32 %v137, 1.442695
    %v141 = vpow.pop %v140
    %v142 = vmul.f32 %v132, %v139
    %v143 = vmul.f32 %v133, %v141
    %v144 = vsub.f32 1.0, %v142
    %v145 = vsub.f32 1.0, %v143
    %v146 = vmul.f32 %v104, %v144
    %v147 = vmul.f32 %v105, %v145
    %v148 = vadd.f32 %v146, 1.0
    %v149 = vadd.f32 %v147, 1.0
    %v150 = vmul.f32 %v98, %v148
    %v151 = vmul.f32 %v99, %v149
    %v152 = vld [vmem:[%s3] sm:$0x3]
    %v153 = vpack.c.bf16 %v151, %v150
    %v154 = vld [vmem:[%s4] sm:$0xf]
    %156 = vset.pattern.permute.xlu0 0
    %157 = vperm.xlu0 %156, %v154
    %v158 = vpop.permute.xlu0 %157
    %vm160 = vcmask 130048
    %v162 = vsel %vm160, %v152, 0
    %164 = vmatprep.subr.bf16.mxu0 0
    %165 = vmatpush1.bf16.msra.mxu0 0
    %166 = vmatprep.subr.bf16.mxu0 0
    %167 = vmatpush1.bf16.msra.mxu0 0
    %168 = vmatprep.subr.bf16.mxu0 0
    %169 = vmatpush1.bf16.msra.mxu0 0
    %170 = vmatprep.subr.bf16.mxu0 0
    %171 = vmatpush1.bf16.msra.mxu0 0
    %172 = vmatprep.subr.bf16.mxu0 0
    %173 = vmatpush1.bf16.msra.mxu0 0
    %174 = vmatprep.subr.bf16.mxu0 0
    %175 = vmatpush1.bf16.msra.mxu0 0
    %176 = vmatprep.subr.bf16.mxu0 0
    %177 = vmatpush1.bf16.msra.mxu0 0
    %178 = vmatprep.subr.bf16.mxu0 0
    %179 = vmatpush1.bf16.msra.mxu0 %v153
    %180 = vmatprep.subr.bf16.mxu0 0
    %181 = vmatpush2.bf16.msra.mxu0 0
    %182 = vmatprep.subr.bf16.mxu0 0
    %183 = vmatpush2.bf16.msra.mxu0 0
    %184 = vmatprep.subr.bf16.mxu0 0
    %185 = vmatpush2.bf16.msra.mxu0 0
    %186 = vmatprep.subr.bf16.mxu0 0
    %187 = vmatpush2.bf16.msra.mxu0 0
    %188 = vmatprep.subr.bf16.mxu0 0
    %189 = vmatpush2.bf16.msra.mxu0 0
    %190 = vmatprep.subr.bf16.mxu0 0
    %191 = vmatpush2.bf16.msra.mxu0 0
    %192 = vmatprep.subr.bf16.mxu0 0
    %193 = vmatpush2.bf16.msra.mxu0 0
    %194 = vmatprep.subr.bf16.mxu0 0
    %195 = vmatpush2.bf16.msra.mxu0 0
    %196 = vmatprep.mubr.bf16.mxu0 0
    %197 = vmatmul.mubr.bf16.gmra.mxu0 %v162
    %v198 = vpop.f32.mrf.mxu0
    %v199 = vadd.f32 %v158, %v198
    %v200 = vpop.f32.mrf.mxu0
    %v201 = vpop.f32.mrf.mxu0
    %v202 = vpop.f32.mrf.mxu0
    %203 = vdwg.mxu0
    %s204 = smul.u32 %s22, 4
    %s205 = scalar_lea.vmem %s5, %s204
    %vm206 = vcmask 519168
    %207 = vst.msk [vmem:[%s205] sm:$0xf] %vm206, %v199
  $region26: #{conv_head_forward.9} parent=0 // loop_footer
    %s26 = sadd.s32 1, %s22
  $region27: #{conv_head_forward.9} parent=0 // loop_footer_branch
    %21 = sbr.rel target = $region23
  $region28: #{conv_head_forward.9} parent=0 // loop_exit
    _
  // Predicated region
  $region29: #{conv_head_forward.9} parent=0 // pred_check
    _
  $region30: #{conv_head_forward.9} parent=0 // pred_check_branch
    %209 = sbr.rel (0) target = $region32
  $region31: #{conv_head_forward.9} parent=0 // pred_region
    _
  $region32: #{conv_head_forward.9} parent=0 // pred_fallthru
    _
  // Predicated region
  $region33: #{conv_head_forward.9} parent=0 // pred_check
    _
  $region34: #{conv_head_forward.9} parent=0 // pred_check_branch
    %211 = sbr.rel (0) target = $region36
  $region35: #{conv_head_forward.9} parent=0 // pred_region
    _
  $region36: #{conv_head_forward.9} parent=0 // pred_fallthru
    _

</llo_original>
